<compile_context>
chip_gen: v7x
topology: tpu7x:2x2x1
jax: 0.10.0
libtpu: 0.0.40
codegen_flags: <defaults>
</compile_context>

<pallas_src>
import jax
import jax.numpy as jnp
import numpy as np
from jax.experimental import pallas as pl
from jax.experimental.pallas import tpu as pltpu

# ---------------------------------------------------------------------------
# Static configuration (eval branch: batch == depth, b = 1)
# ---------------------------------------------------------------------------
DEPTH = 6                    # batch == depth at eval time
CIN = 4
COUT = 8
H = 16
W = 16
HP, WP = H // 2, W // 2      # spatial size after AvgPool2d(3, 2, 1)
LIN = W * CIN                # 64   input lanes   (w, ci)
LOUT = W * COUT              # 128  conv lanes    (w, co)
LP = WP * COUT               # 64   pooled lanes  (wo, co)

NSTEP = 2                    # grid steps (one per TensorCore on v7x)
DOWN = DEPTH // NSTEP        # own images per step            (3)
NCOMP = DOWN + 1             # images computed per step (+1 depth halo) (4)

# row offsets inside the packed bf16 matmul table (width LP = 64)
_Q_OFF = 0                           # (LOUT, LP)          w-pool matrix
_PH_OFF = _Q_OFF + LOUT              # (NCOMP*HP, NCOMP*H) block-diag h-pool matrix
_FC_HW = _PH_OFF + NCOMP * HP        # (LP, LP) channel-attention fc (hw)
_FC_DW = _FC_HW + LP                 # (LP, LP)                        (dw)
_FC_HD = _FC_DW + LP                 # (LP, LP)                        (hd)
_FIN_OFF = _FC_HD + LP               # (LP, LP) conv_final 1x1 (block-diag over wo)
_PB_ROWS = _FIN_OFF + LP             # 416

# row offsets inside the packed f32 vector table (width LP = 64)
_V_WDW = 0       # 9 rows: conv_dw depthwise taps (BN scale + w-edge mask folded)
_V_WHD = 9       # 9 rows: conv_hd depthwise taps (BN scale folded)
_V_DWSH = 18
_V_HDSH = 19
_V_BHW = 20
_V_BDW = 21
_V_BHD = 22
_V_FINSH = 23
_VEC_ROWS = 24


# ---------------------------------------------------------------------------
# Fused kernel
# ---------------------------------------------------------------------------
def _cra_kernel(x_ref, a_ref, hws_ref, pb_ref, vec_ref, o_ref):
    f32, bf16 = jnp.float32, jnp.bfloat16
    step = pl.program_id(0)
    base = 2 * step                       # first global image computed by this step

    def vrow(i):                          # (1, LP) f32 row of the packed vector table
        return vec_ref[i:i + 1, :]

    zrow_in = jnp.zeros((1, LIN), f32)

    # ---- stage A: conv_hw 3x3 (s1, p1, no bias) + folded BN + SiLU ---------------
    # One matmul per image: lhs (H, 3*LIN) = [x(h-1) | x(h) | x(h+1)] rows,
    # rhs (3*LIN, LOUT) folds the kw shifts, w zero-padding, Cin mix and BN scale.
    acts = []
    for j in range(NCOMP):
        xj = x_ref[base + j]                                          # (H, LIN)
        lhs = jnp.concatenate(
            [jnp.concatenate([zrow_in, xj[:H - 1, :]], axis=0),       # rows h-1
             xj,                                                      # rows h
             jnp.concatenate([xj[1:, :], zrow_in], axis=0)],          # rows h+1
            axis=1).astype(bf16)                                      # (H, 3*LIN)
        y = jnp.dot(lhs, a_ref[...], preferred_element_type=f32)      # (H, LOUT)
        y += hws_ref[0:1, :]
        y *= jax.nn.sigmoid(y)                                        # SiLU
        acts.append(y)
    yact = jnp.concatenate(acts, axis=0).astype(bf16)                 # (NCOMP*H, LOUT)

    # ---- stage A: AvgPool2d(3, 2, 1), count_include_pad=True, as two matmuls ------
    phbd = pb_ref[_PH_OFF:_PH_OFF + NCOMP * HP, :]                    # (32, 64) bf16
    hpool = jnp.dot(phbd, yact, preferred_element_type=f32)           # (32, LOUT)
    q = pb_ref[_Q_OFF:_Q_OFF + LOUT, :]                               # (128, 64) bf16
    pooled = jnp.dot(hpool.astype(bf16), q,
                     preferred_element_type=f32) * (1.0 / 9.0)        # (32, LP)

    # ---- depth / h zero-padded halo arrangement (pure values, no scratch) ---------
    zrow_p = jnp.zeros((1, LP), f32)
    padded = []
    for j in range(NCOMP):
        pj = pooled[j * HP:(j + 1) * HP, :]
        padded.append(jnp.concatenate([zrow_p, pj, zrow_p], axis=0))  # (HP+2, LP)
    stackc = jnp.stack(padded, axis=0)                                # (NCOMP, HP+2, LP)
    zslab = jnp.zeros((1, HP + 2, LP), f32)
    # step 0 computes global images 0..3 -> depth -1 is the zero slab (prepended)
    # step 1 computes global images 2..5 -> depth  6 is the zero slab (appended)
    pd = jnp.where(step == 0,
                   jnp.concatenate([zslab, stackc], axis=0),
                   jnp.concatenate([stackc, zslab], axis=0))          # (DOWN+2, HP+2, LP)

    # ---- tail: depthwise (depth,w) / (h,depth) branches -----------------------------
    def shift_wp(v):   # out[:, wo] = v[:, wo-1]; wo = 0    -> 0   (kw = 0 tap)
        return jnp.concatenate([jnp.zeros((HP, COUT), f32), v[:, :LP - COUT]], axis=1)

    def shift_wm(v):   # out[:, wo] = v[:, wo+1]; wo = WP-1 -> 0   (kw = 2 tap)
        return jnp.concatenate([v[:, COUT:], jnp.zeros((HP, COUT), f32)], axis=1)

    x_dw_l, x_hd_l, m_hw, m_dw, m_hd = [], [], [], [], []
    for di in range(DOWN):
        x_hw = pd[1 + di, 1:1 + HP, :]                     # own pooled image (HP, LP)
        acc_dw = jnp.zeros((HP, LP), f32)
        acc_hd = jnp.zeros((HP, LP), f32)
        for kd in range(3):
            src = pd[di + kd, 1:1 + HP, :]
            acc_dw += shift_wp(src) * vrow(_V_WDW + kd * 3 + 0)
            acc_dw += src * vrow(_V_WDW + kd * 3 + 1)
            acc_dw += shift_wm(src) * vrow(_V_WDW + kd * 3 + 2)
            for kh in range(3):
                acc_hd += pd[di + kd, kh:kh + HP, :] * vrow(_V_WHD + kh * 3 + kd)
        x_dw = acc_dw + vrow(_V_DWSH)
        x_dw *= jax.nn.sigmoid(x_dw)
        x_hd = acc_hd + vrow(_V_HDSH)
        x_hd *= jax.nn.sigmoid(x_hd)
        x_dw_l.append(x_dw)
        x_hd_l.append(x_hd)
        m_hw.append(jnp.sum(x_hw, axis=0, keepdims=True))
        m_dw.append(jnp.sum(x_dw, axis=0, keepdims=True))
        m_hd.append(jnp.sum(x_hd, axis=0, keepdims=True))

    # ---- channel attention: one matmul per branch, batched over depth ---------------
    mpad = jnp.zeros((8 - DOWN, LP), f32)        # pad matmul M to a sublane multiple

    def attention(rows, fc_off, b_row):
        m = jnp.concatenate(rows + [mpad], axis=0).astype(bf16)       # (8, LP)
        logit = jnp.dot(m, pb_ref[fc_off:fc_off + LP, :],
                        preferred_element_type=f32) + vrow(b_row)
        return jax.nn.sigmoid(logit)

    att_hw = attention(m_hw, _FC_HW, _V_BHW)
    att_dw = attention(m_dw, _FC_DW, _V_BDW)
    att_hd = attention(m_hd, _FC_HD, _V_BHD)

    # ---- conv_final 1x1 (+ folded BN) + SiLU on (x_dw + x_hd + x_hw) ----------------
    rows = []
    for di in range(DOWN):
        x_hw = pd[1 + di, 1:1 + HP, :]
        rows.append(x_dw_l[di] * att_dw[di:di + 1, :]
                    + x_hd_l[di] * att_hd[di:di + 1, :]
                    + x_hw * att_hw[di:di + 1, :])
    s_all = jnp.concatenate(rows, axis=0).astype(bf16)                # (DOWN*HP, LP)
    out = jnp.dot(s_all, pb_ref[_FIN_OFF:_FIN_OFF + LP, :],
                  preferred_element_type=f32) + vrow(_V_FINSH)
    out *= jax.nn.sigmoid(out)
    o_ref[...] = out.reshape(DOWN, HP, LP).astype(o_ref.dtype)


# ---------------------------------------------------------------------------
# Parameters (deterministic synthetic weights, BN folded with eps=1e-5)
# ---------------------------------------------------------------------------
def _fold_bn(key):
    k1, k2, k3, k4 = jax.random.split(key, 4)
    gamma = jax.random.uniform(k1, (COUT,), jnp.float32, 0.5, 1.5)
    beta = 0.1 * jax.random.normal(k2, (COUT,), jnp.float32)
    mean = 0.1 * jax.random.normal(k3, (COUT,), jnp.float32)
    var = jax.random.uniform(k4, (COUT,), jnp.float32, 0.5, 1.5)
    scale = gamma / jnp.sqrt(var + 1e-5)
    shift = beta - mean * scale
    return np.asarray(scale), np.asarray(shift)


def init_params(key):
    """Synthetic parameters in PyTorch layouts."""
    ks = jax.random.split(key, 14)
    n = lambda k, shape: np.asarray(0.1 * jax.random.normal(k, shape, jnp.float32))
    p = {}
    p["w_hw"] = n(ks[0], (COUT, CIN, 3, 3))
    p["hw_scale"], p["hw_shift"] = _fold_bn(ks[1])
    p["w_dw"] = n(ks[2], (COUT, 1, 3, 3))
    p["dw_scale"], p["dw_shift"] = _fold_bn(ks[3])
    p["w_hd"] = n(ks[4], (COUT, 1, 3, 3))
    p["hd_scale"], p["hd_shift"] = _fold_bn(ks[5])
    p["fc_hw_w"], p["fc_hw_b"] = n(ks[6], (COUT, COUT)), n(ks[7], (COUT,))
    p["fc_dw_w"], p["fc_dw_b"] = n(ks[8], (COUT, COUT)), n(ks[9], (COUT,))
    p["fc_hd_w"], p["fc_hd_b"] = n(ks[10], (COUT, COUT)), n(ks[11], (COUT,))
    p["w_fin"] = n(ks[12], (COUT, COUT))
    p["fin_scale"], p["fin_shift"] = _fold_bn(ks[13])
    return p


def pack_params(p):
    """Pack all weights into two lane-aligned tables + two small f32 vectors."""
    # conv_hw as a "row matmul": A[kh] maps a (W*CIN) input row to a (W*COUT) output
    # row; kw shift, w zero-padding and BN scale are folded into the matrix.
    a = np.zeros((3, LIN, LOUT), np.float32)
    for kh in range(3):
        for wo in range(W):
            for kw in range(3):
                wi = wo + kw - 1
                if 0 <= wi < W:
                    blk = (p["w_hw"][:, :, kh, kw] * p["hw_scale"][:, None]).T
                    a[kh, wi * CIN:(wi + 1) * CIN, wo * COUT:(wo + 1) * COUT] = blk
    a_tab = jnp.asarray(a.reshape(3 * LIN, LOUT), jnp.bfloat16)
    hws = jnp.asarray(np.tile(p["hw_shift"], W)[None, :], jnp.float32)      # (1, 128)

    # AvgPool2d(3, 2, 1) (count_include_pad=True) as two 0/1 matrices.
    phbd = np.zeros((NCOMP * HP, NCOMP * H), np.float32)
    for b in range(NCOMP):
        for ho in range(HP):
            for h in range(max(0, 2 * ho - 1), min(H, 2 * ho + 2)):
                phbd[b * HP + ho, b * H + h] = 1.0
    qmat = np.zeros((LOUT, LP), np.float32)
    for wo in range(WP):
        for w in range(max(0, 2 * wo - 1), min(W, 2 * wo + 2)):
            for c in range(COUT):
                qmat[w * COUT + c, wo * COUT + c] = 1.0

    # channel-attention fc: spatial mean (1/(Hp*Wp)) and the tile-back over wo folded in
    def fc_tiled(wfc):
        return np.tile(wfc.T / float(HP * WP), (WP, WP))                    # (64, 64)

    # conv_final 1x1 (+ folded BN scale), block-diagonal over wo
    wfin_t = np.kron(np.eye(WP, dtype=np.float32),
                     (p["w_fin"] * p["fin_scale"][:, None]).T)              # (64, 64)

    pb = np.zeros((_PB_ROWS, LP), np.float32)
    pb[_Q_OFF:_Q_OFF + LOUT] = qmat
    pb[_PH_OFF:_PH_OFF + NCOMP * HP] = phbd
    pb[_FC_HW:_FC_HW + LP] = fc_tiled(p["fc_hw_w"])
    pb[_FC_DW:_FC_DW + LP] = fc_tiled(p["fc_dw_w"])
    pb[_FC_HD:_FC_HD + LP] = fc_tiled(p["fc_hd_w"])
    pb[_FIN_OFF:_FIN_OFF + LP] = wfin_t
    pb_tab = jnp.asarray(pb, jnp.bfloat16)

    # packed f32 per-channel vectors (tiled over wo -> lane pattern (wo, c))
    vec = np.zeros((_VEC_ROWS, LP), np.float32)
    for kd in range(3):
        for kw in range(3):
            row = np.tile(p["w_dw"][:, 0, kd, kw] * p["dw_scale"], WP)
            if kw == 0:
                row[:COUT] = 0.0            # no w-1 source at wo = 0
            if kw == 2:
                row[-COUT:] = 0.0           # no w+1 source at wo = WP-1
            vec[_V_WDW + kd * 3 + kw] = row
    for kh in range(3):
        for kd in range(3):
            vec[_V_WHD + kh * 3 + kd] = np.tile(p["w_hd"][:, 0, kh, kd] * p["hd_scale"], WP)
    vec[_V_DWSH] = np.tile(p["dw_shift"], WP)
    vec[_V_HDSH] = np.tile(p["hd_shift"], WP)
    vec[_V_BHW] = np.tile(p["fc_hw_b"], WP)
    vec[_V_BDW] = np.tile(p["fc_dw_b"], WP)
    vec[_V_BHD] = np.tile(p["fc_hd_b"], WP)
    vec[_V_FINSH] = np.tile(p["fin_shift"], WP)
    vec_tab = jnp.asarray(vec, jnp.float32)

    return a_tab, hws, pb_tab, vec_tab


# ---------------------------------------------------------------------------
# CRAbabckup.forward (inference branch)
# ---------------------------------------------------------------------------
def cra_forward(x_nchw, packed):
    a_tab, hws, pb_tab, vec_tab = packed
    # NCHW -> (depth, H, W*Cin): lane-dense last dim (64 lanes)
    x2d = jnp.transpose(x_nchw, (0, 2, 3, 1)).reshape(DEPTH, H, LIN)

    out = pl.pallas_call(
        _cra_kernel,
        out_shape=jax.ShapeDtypeStruct((DEPTH, HP, LP), x_nchw.dtype),
        grid=(NSTEP,),
        in_specs=[
            pl.BlockSpec((DEPTH, H, LIN), lambda s: (0, 0, 0)),
            pl.BlockSpec((3 * LIN, LOUT), lambda s: (0, 0)),
            pl.BlockSpec((1, LOUT), lambda s: (0, 0)),
            pl.BlockSpec((_PB_ROWS, LP), lambda s: (0, 0)),
            pl.BlockSpec((_VEC_ROWS, LP), lambda s: (0, 0)),
        ],
        out_specs=pl.BlockSpec((DOWN, HP, LP), lambda s: (s, 0, 0)),
        compiler_params=pltpu.CompilerParams(dimension_semantics=("parallel",)),
    )(x2d, a_tab, hws, pb_tab, vec_tab)

    # (depth, ho, wo*COUT+co) -> NCHW
    return jnp.transpose(out.reshape(DEPTH, HP, WP, COUT), (0, 3, 1, 2))
    # TODO(synk): training-branch BatchNorm (batch statistics) not implemented;
    # only the eval path with folded running stats is covered.


if __name__ == "__main__":
    key = jax.random.PRNGKey(0)
    kx, kp = jax.random.split(key)
    x = jax.random.normal(kx, (DEPTH, CIN, H, W), jnp.float32)   # batch == depth == 6
    packed = pack_params(init_params(kp))

    out = jax.block_until_ready(jax.jit(cra_forward)(x, packed))
    assert out.shape == (DEPTH, COUT, HP, WP), out.shape
    assert bool(jnp.all(jnp.isfinite(out)))
    print("KERNEL_OK")
</pallas_src>

<mosaic_0001>
module attributes {stable_mosaic.version = 11 : i64} {
  func.func @_cra_kernel(%arg0: i32, %arg1: memref<6x16x64xf32, #tpu.memory_space<vmem>>, %arg2: memref<192x128xbf16, #tpu.memory_space<vmem>>, %arg3: memref<1x128xf32, #tpu.memory_space<vmem>>, %arg4: memref<416x64xbf16, #tpu.memory_space<vmem>>, %arg5: memref<24x64xf32, #tpu.memory_space<vmem>>, %arg6: memref<3x8x64xf32, #tpu.memory_space<vmem>>) attributes {dimension_semantics = [#tpu.dimension_semantics<parallel>], iteration_bounds = array<i64: 2>, scalar_prefetch = 0 : i64, scratch_operands = 0 : i64, tpu.core_type = #tpu.core_type<tc>, window_params = [{pipeline_mode = #tpu.pipeline_mode<synchronous>, transform_indices = @transform_0, window_bounds = array<i64: 6, 16, 64>}, {pipeline_mode = #tpu.pipeline_mode<synchronous>, transform_indices = @transform_1, window_bounds = array<i64: 192, 128>}, {pipeline_mode = #tpu.pipeline_mode<synchronous>, transform_indices = @transform_2, window_bounds = array<i64: 1, 128>}, {pipeline_mode = #tpu.pipeline_mode<synchronous>, transform_indices = @transform_3, window_bounds = array<i64: 416, 64>}, {pipeline_mode = #tpu.pipeline_mode<synchronous>, transform_indices = @transform_4, window_bounds = array<i64: 24, 64>}, {transform_indices = @transform_5, window_bounds = array<i64: 3, 8, 64>}]} {
    %c2_i32 = arith.constant 2 : i32
    %0 = arith.muli %c2_i32, %arg0 : i32
    %cst = arith.constant 0.000000e+00 : f32
    %1 = vector.broadcast %cst : f32 to vector<1x64xf32>
    %c0_i32 = arith.constant 0 : i32
    %2 = arith.addi %0, %c0_i32 : i32
    %3 = arith.index_cast %2 : i32 to index
    %c0 = arith.constant 0 : index
    %c0_0 = arith.constant 0 : index
    %4 = vector.load %arg1[%3, %c0, %c0_0] : memref<6x16x64xf32, #tpu.memory_space<vmem>>, vector<1x16x64xf32>
    %5 = vector.shape_cast %4 : vector<1x16x64xf32> to vector<16x64xf32>
    %6 = vector.extract_strided_slice %5 {offsets = [0, 0], sizes = [15, 64], strides = [1, 1]} : vector<16x64xf32> to vector<15x64xf32>
    %7 = tpu.concatenate %1, %6 in 0 : vector<1x64xf32>, vector<15x64xf32> -> vector<16x64xf32>
    %8 = vector.extract_strided_slice %5 {offsets = [1, 0], sizes = [15, 64], strides = [1, 1]} : vector<16x64xf32> to vector<15x64xf32>
    %9 = tpu.concatenate %8, %1 in 0 : vector<15x64xf32>, vector<1x64xf32> -> vector<16x64xf32>
    %10 = tpu.concatenate %7, %5, %9 in 1 : vector<16x64xf32>, vector<16x64xf32>, vector<16x64xf32> -> vector<16x192xf32>
    %11 = arith.truncf %10 : vector<16x192xf32> to vector<16x192xbf16>
    %c0_1 = arith.constant 0 : index
    %c0_2 = arith.constant 0 : index
    %12 = vector.load %arg2[%c0_1, %c0_2] : memref<192x128xbf16, #tpu.memory_space<vmem>>, vector<192x128xbf16>
    %cst_3 = arith.constant dense<0.000000e+00> : vector<16x128xf32>
    %13 = tpu.matmul %11, %12, %cst_3 {dimension_numbers = #tpu.dot_dimension_numbers<[1], [0], [0], [1], [0, 0, 1, 1], [], []>} : vector<16x192xbf16>, vector<192x128xbf16>, vector<16x128xf32> -> vector<16x128xf32>
    %c0_4 = arith.constant 0 : index
    %c0_5 = arith.constant 0 : index
    %14 = vector.load %arg3[%c0_4, %c0_5] : memref<1x128xf32, #tpu.memory_space<vmem>>, vector<1x128xf32>
    %15 = vector.broadcast %14 : vector<1x128xf32> to vector<16x128xf32>
    %16 = arith.addf %13, %15 : vector<16x128xf32>
    %17 = arith.negf %16 : vector<16x128xf32>
    %18 = math.exp %17 : vector<16x128xf32>
    %cst_6 = arith.constant 1.000000e+00 : f32
    %19 = vector.broadcast %cst_6 : f32 to vector<16x128xf32>
    %20 = arith.addf %19, %18 : vector<16x128xf32>
    %21 = arith.divf %19, %20 : vector<16x128xf32>
    %22 = arith.mulf %16, %21 : vector<16x128xf32>
    %c1_i32 = arith.constant 1 : i32
    %23 = arith.addi %0, %c1_i32 : i32
    %24 = arith.index_cast %23 : i32 to index
    %c0_7 = arith.constant 0 : index
    %c0_8 = arith.constant 0 : index
    %25 = vector.load %arg1[%24, %c0_7, %c0_8] : memref<6x16x64xf32, #tpu.memory_space<vmem>>, vector<1x16x64xf32>
    %26 = vector.shape_cast %25 : vector<1x16x64xf32> to vector<16x64xf32>
    %27 = vector.extract_strided_slice %26 {offsets = [0, 0], sizes = [15, 64], strides = [1, 1]} : vector<16x64xf32> to vector<15x64xf32>
    %28 = tpu.concatenate %1, %27 in 0 : vector<1x64xf32>, vector<15x64xf32> -> vector<16x64xf32>
    %29 = vector.extract_strided_slice %26 {offsets = [1, 0], sizes = [15, 64], strides = [1, 1]} : vector<16x64xf32> to vector<15x64xf32>
    %30 = tpu.concatenate %29, %1 in 0 : vector<15x64xf32>, vector<1x64xf32> -> vector<16x64xf32>
    %31 = tpu.concatenate %28, %26, %30 in 1 : vector<16x64xf32>, vector<16x64xf32>, vector<16x64xf32> -> vector<16x192xf32>
    %32 = arith.truncf %31 : vector<16x192xf32> to vector<16x192xbf16>
    %c0_9 = arith.constant 0 : index
    %c0_10 = arith.constant 0 : index
    %33 = vector.load %arg2[%c0_9, %c0_10] : memref<192x128xbf16, #tpu.memory_space<vmem>>, vector<192x128xbf16>
    %cst_11 = arith.constant dense<0.000000e+00> : vector<16x128xf32>
    %34 = tpu.matmul %32, %33, %cst_11 {dimension_numbers = #tpu.dot_dimension_numbers<[1], [0], [0], [1], [0, 0, 1, 1], [], []>} : vector<16x192xbf16>, vector<192x128xbf16>, vector<16x128xf32> -> vector<16x128xf32>
    %c0_12 = arith.constant 0 : index
    %c0_13 = arith.constant 0 : index
    %35 = vector.load %arg3[%c0_12, %c0_13] : memref<1x128xf32, #tpu.memory_space<vmem>>, vector<1x128xf32>
    %36 = vector.broadcast %35 : vector<1x128xf32> to vector<16x128xf32>
    %37 = arith.addf %34, %36 : vector<16x128xf32>
    %38 = arith.negf %37 : vector<16x128xf32>
    %39 = math.exp %38 : vector<16x128xf32>
    %cst_14 = arith.constant 1.000000e+00 : f32
    %40 = vector.broadcast %cst_14 : f32 to vector<16x128xf32>
    %41 = arith.addf %40, %39 : vector<16x128xf32>
    %42 = arith.divf %40, %41 : vector<16x128xf32>
    %43 = arith.mulf %37, %42 : vector<16x128xf32>
    %c2_i32_15 = arith.constant 2 : i32
    %44 = arith.addi %0, %c2_i32_15 : i32
    %45 = arith.index_cast %44 : i32 to index
    %c0_16 = arith.constant 0 : index
    %c0_17 = arith.constant 0 : index
    %46 = vector.load %arg1[%45, %c0_16, %c0_17] : memref<6x16x64xf32, #tpu.memory_space<vmem>>, vector<1x16x64xf32>
    %47 = vector.shape_cast %46 : vector<1x16x64xf32> to vector<16x64xf32>
    %48 = vector.extract_strided_slice %47 {offsets = [0, 0], sizes = [15, 64], strides = [1, 1]} : vector<16x64xf32> to vector<15x64xf32>
    %49 = tpu.concatenate %1, %48 in 0 : vector<1x64xf32>, vector<15x64xf32> -> vector<16x64xf32>
    %50 = vector.extract_strided_slice %47 {offsets = [1, 0], sizes = [15, 64], strides = [1, 1]} : vector<16x64xf32> to vector<15x64xf32>
    %51 = tpu.concatenate %50, %1 in 0 : vector<15x64xf32>, vector<1x64xf32> -> vector<16x64xf32>
    %52 = tpu.concatenate %49, %47, %51 in 1 : vector<16x64xf32>, vector<16x64xf32>, vector<16x64xf32> -> vector<16x192xf32>
    %53 = arith.truncf %52 : vector<16x192xf32> to vector<16x192xbf16>
    %c0_18 = arith.constant 0 : index
    %c0_19 = arith.constant 0 : index
    %54 = vector.load %arg2[%c0_18, %c0_19] : memref<192x128xbf16, #tpu.memory_space<vmem>>, vector<192x128xbf16>
    %cst_20 = arith.constant dense<0.000000e+00> : vector<16x128xf32>
    %55 = tpu.matmul %53, %54, %cst_20 {dimension_numbers = #tpu.dot_dimension_numbers<[1], [0], [0], [1], [0, 0, 1, 1], [], []>} : vector<16x192xbf16>, vector<192x128xbf16>, vector<16x128xf32> -> vector<16x128xf32>
    %c0_21 = arith.constant 0 : index
    %c0_22 = arith.constant 0 : index
    %56 = vector.load %arg3[%c0_21, %c0_22] : memref<1x128xf32, #tpu.memory_space<vmem>>, vector<1x128xf32>
    %57 = vector.broadcast %56 : vector<1x128xf32> to vector<16x128xf32>
    %58 = arith.addf %55, %57 : vector<16x128xf32>
    %59 = arith.negf %58 : vector<16x128xf32>
    %60 = math.exp %59 : vector<16x128xf32>
    %cst_23 = arith.constant 1.000000e+00 : f32
    %61 = vector.broadcast %cst_23 : f32 to vector<16x128xf32>
    %62 = arith.addf %61, %60 : vector<16x128xf32>
    %63 = arith.divf %61, %62 : vector<16x128xf32>
    %64 = arith.mulf %58, %63 : vector<16x128xf32>
    %c3_i32 = arith.constant 3 : i32
    %65 = arith.addi %0, %c3_i32 : i32
    %66 = arith.index_cast %65 : i32 to index
    %c0_24 = arith.constant 0 : index
    %c0_25 = arith.constant 0 : index
    %67 = vector.load %arg1[%66, %c0_24, %c0_25] : memref<6x16x64xf32, #tpu.memory_space<vmem>>, vector<1x16x64xf32>
    %68 = vector.shape_cast %67 : vector<1x16x64xf32> to vector<16x64xf32>
    %69 = vector.extract_strided_slice %68 {offsets = [0, 0], sizes = [15, 64], strides = [1, 1]} : vector<16x64xf32> to vector<15x64xf32>
    %70 = tpu.concatenate %1, %69 in 0 : vector<1x64xf32>, vector<15x64xf32> -> vector<16x64xf32>
    %71 = vector.extract_strided_slice %68 {offsets = [1, 0], sizes = [15, 64], strides = [1, 1]} : vector<16x64xf32> to vector<15x64xf32>
    %72 = tpu.concatenate %71, %1 in 0 : vector<15x64xf32>, vector<1x64xf32> -> vector<16x64xf32>
    %73 = tpu.concatenate %70, %68, %72 in 1 : vector<16x64xf32>, vector<16x64xf32>, vector<16x64xf32> -> vector<16x192xf32>
    %74 = arith.truncf %73 : vector<16x192xf32> to vector<16x192xbf16>
    %c0_26 = arith.constant 0 : index
    %c0_27 = arith.constant 0 : index
    %75 = vector.load %arg2[%c0_26, %c0_27] : memref<192x128xbf16, #tpu.memory_space<vmem>>, vector<192x128xbf16>
    %cst_28 = arith.constant dense<0.000000e+00> : vector<16x128xf32>
    %76 = tpu.matmul %74, %75, %cst_28 {dimension_numbers = #tpu.dot_dimension_numbers<[1], [0], [0], [1], [0, 0, 1, 1], [], []>} : vector<16x192xbf16>, vector<192x128xbf16>, vector<16x128xf32> -> vector<16x128xf32>
    %c0_29 = arith.constant 0 : index
    %c0_30 = arith.constant 0 : index
    %77 = vector.load %arg3[%c0_29, %c0_30] : memref<1x128xf32, #tpu.memory_space<vmem>>, vector<1x128xf32>
    %78 = vector.broadcast %77 : vector<1x128xf32> to vector<16x128xf32>
    %79 = arith.addf %76, %78 : vector<16x128xf32>
    %80 = arith.negf %79 : vector<16x128xf32>
    %81 = math.exp %80 : vector<16x128xf32>
    %cst_31 = arith.constant 1.000000e+00 : f32
    %82 = vector.broadcast %cst_31 : f32 to vector<16x128xf32>
    %83 = arith.addf %82, %81 : vector<16x128xf32>
    %84 = arith.divf %82, %83 : vector<16x128xf32>
    %85 = arith.mulf %79, %84 : vector<16x128xf32>
    %86 = tpu.concatenate %22, %43, %64, %85 in 0 : vector<16x128xf32>, vector<16x128xf32>, vector<16x128xf32>, vector<16x128xf32> -> vector<64x128xf32>
    %87 = arith.truncf %86 : vector<64x128xf32> to vector<64x128xbf16>
    %c128 = arith.constant 128 : index
    %c0_32 = arith.constant 0 : index
    %88 = vector.load %arg4[%c128, %c0_32] : memref<416x64xbf16, #tpu.memory_space<vmem>>, vector<32x64xbf16>
    %cst_33 = arith.constant dense<0.000000e+00> : vector<32x128xf32>
    %89 = tpu.matmul %88, %87, %cst_33 {dimension_numbers = #tpu.dot_dimension_numbers<[1], [0], [0], [1], [0, 0, 1, 1], [], []>} : vector<32x64xbf16>, vector<64x128xbf16>, vector<32x128xf32> -> vector<32x128xf32>
    %c0_34 = arith.constant 0 : index
    %c0_35 = arith.constant 0 : index
    %90 = vector.load %arg4[%c0_34, %c0_35] : memref<416x64xbf16, #tpu.memory_space<vmem>>, vector<128x64xbf16>
    %91 = arith.truncf %89 : vector<32x128xf32> to vector<32x128xbf16>
    %cst_36 = arith.constant dense<0.000000e+00> : vector<32x64xf32>
    %92 = tpu.matmul %91, %90, %cst_36 {dimension_numbers = #tpu.dot_dimension_numbers<[1], [0], [0], [1], [0, 0, 1, 1], [], []>} : vector<32x128xbf16>, vector<128x64xbf16>, vector<32x64xf32> -> vector<32x64xf32>
    %cst_37 = arith.constant 0.111111112 : f32
    %93 = vector.broadcast %cst_37 : f32 to vector<32x64xf32>
    %94 = arith.mulf %92, %93 : vector<32x64xf32>
    %cst_38 = arith.constant 0.000000e+00 : f32
    %95 = vector.broadcast %cst_38 : f32 to vector<1x64xf32>
    %96 = vector.extract_strided_slice %94 {offsets = [0, 0], sizes = [8, 64], strides = [1, 1]} : vector<32x64xf32> to vector<8x64xf32>
    %97 = tpu.concatenate %95, %96, %95 in 0 : vector<1x64xf32>, vector<8x64xf32>, vector<1x64xf32> -> vector<10x64xf32>
    %98 = vector.extract_strided_slice %94 {offsets = [8, 0], sizes = [8, 64], strides = [1, 1]} : vector<32x64xf32> to vector<8x64xf32>
    %99 = tpu.concatenate %95, %98, %95 in 0 : vector<1x64xf32>, vector<8x64xf32>, vector<1x64xf32> -> vector<10x64xf32>
    %100 = vector.extract_strided_slice %94 {offsets = [16, 0], sizes = [8, 64], strides = [1, 1]} : vector<32x64xf32> to vector<8x64xf32>
    %101 = tpu.concatenate %95, %100, %95 in 0 : vector<1x64xf32>, vector<8x64xf32>, vector<1x64xf32> -> vector<10x64xf32>
    %102 = vector.extract_strided_slice %94 {offsets = [24, 0], sizes = [8, 64], strides = [1, 1]} : vector<32x64xf32> to vector<8x64xf32>
    %103 = tpu.concatenate %95, %102, %95 in 0 : vector<1x64xf32>, vector<8x64xf32>, vector<1x64xf32> -> vector<10x64xf32>
    %104 = vector.shape_cast %97 : vector<10x64xf32> to vector<1x10x64xf32>
    %105 = vector.shape_cast %99 : vector<10x64xf32> to vector<1x10x64xf32>
    %106 = vector.shape_cast %101 : vector<10x64xf32> to vector<1x10x64xf32>
    %107 = vector.shape_cast %103 : vector<10x64xf32> to vector<1x10x64xf32>
    %108 = tpu.concatenate %104, %105, %106, %107 in 0 : vector<1x10x64xf32>, vector<1x10x64xf32>, vector<1x10x64xf32>, vector<1x10x64xf32> -> vector<4x10x64xf32>
    %cst_39 = arith.constant 0.000000e+00 : f32
    %109 = vector.broadcast %cst_39 : f32 to vector<1x10x64xf32>
    %c0_i32_40 = arith.constant 0 : i32
    %110 = arith.cmpi eq, %arg0, %c0_i32_40 : i32
    %111 = tpu.concatenate %109, %108 in 0 : vector<1x10x64xf32>, vector<4x10x64xf32> -> vector<5x10x64xf32>
    %112 = tpu.concatenate %108, %109 in 0 : vector<4x10x64xf32>, vector<1x10x64xf32> -> vector<5x10x64xf32>
    %113 = arith.select %110, %111, %112 : vector<5x10x64xf32>
    %114 = vector.extract_strided_slice %113 {offsets = [1, 1, 0], sizes = [1, 8, 64], strides = [1, 1, 1]} : vector<5x10x64xf32> to vector<1x8x64xf32>
    %115 = vector.shape_cast %114 : vector<1x8x64xf32> to vector<8x64xf32>
    %cst_41 = arith.constant 0.000000e+00 : f32
    %116 = vector.broadcast %cst_41 : f32 to vector<8x64xf32>
    %cst_42 = arith.constant 0.000000e+00 : f32
    %117 = vector.broadcast %cst_42 : f32 to vector<8x64xf32>
    %118 = vector.extract_strided_slice %113 {offsets = [0, 1, 0], sizes = [1, 8, 64], strides = [1, 1, 1]} : vector<5x10x64xf32> to vector<1x8x64xf32>
    %119 = vector.shape_cast %118 : vector<1x8x64xf32> to vector<8x64xf32>
    %cst_43 = arith.constant 0.000000e+00 : f32
    %120 = vector.broadcast %cst_43 : f32 to vector<8x8xf32>
    %121 = vector.extract_strided_slice %119 {offsets = [0, 0], sizes = [8, 56], strides = [1, 1]} : vector<8x64xf32> to vector<8x56xf32>
    %122 = tpu.concatenate %120, %121 in 1 : vector<8x8xf32>, vector<8x56xf32> -> vector<8x64xf32>
    %c0_44 = arith.constant 0 : index
    %c0_45 = arith.constant 0 : index
    %123 = vector.load %arg5[%c0_44, %c0_45] : memref<24x64xf32, #tpu.memory_space<vmem>>, vector<1x64xf32>
    %124 = vector.broadcast %123 : vector<1x64xf32> to vector<8x64xf32>
    %125 = arith.mulf %122, %124 : vector<8x64xf32>
    %126 = arith.addf %116, %125 : vector<8x64xf32>
    %c1 = arith.constant 1 : index
    %c0_46 = arith.constant 0 : index
    %127 = vector.load %arg5[%c1, %c0_46] : memref<24x64xf32, #tpu.memory_space<vmem>>, vector<1x64xf32>
    %128 = vector.broadcast %127 : vector<1x64xf32> to vector<8x64xf32>
    %129 = arith.mulf %119, %128 : vector<8x64xf32>
    %130 = arith.addf %126, %129 : vector<8x64xf32>
    %131 = vector.extract_strided_slice %119 {offsets = [0, 8], sizes = [8, 56], strides = [1, 1]} : vector<8x64xf32> to vector<8x56xf32>
    %cst_47 = arith.constant 0.000000e+00 : f32
    %132 = vector.broadcast %cst_47 : f32 to vector<8x8xf32>
    %133 = tpu.concatenate %131, %132 in 1 : vector<8x56xf32>, vector<8x8xf32> -> vector<8x64xf32>
    %c2 = arith.constant 2 : index
    %c0_48 = arith.constant 0 : index
    %134 = vector.load %arg5[%c2, %c0_48] : memref<24x64xf32, #tpu.memory_space<vmem>>, vector<1x64xf32>
    %135 = vector.broadcast %134 : vector<1x64xf32> to vector<8x64xf32>
    %136 = arith.mulf %133, %135 : vector<8x64xf32>
    %137 = arith.addf %130, %136 : vector<8x64xf32>
    %138 = vector.extract_strided_slice %113 {offsets = [0, 0, 0], sizes = [1, 8, 64], strides = [1, 1, 1]} : vector<5x10x64xf32> to vector<1x8x64xf32>
    %139 = vector.shape_cast %138 : vector<1x8x64xf32> to vector<8x64xf32>
    %c9 = arith.constant 9 : index
    %c0_49 = arith.constant 0 : index
    %140 = vector.load %arg5[%c9, %c0_49] : memref<24x64xf32, #tpu.memory_space<vmem>>, vector<1x64xf32>
    %141 = vector.broadcast %140 : vector<1x64xf32> to vector<8x64xf32>
    %142 = arith.mulf %139, %141 : vector<8x64xf32>
    %143 = arith.addf %117, %142 : vector<8x64xf32>
    %144 = vector.extract_strided_slice %113 {offsets = [0, 1, 0], sizes = [1, 8, 64], strides = [1, 1, 1]} : vector<5x10x64xf32> to vector<1x8x64xf32>
    %145 = vector.shape_cast %144 : vector<1x8x64xf32> to vector<8x64xf32>
    %c12 = arith.constant 12 : index
    %c0_50 = arith.constant 0 : index
    %146 = vector.load %arg5[%c12, %c0_50] : memref<24x64xf32, #tpu.memory_space<vmem>>, vector<1x64xf32>
    %147 = vector.broadcast %146 : vector<1x64xf32> to vector<8x64xf32>
    %148 = arith.mulf %145, %147 : vector<8x64xf32>
    %149 = arith.addf %143, %148 : vector<8x64xf32>
    %150 = vector.extract_strided_slice %113 {offsets = [0, 2, 0], sizes = [1, 8, 64], strides = [1, 1, 1]} : vector<5x10x64xf32> to vector<1x8x64xf32>
    %151 = vector.shape_cast %150 : vector<1x8x64xf32> to vector<8x64xf32>
    %c15 = arith.constant 15 : index
    %c0_51 = arith.constant 0 : index
    %152 = vector.load %arg5[%c15, %c0_51] : memref<24x64xf32, #tpu.memory_space<vmem>>, vector<1x64xf32>
    %153 = vector.broadcast %152 : vector<1x64xf32> to vector<8x64xf32>
    %154 = arith.mulf %151, %153 : vector<8x64xf32>
    %155 = arith.addf %149, %154 : vector<8x64xf32>
    %156 = vector.extract_strided_slice %113 {offsets = [1, 1, 0], sizes = [1, 8, 64], strides = [1, 1, 1]} : vector<5x10x64xf32> to vector<1x8x64xf32>
    %157 = vector.shape_cast %156 : vector<1x8x64xf32> to vector<8x64xf32>
    %cst_52 = arith.constant 0.000000e+00 : f32
    %158 = vector.broadcast %cst_52 : f32 to vector<8x8xf32>
    %159 = vector.extract_strided_slice %157 {offsets = [0, 0], sizes = [8, 56], strides = [1, 1]} : vector<8x64xf32> to vector<8x56xf32>
    %160 = tpu.concatenate %158, %159 in 1 : vector<8x8xf32>, vector<8x56xf32> -> vector<8x64xf32>
    %c3 = arith.constant 3 : index
    %c0_53 = arith.constant 0 : index
    %161 = vector.load %arg5[%c3, %c0_53] : memref<24x64xf32, #tpu.memory_space<vmem>>, vector<1x64xf32>
    %162 = vector.broadcast %161 : vector<1x64xf32> to vector<8x64xf32>
    %163 = arith.mulf %160, %162 : vector<8x64xf32>
    %164 = arith.addf %137, %163 : vector<8x64xf32>
    %c4 = arith.constant 4 : index
    %c0_54 = arith.constant 0 : index
    %165 = vector.load %arg5[%c4, %c0_54] : memref<24x64xf32, #tpu.memory_space<vmem>>, vector<1x64xf32>
    %166 = vector.broadcast %165 : vector<1x64xf32> to vector<8x64xf32>
    %167 = arith.mulf %157, %166 : vector<8x64xf32>
    %168 = arith.addf %164, %167 : vector<8x64xf32>
    %169 = vector.extract_strided_slice %157 {offsets = [0, 8], sizes = [8, 56], strides = [1, 1]} : vector<8x64xf32> to vector<8x56xf32>
    %cst_55 = arith.constant 0.000000e+00 : f32
    %170 = vector.broadcast %cst_55 : f32 to vector<8x8xf32>
    %171 = tpu.concatenate %169, %170 in 1 : vector<8x56xf32>, vector<8x8xf32> -> vector<8x64xf32>
    %c5 = arith.constant 5 : index
    %c0_56 = arith.constant 0 : index
    %172 = vector.load %arg5[%c5, %c0_56] : memref<24x64xf32, #tpu.memory_space<vmem>>, vector<1x64xf32>
    %173 = vector.broadcast %172 : vector<1x64xf32> to vector<8x64xf32>
    %174 = arith.mulf %171, %173 : vector<8x64xf32>
    %175 = arith.addf %168, %174 : vector<8x64xf32>
    %176 = vector.extract_strided_slice %113 {offsets = [1, 0, 0], sizes = [1, 8, 64], strides = [1, 1, 1]} : vector<5x10x64xf32> to vector<1x8x64xf32>
    %177 = vector.shape_cast %176 : vector<1x8x64xf32> to vector<8x64xf32>
    %c10 = arith.constant 10 : index
    %c0_57 = arith.constant 0 : index
    %178 = vector.load %arg5[%c10, %c0_57] : memref<24x64xf32, #tpu.memory_space<vmem>>, vector<1x64xf32>
    %179 = vector.broadcast %178 : vector<1x64xf32> to vector<8x64xf32>
    %180 = arith.mulf %177, %179 : vector<8x64xf32>
    %181 = arith.addf %155, %180 : vector<8x64xf32>
    %182 = vector.extract_strided_slice %113 {offsets = [1, 1, 0], sizes = [1, 8, 64], strides = [1, 1, 1]} : vector<5x10x64xf32> to vector<1x8x64xf32>
    %183 = vector.shape_cast %182 : vector<1x8x64xf32> to vector<8x64xf32>
    %c13 = arith.constant 13 : index
    %c0_58 = arith.constant 0 : index
    %184 = vector.load %arg5[%c13, %c0_58] : memref<24x64xf32, #tpu.memory_space<vmem>>, vector<1x64xf32>
    %185 = vector.broadcast %184 : vector<1x64xf32> to vector<8x64xf32>
    %186 = arith.mulf %183, %185 : vector<8x64xf32>
    %187 = arith.addf %181, %186 : vector<8x64xf32>
    %188 = vector.extract_strided_slice %113 {offsets = [1, 2, 0], sizes = [1, 8, 64], strides = [1, 1, 1]} : vector<5x10x64xf32> to vector<1x8x64xf32>
    %189 = vector.shape_cast %188 : vector<1x8x64xf32> to vector<8x64xf32>
    %c16 = arith.constant 16 : index
    %c0_59 = arith.constant 0 : index
    %190 = vector.load %arg5[%c16, %c0_59] : memref<24x64xf32, #tpu.memory_space<vmem>>, vector<1x64xf32>
    %191 = vector.broadcast %190 : vector<1x64xf32> to vector<8x64xf32>
    %192 = arith.mulf %189, %191 : vector<8x64xf32>
    %193 = arith.addf %187, %192 : vector<8x64xf32>
    %194 = vector.extract_strided_slice %113 {offsets = [2, 1, 0], sizes = [1, 8, 64], strides = [1, 1, 1]} : vector<5x10x64xf32> to vector<1x8x64xf32>
    %195 = vector.shape_cast %194 : vector<1x8x64xf32> to vector<8x64xf32>
    %cst_60 = arith.constant 0.000000e+00 : f32
    %196 = vector.broadcast %cst_60 : f32 to vector<8x8xf32>
    %197 = vector.extract_strided_slice %195 {offsets = [0, 0], sizes = [8, 56], strides = [1, 1]} : vector<8x64xf32> to vector<8x56xf32>
    %198 = tpu.concatenate %196, %197 in 1 : vector<8x8xf32>, vector<8x56xf32> -> vector<8x64xf32>
    %c6 = arith.constant 6 : index
    %c0_61 = arith.constant 0 : index
    %199 = vector.load %arg5[%c6, %c0_61] : memref<24x64xf32, #tpu.memory_space<vmem>>, vector<1x64xf32>
    %200 = vector.broadcast %199 : vector<1x64xf32> to vector<8x64xf32>
    %201 = arith.mulf %198, %200 : vector<8x64xf32>
    %202 = arith.addf %175, %201 : vector<8x64xf32>
    %c7 = arith.constant 7 : index
    %c0_62 = arith.constant 0 : index
    %203 = vector.load %arg5[%c7, %c0_62] : memref<24x64xf32, #tpu.memory_space<vmem>>, vector<1x64xf32>
    %204 = vector.broadcast %203 : vector<1x64xf32> to vector<8x64xf32>
    %205 = arith.mulf %195, %204 : vector<8x64xf32>
    %206 = arith.addf %202, %205 : vector<8x64xf32>
    %207 = vector.extract_strided_slice %195 {offsets = [0, 8], sizes = [8, 56], strides = [1, 1]} : vector<8x64xf32> to vector<8x56xf32>
    %cst_63 = arith.constant 0.000000e+00 : f32
    %208 = vector.broadcast %cst_63 : f32 to vector<8x8xf32>
    %209 = tpu.concatenate %207, %208 in 1 : vector<8x56xf32>, vector<8x8xf32> -> vector<8x64xf32>
    %c8 = arith.constant 8 : index
    %c0_64 = arith.constant 0 : index
    %210 = vector.load %arg5[%c8, %c0_64] : memref<24x64xf32, #tpu.memory_space<vmem>>, vector<1x64xf32>
    %211 = vector.broadcast %210 : vector<1x64xf32> to vector<8x64xf32>
    %212 = arith.mulf %209, %211 : vector<8x64xf32>
    %213 = arith.addf %206, %212 : vector<8x64xf32>
    %214 = vector.extract_strided_slice %113 {offsets = [2, 0, 0], sizes = [1, 8, 64], strides = [1, 1, 1]} : vector<5x10x64xf32> to vector<1x8x64xf32>
    %215 = vector.shape_cast %214 : vector<1x8x64xf32> to vector<8x64xf32>
    %c11 = arith.constant 11 : index
    %c0_65 = arith.constant 0 : index
    %216 = vector.load %arg5[%c11, %c0_65] : memref<24x64xf32, #tpu.memory_space<vmem>>, vector<1x64xf32>
    %217 = vector.broadcast %216 : vector<1x64xf32> to vector<8x64xf32>
    %218 = arith.mulf %215, %217 : vector<8x64xf32>
    %219 = arith.addf %193, %218 : vector<8x64xf32>
    %220 = vector.extract_strided_slice %113 {offsets = [2, 1, 0], sizes = [1, 8, 64], strides = [1, 1, 1]} : vector<5x10x64xf32> to vector<1x8x64xf32>
    %221 = vector.shape_cast %220 : vector<1x8x64xf32> to vector<8x64xf32>
    %c14 = arith.constant 14 : index
    %c0_66 = arith.constant 0 : index
    %222 = vector.load %arg5[%c14, %c0_66] : memref<24x64xf32, #tpu.memory_space<vmem>>, vector<1x64xf32>
    %223 = vector.broadcast %222 : vector<1x64xf32> to vector<8x64xf32>
    %224 = arith.mulf %221, %223 : vector<8x64xf32>
    %225 = arith.addf %219, %224 : vector<8x64xf32>
    %226 = vector.extract_strided_slice %113 {offsets = [2, 2, 0], sizes = [1, 8, 64], strides = [1, 1, 1]} : vector<5x10x64xf32> to vector<1x8x64xf32>
    %227 = vector.shape_cast %226 : vector<1x8x64xf32> to vector<8x64xf32>
    %c17 = arith.constant 17 : index
    %c0_67 = arith.constant 0 : index
    %228 = vector.load %arg5[%c17, %c0_67] : memref<24x64xf32, #tpu.memory_space<vmem>>, vector<1x64xf32>
    %229 = vector.broadcast %228 : vector<1x64xf32> to vector<8x64xf32>
    %230 = arith.mulf %227, %229 : vector<8x64xf32>
    %231 = arith.addf %225, %230 : vector<8x64xf32>
    %c18 = arith.constant 18 : index
    %c0_68 = arith.constant 0 : index
    %232 = vector.load %arg5[%c18, %c0_68] : memref<24x64xf32, #tpu.memory_space<vmem>>, vector<1x64xf32>
    %233 = vector.broadcast %232 : vector<1x64xf32> to vector<8x64xf32>
    %234 = arith.addf %213, %233 : vector<8x64xf32>
    %235 = arith.negf %234 : vector<8x64xf32>
    %236 = math.exp %235 : vector<8x64xf32>
    %cst_69 = arith.constant 1.000000e+00 : f32
    %237 = vector.broadcast %cst_69 : f32 to vector<8x64xf32>
    %238 = arith.addf %237, %236 : vector<8x64xf32>
    %239 = arith.divf %237, %238 : vector<8x64xf32>
    %240 = arith.mulf %234, %239 : vector<8x64xf32>
    %c19 = arith.constant 19 : index
    %c0_70 = arith.constant 0 : index
    %241 = vector.load %arg5[%c19, %c0_70] : memref<24x64xf32, #tpu.memory_space<vmem>>, vector<1x64xf32>
    %242 = vector.broadcast %241 : vector<1x64xf32> to vector<8x64xf32>
    %243 = arith.addf %231, %242 : vector<8x64xf32>
    %244 = arith.negf %243 : vector<8x64xf32>
    %245 = math.exp %244 : vector<8x64xf32>
    %cst_71 = arith.constant 1.000000e+00 : f32
    %246 = vector.broadcast %cst_71 : f32 to vector<8x64xf32>
    %247 = arith.addf %246, %245 : vector<8x64xf32>
    %248 = arith.divf %246, %247 : vector<8x64xf32>
    %249 = arith.mulf %243, %248 : vector<8x64xf32>
    %cst_72 = arith.constant dense<0.000000e+00> : vector<64xf32>
    %250 = vector.multi_reduction <add>, %115, %cst_72 [0] : vector<8x64xf32> to vector<64xf32>
    %251 = vector.shape_cast %250 : vector<64xf32> to vector<1x64xf32>
    %cst_73 = arith.constant dense<0.000000e+00> : vector<64xf32>
    %252 = vector.multi_reduction <add>, %240, %cst_73 [0] : vector<8x64xf32> to vector<64xf32>
    %253 = vector.shape_cast %252 : vector<64xf32> to vector<1x64xf32>
    %cst_74 = arith.constant dense<0.000000e+00> : vector<64xf32>
    %254 = vector.multi_reduction <add>, %249, %cst_74 [0] : vector<8x64xf32> to vector<64xf32>
    %255 = vector.shape_cast %254 : vector<64xf32> to vector<1x64xf32>
    %256 = vector.extract_strided_slice %113 {offsets = [2, 1, 0], sizes = [1, 8, 64], strides = [1, 1, 1]} : vector<5x10x64xf32> to vector<1x8x64xf32>
    %257 = vector.shape_cast %256 : vector<1x8x64xf32> to vector<8x64xf32>
    %cst_75 = arith.constant 0.000000e+00 : f32
    %258 = vector.broadcast %cst_75 : f32 to vector<8x64xf32>
    %cst_76 = arith.constant 0.000000e+00 : f32
    %259 = vector.broadcast %cst_76 : f32 to vector<8x64xf32>
    %260 = vector.extract_strided_slice %113 {offsets = [1, 1, 0], sizes = [1, 8, 64], strides = [1, 1, 1]} : vector<5x10x64xf32> to vector<1x8x64xf32>
    %261 = vector.shape_cast %260 : vector<1x8x64xf32> to vector<8x64xf32>
    %cst_77 = arith.constant 0.000000e+00 : f32
    %262 = vector.broadcast %cst_77 : f32 to vector<8x8xf32>
    %263 = vector.extract_strided_slice %261 {offsets = [0, 0], sizes = [8, 56], strides = [1, 1]} : vector<8x64xf32> to vector<8x56xf32>
    %264 = tpu.concatenate %262, %263 in 1 : vector<8x8xf32>, vector<8x56xf32> -> vector<8x64xf32>
    %c0_78 = arith.constant 0 : index
    %c0_79 = arith.constant 0 : index
    %265 = vector.load %arg5[%c0_78, %c0_79] : memref<24x64xf32, #tpu.memory_space<vmem>>, vector<1x64xf32>
    %266 = vector.broadcast %265 : vector<1x64xf32> to vector<8x64xf32>
    %267 = arith.mulf %264, %266 : vector<8x64xf32>
    %268 = arith.addf %258, %267 : vector<8x64xf32>
    %c1_80 = arith.constant 1 : index
    %c0_81 = arith.constant 0 : index
    %269 = vector.load %arg5[%c1_80, %c0_81] : memref<24x64xf32, #tpu.memory_space<vmem>>, vector<1x64xf32>
    %270 = vector.broadcast %269 : vector<1x64xf32> to vector<8x64xf32>
    %271 = arith.mulf %261, %270 : vector<8x64xf32>
    %272 = arith.addf %268, %271 : vector<8x64xf32>
    %273 = vector.extract_strided_slice %261 {offsets = [0, 8], sizes = [8, 56], strides = [1, 1]} : vector<8x64xf32> to vector<8x56xf32>
    %cst_82 = arith.constant 0.000000e+00 : f32
    %274 = vector.broadcast %cst_82 : f32 to vector<8x8xf32>
    %275 = tpu.concatenate %273, %274 in 1 : vector<8x56xf32>, vector<8x8xf32> -> vector<8x64xf32>
    %c2_83 = arith.constant 2 : index
    %c0_84 = arith.constant 0 : index
    %276 = vector.load %arg5[%c2_83, %c0_84] : memref<24x64xf32, #tpu.memory_space<vmem>>, vector<1x64xf32>
    %277 = vector.broadcast %276 : vector<1x64xf32> to vector<8x64xf32>
    %278 = arith.mulf %275, %277 : vector<8x64xf32>
    %279 = arith.addf %272, %278 : vector<8x64xf32>
    %280 = vector.extract_strided_slice %113 {offsets = [1, 0, 0], sizes = [1, 8, 64], strides = [1, 1, 1]} : vector<5x10x64xf32> to vector<1x8x64xf32>
    %281 = vector.shape_cast %280 : vector<1x8x64xf32> to vector<8x64xf32>
    %c9_85 = arith.constant 9 : index
    %c0_86 = arith.constant 0 : index
    %282 = vector.load %arg5[%c9_85, %c0_86] : memref<24x64xf32, #tpu.memory_space<vmem>>, vector<1x64xf32>
    %283 = vector.broadcast %282 : vector<1x64xf32> to vector<8x64xf32>
    %284 = arith.mulf %281, %283 : vector<8x64xf32>
    %285 = arith.addf %259, %284 : vector<8x64xf32>
    %286 = vector.extract_strided_slice %113 {offsets = [1, 1, 0], sizes = [1, 8, 64], strides = [1, 1, 1]} : vector<5x10x64xf32> to vector<1x8x64xf32>
    %287 = vector.shape_cast %286 : vector<1x8x64xf32> to vector<8x64xf32>
    %c12_87 = arith.constant 12 : index
    %c0_88 = arith.constant 0 : index
    %288 = vector.load %arg5[%c12_87, %c0_88] : memref<24x64xf32, #tpu.memory_space<vmem>>, vector<1x64xf32>
    %289 = vector.broadcast %288 : vector<1x64xf32> to vector<8x64xf32>
    %290 = arith.mulf %287, %289 : vector<8x64xf32>
    %291 = arith.addf %285, %290 : vector<8x64xf32>
    %292 = vector.extract_strided_slice %113 {offsets = [1, 2, 0], sizes = [1, 8, 64], strides = [1, 1, 1]} : vector<5x10x64xf32> to vector<1x8x64xf32>
    %293 = vector.shape_cast %292 : vector<1x8x64xf32> to vector<8x64xf32>
    %c15_89 = arith.constant 15 : index
    %c0_90 = arith.constant 0 : index
    %294 = vector.load %arg5[%c15_89, %c0_90] : memref<24x64xf32, #tpu.memory_space<vmem>>, vector<1x64xf32>
    %295 = vector.broadcast %294 : vector<1x64xf32> to vector<8x64xf32>
    %296 = arith.mulf %293, %295 : vector<8x64xf32>
    %297 = arith.addf %291, %296 : vector<8x64xf32>
    %298 = vector.extract_strided_slice %113 {offsets = [2, 1, 0], sizes = [1, 8, 64], strides = [1, 1, 1]} : vector<5x10x64xf32> to vector<1x8x64xf32>
    %299 = vector.shape_cast %298 : vector<1x8x64xf32> to vector<8x64xf32>
    %cst_91 = arith.constant 0.000000e+00 : f32
    %300 = vector.broadcast %cst_91 : f32 to vector<8x8xf32>
    %301 = vector.extract_strided_slice %299 {offsets = [0, 0], sizes = [8, 56], strides = [1, 1]} : vector<8x64xf32> to vector<8x56xf32>
    %302 = tpu.concatenate %300, %301 in 1 : vector<8x8xf32>, vector<8x56xf32> -> vector<8x64xf32>
    %c3_92 = arith.constant 3 : index
    %c0_93 = arith.constant 0 : index
    %303 = vector.load %arg5[%c3_92, %c0_93] : memref<24x64xf32, #tpu.memory_space<vmem>>, vector<1x64xf32>
    %304 = vector.broadcast %303 : vector<1x64xf32> to vector<8x64xf32>
    %305 = arith.mulf %302, %304 : vector<8x64xf32>
    %306 = arith.addf %279, %305 : vector<8x64xf32>
    %c4_94 = arith.constant 4 : index
    %c0_95 = arith.constant 0 : index
    %307 = vector.load %arg5[%c4_94, %c0_95] : memref<24x64xf32, #tpu.memory_space<vmem>>, vector<1x64xf32>
    %308 = vector.broadcast %307 : vector<1x64xf32> to vector<8x64xf32>
    %309 = arith.mulf %299, %308 : vector<8x64xf32>
    %310 = arith.addf %306, %309 : vector<8x64xf32>
    %311 = vector.extract_strided_slice %299 {offsets = [0, 8], sizes = [8, 56], strides = [1, 1]} : vector<8x64xf32> to vector<8x56xf32>
    %cst_96 = arith.constant 0.000000e+00 : f32
    %312 = vector.broadcast %cst_96 : f32 to vector<8x8xf32>
    %313 = tpu.concatenate %311, %312 in 1 : vector<8x56xf32>, vector<8x8xf32> -> vector<8x64xf32>
    %c5_97 = arith.constant 5 : index
    %c0_98 = arith.constant 0 : index
    %314 = vector.load %arg5[%c5_97, %c0_98] : memref<24x64xf32, #tpu.memory_space<vmem>>, vector<1x64xf32>
    %315 = vector.broadcast %314 : vector<1x64xf32> to vector<8x64xf32>
    %316 = arith.mulf %313, %315 : vector<8x64xf32>
    %317 = arith.addf %310, %316 : vector<8x64xf32>
    %318 = vector.extract_strided_slice %113 {offsets = [2, 0, 0], sizes = [1, 8, 64], strides = [1, 1, 1]} : vector<5x10x64xf32> to vector<1x8x64xf32>
    %319 = vector.shape_cast %318 : vector<1x8x64xf32> to vector<8x64xf32>
    %c10_99 = arith.constant 10 : index
    %c0_100 = arith.constant 0 : index
    %320 = vector.load %arg5[%c10_99, %c0_100] : memref<24x64xf32, #tpu.memory_space<vmem>>, vector<1x64xf32>
    %321 = vector.broadcast %320 : vector<1x64xf32> to vector<8x64xf32>
    %322 = arith.mulf %319, %321 : vector<8x64xf32>
    %323 = arith.addf %297, %322 : vector<8x64xf32>
    %324 = vector.extract_strided_slice %113 {offsets = [2, 1, 0], sizes = [1, 8, 64], strides = [1, 1, 1]} : vector<5x10x64xf32> to vector<1x8x64xf32>
    %325 = vector.shape_cast %324 : vector<1x8x64xf32> to vector<8x64xf32>
    %c13_101 = arith.constant 13 : index
    %c0_102 = arith.constant 0 : index
    %326 = vector.load %arg5[%c13_101, %c0_102] : memref<24x64xf32, #tpu.memory_space<vmem>>, vector<1x64xf32>
    %327 = vector.broadcast %326 : vector<1x64xf32> to vector<8x64xf32>
    %328 = arith.mulf %325, %327 : vector<8x64xf32>
    %329 = arith.addf %323, %328 : vector<8x64xf32>
    %330 = vector.extract_strided_slice %113 {offsets = [2, 2, 0], sizes = [1, 8, 64], strides = [1, 1, 1]} : vector<5x10x64xf32> to vector<1x8x64xf32>
    %331 = vector.shape_cast %330 : vector<1x8x64xf32> to vector<8x64xf32>
    %c16_103 = arith.constant 16 : index
    %c0_104 = arith.constant 0 : index
    %332 = vector.load %arg5[%c16_103, %c0_104] : memref<24x64xf32, #tpu.memory_space<vmem>>, vector<1x64xf32>
    %333 = vector.broadcast %332 : vector<1x64xf32> to vector<8x64xf32>
    %334 = arith.mulf %331, %333 : vector<8x64xf32>
    %335 = arith.addf %329, %334 : vector<8x64xf32>
    %336 = vector.extract_strided_slice %113 {offsets = [3, 1, 0], sizes = [1, 8, 64], strides = [1, 1, 1]} : vector<5x10x64xf32> to vector<1x8x64xf32>
    %337 = vector.shape_cast %336 : vector<1x8x64xf32> to vector<8x64xf32>
    %cst_105 = arith.constant 0.000000e+00 : f32
    %338 = vector.broadcast %cst_105 : f32 to vector<8x8xf32>
    %339 = vector.extract_strided_slice %337 {offsets = [0, 0], sizes = [8, 56], strides = [1, 1]} : vector<8x64xf32> to vector<8x56xf32>
    %340 = tpu.concatenate %338, %339 in 1 : vector<8x8xf32>, vector<8x56xf32> -> vector<8x64xf32>
    %c6_106 = arith.constant 6 : index
    %c0_107 = arith.constant 0 : index
    %341 = vector.load %arg5[%c6_106, %c0_107] : memref<24x64xf32, #tpu.memory_space<vmem>>, vector<1x64xf32>
    %342 = vector.broadcast %341 : vector<1x64xf32> to vector<8x64xf32>
    %343 = arith.mulf %340, %342 : vector<8x64xf32>
    %344 = arith.addf %317, %343 : vector<8x64xf32>
    %c7_108 = arith.constant 7 : index
    %c0_109 = arith.constant 0 : index
    %345 = vector.load %arg5[%c7_108, %c0_109] : memref<24x64xf32, #tpu.memory_space<vmem>>, vector<1x64xf32>
    %346 = vector.broadcast %345 : vector<1x64xf32> to vector<8x64xf32>
    %347 = arith.mulf %337, %346 : vector<8x64xf32>
    %348 = arith.addf %344, %347 : vector<8x64xf32>
    %349 = vector.extract_strided_slice %337 {offsets = [0, 8], sizes = [8, 56], strides = [1, 1]} : vector<8x64xf32> to vector<8x56xf32>
    %cst_110 = arith.constant 0.000000e+00 : f32
    %350 = vector.broadcast %cst_110 : f32 to vector<8x8xf32>
    %351 = tpu.concatenate %349, %350 in 1 : vector<8x56xf32>, vector<8x8xf32> -> vector<8x64xf32>
    %c8_111 = arith.constant 8 : index
    %c0_112 = arith.constant 0 : index
    %352 = vector.load %arg5[%c8_111, %c0_112] : memref<24x64xf32, #tpu.memory_space<vmem>>, vector<1x64xf32>
    %353 = vector.broadcast %352 : vector<1x64xf32> to vector<8x64xf32>
    %354 = arith.mulf %351, %353 : vector<8x64xf32>
    %355 = arith.addf %348, %354 : vector<8x64xf32>
    %356 = vector.extract_strided_slice %113 {offsets = [3, 0, 0], sizes = [1, 8, 64], strides = [1, 1, 1]} : vector<5x10x64xf32> to vector<1x8x64xf32>
    %357 = vector.shape_cast %356 : vector<1x8x64xf32> to vector<8x64xf32>
    %c11_113 = arith.constant 11 : index
    %c0_114 = arith.constant 0 : index
    %358 = vector.load %arg5[%c11_113, %c0_114] : memref<24x64xf32, #tpu.memory_space<vmem>>, vector<1x64xf32>
    %359 = vector.broadcast %358 : vector<1x64xf32> to vector<8x64xf32>
    %360 = arith.mulf %357, %359 : vector<8x64xf32>
    %361 = arith.addf %335, %360 : vector<8x64xf32>
    %362 = vector.extract_strided_slice %113 {offsets = [3, 1, 0], sizes = [1, 8, 64], strides = [1, 1, 1]} : vector<5x10x64xf32> to vector<1x8x64xf32>
    %363 = vector.shape_cast %362 : vector<1x8x64xf32> to vector<8x64xf32>
    %c14_115 = arith.constant 14 : index
    %c0_116 = arith.constant 0 : index
    %364 = vector.load %arg5[%c14_115, %c0_116] : memref<24x64xf32, #tpu.memory_space<vmem>>, vector<1x64xf32>
    %365 = vector.broadcast %364 : vector<1x64xf32> to vector<8x64xf32>
    %366 = arith.mulf %363, %365 : vector<8x64xf32>
    %367 = arith.addf %361, %366 : vector<8x64xf32>
    %368 = vector.extract_strided_slice %113 {offsets = [3, 2, 0], sizes = [1, 8, 64], strides = [1, 1, 1]} : vector<5x10x64xf32> to vector<1x8x64xf32>
    %369 = vector.shape_cast %368 : vector<1x8x64xf32> to vector<8x64xf32>
    %c17_117 = arith.constant 17 : index
    %c0_118 = arith.constant 0 : index
    %370 = vector.load %arg5[%c17_117, %c0_118] : memref<24x64xf32, #tpu.memory_space<vmem>>, vector<1x64xf32>
    %371 = vector.broadcast %370 : vector<1x64xf32> to vector<8x64xf32>
    %372 = arith.mulf %369, %371 : vector<8x64xf32>
    %373 = arith.addf %367, %372 : vector<8x64xf32>
    %c18_119 = arith.constant 18 : index
    %c0_120 = arith.constant 0 : index
    %374 = vector.load %arg5[%c18_119, %c0_120] : memref<24x64xf32, #tpu.memory_space<vmem>>, vector<1x64xf32>
    %375 = vector.broadcast %374 : vector<1x64xf32> to vector<8x64xf32>
    %376 = arith.addf %355, %375 : vector<8x64xf32>
    %377 = arith.negf %376 : vector<8x64xf32>
    %378 = math.exp %377 : vector<8x64xf32>
    %cst_121 = arith.constant 1.000000e+00 : f32
    %379 = vector.broadcast %cst_121 : f32 to vector<8x64xf32>
    %380 = arith.addf %379, %378 : vector<8x64xf32>
    %381 = arith.divf %379, %380 : vector<8x64xf32>
    %382 = arith.mulf %376, %381 : vector<8x64xf32>
    %c19_122 = arith.constant 19 : index
    %c0_123 = arith.constant 0 : index
    %383 = vector.load %arg5[%c19_122, %c0_123] : memref<24x64xf32, #tpu.memory_space<vmem>>, vector<1x64xf32>
    %384 = vector.broadcast %383 : vector<1x64xf32> to vector<8x64xf32>
    %385 = arith.addf %373, %384 : vector<8x64xf32>
    %386 = arith.negf %385 : vector<8x64xf32>
    %387 = math.exp %386 : vector<8x64xf32>
    %cst_124 = arith.constant 1.000000e+00 : f32
    %388 = vector.broadcast %cst_124 : f32 to vector<8x64xf32>
    %389 = arith.addf %388, %387 : vector<8x64xf32>
    %390 = arith.divf %388, %389 : vector<8x64xf32>
    %391 = arith.mulf %385, %390 : vector<8x64xf32>
    %cst_125 = arith.constant dense<0.000000e+00> : vector<64xf32>
    %392 = vector.multi_reduction <add>, %257, %cst_125 [0] : vector<8x64xf32> to vector<64xf32>
    %393 = vector.shape_cast %392 : vector<64xf32> to vector<1x64xf32>
    %cst_126 = arith.constant dense<0.000000e+00> : vector<64xf32>
    %394 = vector.multi_reduction <add>, %382, %cst_126 [0] : vector<8x64xf32> to vector<64xf32>
    %395 = vector.shape_cast %394 : vector<64xf32> to vector<1x64xf32>
    %cst_127 = arith.constant dense<0.000000e+00> : vector<64xf32>
    %396 = vector.multi_reduction <add>, %391, %cst_127 [0] : vector<8x64xf32> to vector<64xf32>
    %397 = vector.shape_cast %396 : vector<64xf32> to vector<1x64xf32>
    %398 = vector.extract_strided_slice %113 {offsets = [3, 1, 0], sizes = [1, 8, 64], strides = [1, 1, 1]} : vector<5x10x64xf32> to vector<1x8x64xf32>
    %399 = vector.shape_cast %398 : vector<1x8x64xf32> to vector<8x64xf32>
    %cst_128 = arith.constant 0.000000e+00 : f32
    %400 = vector.broadcast %cst_128 : f32 to vector<8x64xf32>
    %cst_129 = arith.constant 0.000000e+00 : f32
    %401 = vector.broadcast %cst_129 : f32 to vector<8x64xf32>
    %402 = vector.extract_strided_slice %113 {offsets = [2, 1, 0], sizes = [1, 8, 64], strides = [1, 1, 1]} : vector<5x10x64xf32> to vector<1x8x64xf32>
    %403 = vector.shape_cast %402 : vector<1x8x64xf32> to vector<8x64xf32>
    %cst_130 = arith.constant 0.000000e+00 : f32
    %404 = vector.broadcast %cst_130 : f32 to vector<8x8xf32>
    %405 = vector.extract_strided_slice %403 {offsets = [0, 0], sizes = [8, 56], strides = [1, 1]} : vector<8x64xf32> to vector<8x56xf32>
    %406 = tpu.concatenate %404, %405 in 1 : vector<8x8xf32>, vector<8x56xf32> -> vector<8x64xf32>
    %c0_131 = arith.constant 0 : index
    %c0_132 = arith.constant 0 : index
    %407 = vector.load %arg5[%c0_131, %c0_132] : memref<24x64xf32, #tpu.memory_space<vmem>>, vector<1x64xf32>
    %408 = vector.broadcast %407 : vector<1x64xf32> to vector<8x64xf32>
    %409 = arith.mulf %406, %408 : vector<8x64xf32>
    %410 = arith.addf %400, %409 : vector<8x64xf32>
    %c1_133 = arith.constant 1 : index
    %c0_134 = arith.constant 0 : index
    %411 = vector.load %arg5[%c1_133, %c0_134] : memref<24x64xf32, #tpu.memory_space<vmem>>, vector<1x64xf32>
    %412 = vector.broadcast %411 : vector<1x64xf32> to vector<8x64xf32>
    %413 = arith.mulf %403, %412 : vector<8x64xf32>
    %414 = arith.addf %410, %413 : vector<8x64xf32>
    %415 = vector.extract_strided_slice %403 {offsets = [0, 8], sizes = [8, 56], strides = [1, 1]} : vector<8x64xf32> to vector<8x56xf32>
    %cst_135 = arith.constant 0.000000e+00 : f32
    %416 = vector.broadcast %cst_135 : f32 to vector<8x8xf32>
    %417 = tpu.concatenate %415, %416 in 1 : vector<8x56xf32>, vector<8x8xf32> -> vector<8x64xf32>
    %c2_136 = arith.constant 2 : index
    %c0_137 = arith.constant 0 : index
    %418 = vector.load %arg5[%c2_136, %c0_137] : memref<24x64xf32, #tpu.memory_space<vmem>>, vector<1x64xf32>
    %419 = vector.broadcast %418 : vector<1x64xf32> to vector<8x64xf32>
    %420 = arith.mulf %417, %419 : vector<8x64xf32>
    %421 = arith.addf %414, %420 : vector<8x64xf32>
    %422 = vector.extract_strided_slice %113 {offsets = [2, 0, 0], sizes = [1, 8, 64], strides = [1, 1, 1]} : vector<5x10x64xf32> to vector<1x8x64xf32>
    %423 = vector.shape_cast %422 : vector<1x8x64xf32> to vector<8x64xf32>
    %c9_138 = arith.constant 9 : index
    %c0_139 = arith.constant 0 : index
    %424 = vector.load %arg5[%c9_138, %c0_139] : memref<24x64xf32, #tpu.memory_space<vmem>>, vector<1x64xf32>
    %425 = vector.broadcast %424 : vector<1x64xf32> to vector<8x64xf32>
    %426 = arith.mulf %423, %425 : vector<8x64xf32>
    %427 = arith.addf %401, %426 : vector<8x64xf32>
    %428 = vector.extract_strided_slice %113 {offsets = [2, 1, 0], sizes = [1, 8, 64], strides = [1, 1, 1]} : vector<5x10x64xf32> to vector<1x8x64xf32>
    %429 = vector.shape_cast %428 : vector<1x8x64xf32> to vector<8x64xf32>
    %c12_140 = arith.constant 12 : index
    %c0_141 = arith.constant 0 : index
    %430 = vector.load %arg5[%c12_140, %c0_141] : memref<24x64xf32, #tpu.memory_space<vmem>>, vector<1x64xf32>
    %431 = vector.broadcast %430 : vector<1x64xf32> to vector<8x64xf32>
    %432 = arith.mulf %429, %431 : vector<8x64xf32>
    %433 = arith.addf %427, %432 : vector<8x64xf32>
    %434 = vector.extract_strided_slice %113 {offsets = [2, 2, 0], sizes = [1, 8, 64], strides = [1, 1, 1]} : vector<5x10x64xf32> to vector<1x8x64xf32>
    %435 = vector.shape_cast %434 : vector<1x8x64xf32> to vector<8x64xf32>
    %c15_142 = arith.constant 15 : index
    %c0_143 = arith.constant 0 : index
    %436 = vector.load %arg5[%c15_142, %c0_143] : memref<24x64xf32, #tpu.memory_space<vmem>>, vector<1x64xf32>
    %437 = vector.broadcast %436 : vector<1x64xf32> to vector<8x64xf32>
    %438 = arith.mulf %435, %437 : vector<8x64xf32>
    %439 = arith.addf %433, %438 : vector<8x64xf32>
    %440 = vector.extract_strided_slice %113 {offsets = [3, 1, 0], sizes = [1, 8, 64], strides = [1, 1, 1]} : vector<5x10x64xf32> to vector<1x8x64xf32>
    %441 = vector.shape_cast %440 : vector<1x8x64xf32> to vector<8x64xf32>
    %cst_144 = arith.constant 0.000000e+00 : f32
    %442 = vector.broadcast %cst_144 : f32 to vector<8x8xf32>
    %443 = vector.extract_strided_slice %441 {offsets = [0, 0], sizes = [8, 56], strides = [1, 1]} : vector<8x64xf32> to vector<8x56xf32>
    %444 = tpu.concatenate %442, %443 in 1 : vector<8x8xf32>, vector<8x56xf32> -> vector<8x64xf32>
    %c3_145 = arith.constant 3 : index
    %c0_146 = arith.constant 0 : index
    %445 = vector.load %arg5[%c3_145, %c0_146] : memref<24x64xf32, #tpu.memory_space<vmem>>, vector<1x64xf32>
    %446 = vector.broadcast %445 : vector<1x64xf32> to vector<8x64xf32>
    %447 = arith.mulf %444, %446 : vector<8x64xf32>
    %448 = arith.addf %421, %447 : vector<8x64xf32>
    %c4_147 = arith.constant 4 : index
    %c0_148 = arith.constant 0 : index
    %449 = vector.load %arg5[%c4_147, %c0_148] : memref<24x64xf32, #tpu.memory_space<vmem>>, vector<1x64xf32>
    %450 = vector.broadcast %449 : vector<1x64xf32> to vector<8x64xf32>
    %451 = arith.mulf %441, %450 : vector<8x64xf32>
    %452 = arith.addf %448, %451 : vector<8x64xf32>
    %453 = vector.extract_strided_slice %441 {offsets = [0, 8], sizes = [8, 56], strides = [1, 1]} : vector<8x64xf32> to vector<8x56xf32>
    %cst_149 = arith.constant 0.000000e+00 : f32
    %454 = vector.broadcast %cst_149 : f32 to vector<8x8xf32>
    %455 = tpu.concatenate %453, %454 in 1 : vector<8x56xf32>, vector<8x8xf32> -> vector<8x64xf32>
    %c5_150 = arith.constant 5 : index
    %c0_151 = arith.constant 0 : index
    %456 = vector.load %arg5[%c5_150, %c0_151] : memref<24x64xf32, #tpu.memory_space<vmem>>, vector<1x64xf32>
    %457 = vector.broadcast %456 : vector<1x64xf32> to vector<8x64xf32>
    %458 = arith.mulf %455, %457 : vector<8x64xf32>
    %459 = arith.addf %452, %458 : vector<8x64xf32>
    %460 = vector.extract_strided_slice %113 {offsets = [3, 0, 0], sizes = [1, 8, 64], strides = [1, 1, 1]} : vector<5x10x64xf32> to vector<1x8x64xf32>
    %461 = vector.shape_cast %460 : vector<1x8x64xf32> to vector<8x64xf32>
    %c10_152 = arith.constant 10 : index
    %c0_153 = arith.constant 0 : index
    %462 = vector.load %arg5[%c10_152, %c0_153] : memref<24x64xf32, #tpu.memory_space<vmem>>, vector<1x64xf32>
    %463 = vector.broadcast %462 : vector<1x64xf32> to vector<8x64xf32>
    %464 = arith.mulf %461, %463 : vector<8x64xf32>
    %465 = arith.addf %439, %464 : vector<8x64xf32>
    %466 = vector.extract_strided_slice %113 {offsets = [3, 1, 0], sizes = [1, 8, 64], strides = [1, 1, 1]} : vector<5x10x64xf32> to vector<1x8x64xf32>
    %467 = vector.shape_cast %466 : vector<1x8x64xf32> to vector<8x64xf32>
    %c13_154 = arith.constant 13 : index
    %c0_155 = arith.constant 0 : index
    %468 = vector.load %arg5[%c13_154, %c0_155] : memref<24x64xf32, #tpu.memory_space<vmem>>, vector<1x64xf32>
    %469 = vector.broadcast %468 : vector<1x64xf32> to vector<8x64xf32>
    %470 = arith.mulf %467, %469 : vector<8x64xf32>
    %471 = arith.addf %465, %470 : vector<8x64xf32>
    %472 = vector.extract_strided_slice %113 {offsets = [3, 2, 0], sizes = [1, 8, 64], strides = [1, 1, 1]} : vector<5x10x64xf32> to vector<1x8x64xf32>
    %473 = vector.shape_cast %472 : vector<1x8x64xf32> to vector<8x64xf32>
    %c16_156 = arith.constant 16 : index
    %c0_157 = arith.constant 0 : index
    %474 = vector.load %arg5[%c16_156, %c0_157] : memref<24x64xf32, #tpu.memory_space<vmem>>, vector<1x64xf32>
    %475 = vector.broadcast %474 : vector<1x64xf32> to vector<8x64xf32>
    %476 = arith.mulf %473, %475 : vector<8x64xf32>
    %477 = arith.addf %471, %476 : vector<8x64xf32>
    %478 = vector.extract_strided_slice %113 {offsets = [4, 1, 0], sizes = [1, 8, 64], strides = [1, 1, 1]} : vector<5x10x64xf32> to vector<1x8x64xf32>
    %479 = vector.shape_cast %478 : vector<1x8x64xf32> to vector<8x64xf32>
    %cst_158 = arith.constant 0.000000e+00 : f32
    %480 = vector.broadcast %cst_158 : f32 to vector<8x8xf32>
    %481 = vector.extract_strided_slice %479 {offsets = [0, 0], sizes = [8, 56], strides = [1, 1]} : vector<8x64xf32> to vector<8x56xf32>
    %482 = tpu.concatenate %480, %481 in 1 : vector<8x8xf32>, vector<8x56xf32> -> vector<8x64xf32>
    %c6_159 = arith.constant 6 : index
    %c0_160 = arith.constant 0 : index
    %483 = vector.load %arg5[%c6_159, %c0_160] : memref<24x64xf32, #tpu.memory_space<vmem>>, vector<1x64xf32>
    %484 = vector.broadcast %483 : vector<1x64xf32> to vector<8x64xf32>
    %485 = arith.mulf %482, %484 : vector<8x64xf32>
    %486 = arith.addf %459, %485 : vector<8x64xf32>
    %c7_161 = arith.constant 7 : index
    %c0_162 = arith.constant 0 : index
    %487 = vector.load %arg5[%c7_161, %c0_162] : memref<24x64xf32, #tpu.memory_space<vmem>>, vector<1x64xf32>
    %488 = vector.broadcast %487 : vector<1x64xf32> to vector<8x64xf32>
    %489 = arith.mulf %479, %488 : vector<8x64xf32>
    %490 = arith.addf %486, %489 : vector<8x64xf32>
    %491 = vector.extract_strided_slice %479 {offsets = [0, 8], sizes = [8, 56], strides = [1, 1]} : vector<8x64xf32> to vector<8x56xf32>
    %cst_163 = arith.constant 0.000000e+00 : f32
    %492 = vector.broadcast %cst_163 : f32 to vector<8x8xf32>
    %493 = tpu.concatenate %491, %492 in 1 : vector<8x56xf32>, vector<8x8xf32> -> vector<8x64xf32>
    %c8_164 = arith.constant 8 : index
    %c0_165 = arith.constant 0 : index
    %494 = vector.load %arg5[%c8_164, %c0_165] : memref<24x64xf32, #tpu.memory_space<vmem>>, vector<1x64xf32>
    %495 = vector.broadcast %494 : vector<1x64xf32> to vector<8x64xf32>
    %496 = arith.mulf %493, %495 : vector<8x64xf32>
    %497 = arith.addf %490, %496 : vector<8x64xf32>
    %498 = vector.extract_strided_slice %113 {offsets = [4, 0, 0], sizes = [1, 8, 64], strides = [1, 1, 1]} : vector<5x10x64xf32> to vector<1x8x64xf32>
    %499 = vector.shape_cast %498 : vector<1x8x64xf32> to vector<8x64xf32>
    %c11_166 = arith.constant 11 : index
    %c0_167 = arith.constant 0 : index
    %500 = vector.load %arg5[%c11_166, %c0_167] : memref<24x64xf32, #tpu.memory_space<vmem>>, vector<1x64xf32>
    %501 = vector.broadcast %500 : vector<1x64xf32> to vector<8x64xf32>
    %502 = arith.mulf %499, %501 : vector<8x64xf32>
    %503 = arith.addf %477, %502 : vector<8x64xf32>
    %504 = vector.extract_strided_slice %113 {offsets = [4, 1, 0], sizes = [1, 8, 64], strides = [1, 1, 1]} : vector<5x10x64xf32> to vector<1x8x64xf32>
    %505 = vector.shape_cast %504 : vector<1x8x64xf32> to vector<8x64xf32>
    %c14_168 = arith.constant 14 : index
    %c0_169 = arith.constant 0 : index
    %506 = vector.load %arg5[%c14_168, %c0_169] : memref<24x64xf32, #tpu.memory_space<vmem>>, vector<1x64xf32>
    %507 = vector.broadcast %506 : vector<1x64xf32> to vector<8x64xf32>
    %508 = arith.mulf %505, %507 : vector<8x64xf32>
    %509 = arith.addf %503, %508 : vector<8x64xf32>
    %510 = vector.extract_strided_slice %113 {offsets = [4, 2, 0], sizes = [1, 8, 64], strides = [1, 1, 1]} : vector<5x10x64xf32> to vector<1x8x64xf32>
    %511 = vector.shape_cast %510 : vector<1x8x64xf32> to vector<8x64xf32>
    %c17_170 = arith.constant 17 : index
    %c0_171 = arith.constant 0 : index
    %512 = vector.load %arg5[%c17_170, %c0_171] : memref<24x64xf32, #tpu.memory_space<vmem>>, vector<1x64xf32>
    %513 = vector.broadcast %512 : vector<1x64xf32> to vector<8x64xf32>
    %514 = arith.mulf %511, %513 : vector<8x64xf32>
    %515 = arith.addf %509, %514 : vector<8x64xf32>
    %c18_172 = arith.constant 18 : index
    %c0_173 = arith.constant 0 : index
    %516 = vector.load %arg5[%c18_172, %c0_173] : memref<24x64xf32, #tpu.memory_space<vmem>>, vector<1x64xf32>
    %517 = vector.broadcast %516 : vector<1x64xf32> to vector<8x64xf32>
    %518 = arith.addf %497, %517 : vector<8x64xf32>
    %519 = arith.negf %518 : vector<8x64xf32>
    %520 = math.exp %519 : vector<8x64xf32>
    %cst_174 = arith.constant 1.000000e+00 : f32
    %521 = vector.broadcast %cst_174 : f32 to vector<8x64xf32>
    %522 = arith.addf %521, %520 : vector<8x64xf32>
    %523 = arith.divf %521, %522 : vector<8x64xf32>
    %524 = arith.mulf %518, %523 : vector<8x64xf32>
    %c19_175 = arith.constant 19 : index
    %c0_176 = arith.constant 0 : index
    %525 = vector.load %arg5[%c19_175, %c0_176] : memref<24x64xf32, #tpu.memory_space<vmem>>, vector<1x64xf32>
    %526 = vector.broadcast %525 : vector<1x64xf32> to vector<8x64xf32>
    %527 = arith.addf %515, %526 : vector<8x64xf32>
    %528 = arith.negf %527 : vector<8x64xf32>
    %529 = math.exp %528 : vector<8x64xf32>
    %cst_177 = arith.constant 1.000000e+00 : f32
    %530 = vector.broadcast %cst_177 : f32 to vector<8x64xf32>
    %531 = arith.addf %530, %529 : vector<8x64xf32>
    %532 = arith.divf %530, %531 : vector<8x64xf32>
    %533 = arith.mulf %527, %532 : vector<8x64xf32>
    %cst_178 = arith.constant dense<0.000000e+00> : vector<64xf32>
    %534 = vector.multi_reduction <add>, %399, %cst_178 [0] : vector<8x64xf32> to vector<64xf32>
    %535 = vector.shape_cast %534 : vector<64xf32> to vector<1x64xf32>
    %cst_179 = arith.constant dense<0.000000e+00> : vector<64xf32>
    %536 = vector.multi_reduction <add>, %524, %cst_179 [0] : vector<8x64xf32> to vector<64xf32>
    %537 = vector.shape_cast %536 : vector<64xf32> to vector<1x64xf32>
    %cst_180 = arith.constant dense<0.000000e+00> : vector<64xf32>
    %538 = vector.multi_reduction <add>, %533, %cst_180 [0] : vector<8x64xf32> to vector<64xf32>
    %539 = vector.shape_cast %538 : vector<64xf32> to vector<1x64xf32>
    %cst_181 = arith.constant 0.000000e+00 : f32
    %540 = vector.broadcast %cst_181 : f32 to vector<5x64xf32>
    %541 = tpu.concatenate %251, %393, %535, %540 in 0 : vector<1x64xf32>, vector<1x64xf32>, vector<1x64xf32>, vector<5x64xf32> -> vector<8x64xf32>
    %542 = arith.truncf %541 : vector<8x64xf32> to vector<8x64xbf16>
    %c160 = arith.constant 160 : index
    %c0_182 = arith.constant 0 : index
    %543 = vector.load %arg4[%c160, %c0_182] : memref<416x64xbf16, #tpu.memory_space<vmem>>, vector<64x64xbf16>
    %cst_183 = arith.constant dense<0.000000e+00> : vector<8x64xf32>
    %544 = tpu.matmul %542, %543, %cst_183 {dimension_numbers = #tpu.dot_dimension_numbers<[1], [0], [0], [1], [0, 0, 1, 1], [], []>} : vector<8x64xbf16>, vector<64x64xbf16>, vector<8x64xf32> -> vector<8x64xf32>
    %c20 = arith.constant 20 : index
    %c0_184 = arith.constant 0 : index
    %545 = vector.load %arg5[%c20, %c0_184] : memref<24x64xf32, #tpu.memory_space<vmem>>, vector<1x64xf32>
    %546 = vector.broadcast %545 : vector<1x64xf32> to vector<8x64xf32>
    %547 = arith.addf %544, %546 : vector<8x64xf32>
    %548 = arith.negf %547 : vector<8x64xf32>
    %549 = math.exp %548 : vector<8x64xf32>
    %cst_185 = arith.constant 1.000000e+00 : f32
    %550 = vector.broadcast %cst_185 : f32 to vector<8x64xf32>
    %551 = arith.addf %550, %549 : vector<8x64xf32>
    %552 = arith.divf %550, %551 : vector<8x64xf32>
    %553 = tpu.concatenate %253, %395, %537, %540 in 0 : vector<1x64xf32>, vector<1x64xf32>, vector<1x64xf32>, vector<5x64xf32> -> vector<8x64xf32>
    %554 = arith.truncf %553 : vector<8x64xf32> to vector<8x64xbf16>
    %c224 = arith.constant 224 : index
    %c0_186 = arith.constant 0 : index
    %555 = vector.load %arg4[%c224, %c0_186] : memref<416x64xbf16, #tpu.memory_space<vmem>>, vector<64x64xbf16>
    %cst_187 = arith.constant dense<0.000000e+00> : vector<8x64xf32>
    %556 = tpu.matmul %554, %555, %cst_187 {dimension_numbers = #tpu.dot_dimension_numbers<[1], [0], [0], [1], [0, 0, 1, 1], [], []>} : vector<8x64xbf16>, vector<64x64xbf16>, vector<8x64xf32> -> vector<8x64xf32>
    %c21 = arith.constant 21 : index
    %c0_188 = arith.constant 0 : index
    %557 = vector.load %arg5[%c21, %c0_188] : memref<24x64xf32, #tpu.memory_space<vmem>>, vector<1x64xf32>
    %558 = vector.broadcast %557 : vector<1x64xf32> to vector<8x64xf32>
    %559 = arith.addf %556, %558 : vector<8x64xf32>
    %560 = arith.negf %559 : vector<8x64xf32>
    %561 = math.exp %560 : vector<8x64xf32>
    %cst_189 = arith.constant 1.000000e+00 : f32
    %562 = vector.broadcast %cst_189 : f32 to vector<8x64xf32>
    %563 = arith.addf %562, %561 : vector<8x64xf32>
    %564 = arith.divf %562, %563 : vector<8x64xf32>
    %565 = tpu.concatenate %255, %397, %539, %540 in 0 : vector<1x64xf32>, vector<1x64xf32>, vector<1x64xf32>, vector<5x64xf32> -> vector<8x64xf32>
    %566 = arith.truncf %565 : vector<8x64xf32> to vector<8x64xbf16>
    %c288 = arith.constant 288 : index
    %c0_190 = arith.constant 0 : index
    %567 = vector.load %arg4[%c288, %c0_190] : memref<416x64xbf16, #tpu.memory_space<vmem>>, vector<64x64xbf16>
    %cst_191 = arith.constant dense<0.000000e+00> : vector<8x64xf32>
    %568 = tpu.matmul %566, %567, %cst_191 {dimension_numbers = #tpu.dot_dimension_numbers<[1], [0], [0], [1], [0, 0, 1, 1], [], []>} : vector<8x64xbf16>, vector<64x64xbf16>, vector<8x64xf32> -> vector<8x64xf32>
    %c22 = arith.constant 22 : index
    %c0_192 = arith.constant 0 : index
    %569 = vector.load %arg5[%c22, %c0_192] : memref<24x64xf32, #tpu.memory_space<vmem>>, vector<1x64xf32>
    %570 = vector.broadcast %569 : vector<1x64xf32> to vector<8x64xf32>
    %571 = arith.addf %568, %570 : vector<8x64xf32>
    %572 = arith.negf %571 : vector<8x64xf32>
    %573 = math.exp %572 : vector<8x64xf32>
    %cst_193 = arith.constant 1.000000e+00 : f32
    %574 = vector.broadcast %cst_193 : f32 to vector<8x64xf32>
    %575 = arith.addf %574, %573 : vector<8x64xf32>
    %576 = arith.divf %574, %575 : vector<8x64xf32>
    %577 = vector.extract_strided_slice %113 {offsets = [1, 1, 0], sizes = [1, 8, 64], strides = [1, 1, 1]} : vector<5x10x64xf32> to vector<1x8x64xf32>
    %578 = vector.shape_cast %577 : vector<1x8x64xf32> to vector<8x64xf32>
    %579 = vector.extract_strided_slice %564 {offsets = [0, 0], sizes = [1, 64], strides = [1, 1]} : vector<8x64xf32> to vector<1x64xf32>
    %580 = vector.broadcast %579 : vector<1x64xf32> to vector<8x64xf32>
    %581 = arith.mulf %240, %580 : vector<8x64xf32>
    %582 = vector.extract_strided_slice %576 {offsets = [0, 0], sizes = [1, 64], strides = [1, 1]} : vector<8x64xf32> to vector<1x64xf32>
    %583 = vector.broadcast %582 : vector<1x64xf32> to vector<8x64xf32>
    %584 = arith.mulf %249, %583 : vector<8x64xf32>
    %585 = arith.addf %581, %584 : vector<8x64xf32>
    %586 = vector.extract_strided_slice %552 {offsets = [0, 0], sizes = [1, 64], strides = [1, 1]} : vector<8x64xf32> to vector<1x64xf32>
    %587 = vector.broadcast %586 : vector<1x64xf32> to vector<8x64xf32>
    %588 = arith.mulf %578, %587 : vector<8x64xf32>
    %589 = arith.addf %585, %588 : vector<8x64xf32>
    %590 = vector.extract_strided_slice %113 {offsets = [2, 1, 0], sizes = [1, 8, 64], strides = [1, 1, 1]} : vector<5x10x64xf32> to vector<1x8x64xf32>
    %591 = vector.shape_cast %590 : vector<1x8x64xf32> to vector<8x64xf32>
    %592 = vector.extract_strided_slice %564 {offsets = [1, 0], sizes = [1, 64], strides = [1, 1]} : vector<8x64xf32> to vector<1x64xf32>
    %593 = vector.broadcast %592 : vector<1x64xf32> to vector<8x64xf32>
    %594 = arith.mulf %382, %593 : vector<8x64xf32>
    %595 = vector.extract_strided_slice %576 {offsets = [1, 0], sizes = [1, 64], strides = [1, 1]} : vector<8x64xf32> to vector<1x64xf32>
    %596 = vector.broadcast %595 : vector<1x64xf32> to vector<8x64xf32>
    %597 = arith.mulf %391, %596 : vector<8x64xf32>
    %598 = arith.addf %594, %597 : vector<8x64xf32>
    %599 = vector.extract_strided_slice %552 {offsets = [1, 0], sizes = [1, 64], strides = [1, 1]} : vector<8x64xf32> to vector<1x64xf32>
    %600 = vector.broadcast %599 : vector<1x64xf32> to vector<8x64xf32>
    %601 = arith.mulf %591, %600 : vector<8x64xf32>
    %602 = arith.addf %598, %601 : vector<8x64xf32>
    %603 = vector.extract_strided_slice %113 {offsets = [3, 1, 0], sizes = [1, 8, 64], strides = [1, 1, 1]} : vector<5x10x64xf32> to vector<1x8x64xf32>
    %604 = vector.shape_cast %603 : vector<1x8x64xf32> to vector<8x64xf32>
    %605 = vector.extract_strided_slice %564 {offsets = [2, 0], sizes = [1, 64], strides = [1, 1]} : vector<8x64xf32> to vector<1x64xf32>
    %606 = vector.broadcast %605 : vector<1x64xf32> to vector<8x64xf32>
    %607 = arith.mulf %524, %606 : vector<8x64xf32>
    %608 = vector.extract_strided_slice %576 {offsets = [2, 0], sizes = [1, 64], strides = [1, 1]} : vector<8x64xf32> to vector<1x64xf32>
    %609 = vector.broadcast %608 : vector<1x64xf32> to vector<8x64xf32>
    %610 = arith.mulf %533, %609 : vector<8x64xf32>
    %611 = arith.addf %607, %610 : vector<8x64xf32>
    %612 = vector.extract_strided_slice %552 {offsets = [2, 0], sizes = [1, 64], strides = [1, 1]} : vector<8x64xf32> to vector<1x64xf32>
    %613 = vector.broadcast %612 : vector<1x64xf32> to vector<8x64xf32>
    %614 = arith.mulf %604, %613 : vector<8x64xf32>
    %615 = arith.addf %611, %614 : vector<8x64xf32>
    %616 = tpu.concatenate %589, %602, %615 in 0 : vector<8x64xf32>, vector<8x64xf32>, vector<8x64xf32> -> vector<24x64xf32>
    %617 = arith.truncf %616 : vector<24x64xf32> to vector<24x64xbf16>
    %c352 = arith.constant 352 : index
    %c0_194 = arith.constant 0 : index
    %618 = vector.load %arg4[%c352, %c0_194] : memref<416x64xbf16, #tpu.memory_space<vmem>>, vector<64x64xbf16>
    %cst_195 = arith.constant dense<0.000000e+00> : vector<24x64xf32>
    %619 = tpu.matmul %617, %618, %cst_195 {dimension_numbers = #tpu.dot_dimension_numbers<[1], [0], [0], [1], [0, 0, 1, 1], [], []>} : vector<24x64xbf16>, vector<64x64xbf16>, vector<24x64xf32> -> vector<24x64xf32>
    %c23 = arith.constant 23 : index
    %c0_196 = arith.constant 0 : index
    %620 = vector.load %arg5[%c23, %c0_196] : memref<24x64xf32, #tpu.memory_space<vmem>>, vector<1x64xf32>
    %621 = vector.broadcast %620 : vector<1x64xf32> to vector<24x64xf32>
    %622 = arith.addf %619, %621 : vector<24x64xf32>
    %623 = arith.negf %622 : vector<24x64xf32>
    %624 = math.exp %623 : vector<24x64xf32>
    %cst_197 = arith.constant 1.000000e+00 : f32
    %625 = vector.broadcast %cst_197 : f32 to vector<24x64xf32>
    %626 = arith.addf %625, %624 : vector<24x64xf32>
    %627 = arith.divf %625, %626 : vector<24x64xf32>
    %628 = arith.mulf %622, %627 : vector<24x64xf32>
    %629 = vector.shape_cast %628 : vector<24x64xf32> to vector<3x8x64xf32>
    %c0_198 = arith.constant 0 : index
    %c0_199 = arith.constant 0 : index
    %c0_200 = arith.constant 0 : index
    %630 = vector.load %arg6[%c0_198, %c0_199, %c0_200] : memref<3x8x64xf32, #tpu.memory_space<vmem>>, vector<3x8x64xf32>
    tpu.vector_store %arg6[%c0_198, %c0_199, %c0_200], %629 {strides = array<i32>} : memref<3x8x64xf32, #tpu.memory_space<vmem>>, vector<3x8x64xf32>,
    return
  }
  func.func @transform_0(%arg0: i32) -> (i32, i32, i32) {
    %c0_i32 = arith.constant 0 : i32
    %c0_i32_0 = arith.constant 0 : i32
    %c0_i32_1 = arith.constant 0 : i32
    %c0_i32_2 = arith.constant 0 : i32
    return %c0_i32, %c0_i32_0, %c0_i32_1 : i32, i32, i32
  }
  func.func @transform_1(%arg0: i32) -> (i32, i32) {
    %c0_i32 = arith.constant 0 : i32
    %c0_i32_0 = arith.constant 0 : i32
    %c0_i32_1 = arith.constant 0 : i32
    return %c0_i32, %c0_i32_0 : i32, i32
  }
  func.func @transform_2(%arg0: i32) -> (i32, i32) {
    %c0_i32 = arith.constant 0 : i32
    %c0_i32_0 = arith.constant 0 : i32
    %c0_i32_1 = arith.constant 0 : i32
    return %c0_i32, %c0_i32_0 : i32, i32
  }
  func.func @transform_3(%arg0: i32) -> (i32, i32) {
    %c0_i32 = arith.constant 0 : i32
    %c0_i32_0 = arith.constant 0 : i32
    %c0_i32_1 = arith.constant 0 : i32
    return %c0_i32, %c0_i32_0 : i32, i32
  }
  func.func @transform_4(%arg0: i32) -> (i32, i32) {
    %c0_i32 = arith.constant 0 : i32
    %c0_i32_0 = arith.constant 0 : i32
    %c0_i32_1 = arith.constant 0 : i32
    return %c0_i32, %c0_i32_0 : i32, i32
  }
  func.func @transform_5(%arg0: i32) -> (i32, i32, i32) {
    %c0_i32 = arith.constant 0 : i32
    %c0_i32_0 = arith.constant 0 : i32
    %c0_i32_1 = arith.constant 0 : i32
    return %arg0, %c0_i32, %c0_i32_0 : i32, i32, i32
  }
}

</mosaic_0001>

<llo_original>
// kernel: cra_forward.1
$region0: #{cra_forward.1}
  #allocation0 [shape = 'u32[]', space=smem, size = 0x4, offset = 0x4, fixed_abs, tag = 'smem constant byte address 0x4 - core index']
  #allocation1 [shape = 'u32[144,128]{1,0:T(1,128)}', space=vmem, size = 0x12000, scoped, tag = 'internal scratch']
  %s0 = inlined_call_operand.vmem [shape: f32[6,16,64], index: 0, kind: input, shape index: {}]
  %s1 = inlined_call_operand.vmem [shape: bf16[192,128], index: 1, kind: input, shape index: {}]
  %s2 = inlined_call_operand.vmem [shape: f32[1,128], index: 2, kind: input, shape index: {}]
  %s3 = inlined_call_operand.vmem [shape: bf16[416,64], index: 3, kind: input, shape index: {}]
  %s4 = inlined_call_operand.vmem [shape: f32[24,64], index: 4, kind: input, shape index: {}]
  %s5 = inlined_call_operand.vmem [shape: f32[6,8,64], index: 5, kind: output, shape index: {}]
  %s6 = sld [smem:[#allocation0]]
  $region53: #{cra_forward.1} parent=0
    _
  %s8 = ssub.s32 1, %s6
  %s9 = scalar_select 0, %s8, %s6
  loop: start=0, step=1, limit=4
  $region2: #{cra_forward.1} parent=0 // loop_pre_header
    _
  $region3: #{cra_forward.1} parent=0 // loop_header
    %s11 = sphi 0, %s15
    %p12 = scmp.ge.s32.totalorder %s11, 4
    %s19 = sphi 0, %s19
    %s21 = sphi 0, %s19
    %s22 = sphi 0, %s21
    %s36 = sphi 0, %s22
    %s40 = sphi 0, %s40
    %s42 = sphi 0, %s40
    %s43 = sphi 0, %s42
    %s57 = sphi 0, %s43
    %s61 = sphi 0, %s61
    %s63 = sphi 0, %s61
    %s64 = sphi 0, %s63
    %s78 = sphi 0, %s64
    %s82 = sphi 0, %s82
    %s84 = sphi 0, %s82
    %s85 = sphi 0, %s84
    %s99 = sphi 0, %s85
    %s103 = sphi 0, %s103
    %s105 = sphi 0, %s103
    %s106 = sphi 0, %s105
    %s120 = sphi 0, %s106
    %s126 = sphi 0, %s128
    %s129 = sphi 0, %s126
    %s130 = sphi 0, %s129
    %s146 = sphi 0, %s130
  $region4: #{cra_forward.1} parent=0 // loop_header_branch
    %14 = sbr.rel (%p12) target = $region8
  $region5: #{cra_forward.1} parent=0 // loop_body
    %s16 = ssub.s32 %s11, 1
    %s17 = ssub.s32 %s11, 2
    %s18 = sadd.s32 %s11, 1
    %s20 = sadd.s32 %s19, 1
    %p23 = scmp.eq.s32.totalorder %s11, 1
    %p24 = scmp.ne.s32.totalorder %s19, %s21
    %p25 = scmp.eq.s32.totalorder %s11, 0
    %p26 = por %p24, %p25
    %p27 = scmp.ne.s32.totalorder %s19, %s21
    %p28 = scmp.eq.s32.totalorder %s16, 1
    %p29 = por %p27, %p28
    %p30 = scmp.ne.s32.totalorder %s21, %s22
    %p31 = scmp.eq.s32.totalorder %s16, 0
    %p32 = por %p30, %p31
    %p33 = scmp.ne.s32.totalorder %s21, %s22
    %p34 = scmp.eq.s32.totalorder %s17, 1
    %p35 = por %p33, %p34
    %p37 = scmp.ne.s32.totalorder %s22, %s36
    %p38 = scmp.eq.s32.totalorder %s17, 0
    %p39 = por %p37, %p38
    %s41 = sadd.s32 %s40, 1
    %p44 = scmp.eq.s32.totalorder %s11, 1
    %p45 = scmp.ne.s32.totalorder %s40, %s42
    %p46 = scmp.eq.s32.totalorder %s11, 0
    %p47 = por %p45, %p46
    %p48 = scmp.ne.s32.totalorder %s40, %s42
    %p49 = scmp.eq.s32.totalorder %s16, 1
    %p50 = por %p48, %p49
    %p51 = scmp.ne.s32.totalorder %s42, %s43
    %p52 = scmp.eq.s32.totalorder %s16, 0
    %p53 = por %p51, %p52
    %p54 = scmp.ne.s32.totalorder %s42, %s43
    %p55 = scmp.eq.s32.totalorder %s17, 1
    %p56 = por %p54, %p55
    %p58 = scmp.ne.s32.totalorder %s43, %s57
    %p59 = scmp.eq.s32.totalorder %s17, 0
    %p60 = por %p58, %p59
    %s62 = sadd.s32 %s61, 1
    %p65 = scmp.eq.s32.totalorder %s11, 1
    %p66 = scmp.ne.s32.totalorder %s61, %s63
    %p67 = scmp.eq.s32.totalorder %s11, 0
    %p68 = por %p66, %p67
    %p69 = scmp.ne.s32.totalorder %s61, %s63
    %p70 = scmp.eq.s32.totalorder %s16, 1
    %p71 = por %p69, %p70
    %p72 = scmp.ne.s32.totalorder %s63, %s64
    %p73 = scmp.eq.s32.totalorder %s16, 0
    %p74 = por %p72, %p73
    %p75 = scmp.ne.s32.totalorder %s63, %s64
    %p76 = scmp.eq.s32.totalorder %s17, 1
    %p77 = por %p75, %p76
    %p79 = scmp.ne.s32.totalorder %s64, %s78
    %p80 = scmp.eq.s32.totalorder %s17, 0
    %p81 = por %p79, %p80
    %s83 = sadd.s32 %s82, 1
    %p86 = scmp.eq.s32.totalorder %s11, 1
    %p87 = scmp.ne.s32.totalorder %s82, %s84
    %p88 = scmp.eq.s32.totalorder %s11, 0
    %p89 = por %p87, %p88
    %p90 = scmp.ne.s32.totalorder %s82, %s84
    %p91 = scmp.eq.s32.totalorder %s16, 1
    %p92 = por %p90, %p91
    %p93 = scmp.ne.s32.totalorder %s84, %s85
    %p94 = scmp.eq.s32.totalorder %s16, 0
    %p95 = por %p93, %p94
    %p96 = scmp.ne.s32.totalorder %s84, %s85
    %p97 = scmp.eq.s32.totalorder %s17, 1
    %p98 = por %p96, %p97
    %p100 = scmp.ne.s32.totalorder %s85, %s99
    %p101 = scmp.eq.s32.totalorder %s17, 0
    %p102 = por %p100, %p101
    %s104 = sadd.s32 %s103, 1
    %p107 = scmp.eq.s32.totalorder %s11, 1
    %p108 = scmp.ne.s32.totalorder %s103, %s105
    %p109 = scmp.eq.s32.totalorder %s11, 0
    %p110 = por %p108, %p109
    %p111 = scmp.ne.s32.totalorder %s103, %s105
    %p112 = scmp.eq.s32.totalorder %s16, 1
    %p113 = por %p111, %p112
    %p114 = scmp.ne.s32.totalorder %s105, %s106
    %p115 = scmp.eq.s32.totalorder %s16, 0
    %p116 = por %p114, %p115
    %p117 = scmp.ne.s32.totalorder %s105, %s106
    %p118 = scmp.eq.s32.totalorder %s17, 1
    %p119 = por %p117, %p118
    %p121 = scmp.ne.s32.totalorder %s106, %s120
    %p122 = scmp.eq.s32.totalorder %s17, 0
    %p123 = por %p121, %p122
    %s124 = ssub.s32 %s11, %s18
    %p125 = scmp.eq.s32.totalorder %s124, 0
    %s127 = sadd.s32 %s126, 1
    %s128 = scalar_select %p125, %s126, %s127
    %p131 = pneg %p125
    %p132 = scmp.eq.s32.totalorder %s11, 1
    %p133 = por %p131, %p132
    %p134 = scmp.ne.s32.totalorder %s126, %s129
    %p135 = scmp.eq.s32.totalorder %s11, 0
    %p136 = por %p134, %p135
    %p137 = scmp.ne.s32.totalorder %s126, %s129
    %p138 = scmp.eq.s32.totalorder %s16, 1
    %p139 = por %p137, %p138
    %p140 = scmp.ne.s32.totalorder %s129, %s130
    %p141 = scmp.eq.s32.totalorder %s16, 0
    %p142 = por %p140, %p141
    %p143 = scmp.ne.s32.totalorder %s129, %s130
    %p144 = scmp.eq.s32.totalorder %s17, 1
    %p145 = por %p143, %p144
    %p147 = scmp.ne.s32.totalorder %s130, %s146
    %p148 = scmp.eq.s32.totalorder %s17, 0
    %p149 = por %p147, %p148
    %p150 = scmp.le.s32.totalorder 1, %s11
    %p151 = scmp.lt.s32.totalorder %s11, 3
    %p152 = pnand %p150, %p151
    %p153 = pneg %p152
    // Predicated region
    $region9: #{cra_forward.1} parent=5 // pred_check
      _
    $region10: #{cra_forward.1} parent=5 // pred_check_branch
      %155 = sbr.rel (%p152) target = $region12
    $region11: #{cra_forward.1} parent=5 // pred_region
      %s156 = ssub.s32 %s11, 1
      // Predicated region
      $region13: #{cra_forward.1} parent=11 // pred_check
        %p157 = pneg %p32
      $region14: #{cra_forward.1} parent=11 // pred_check_branch
        %159 = sbr.rel (%p157) target = $region16
      $region15: #{cra_forward.1} parent=11 // pred_region
        _
      $region16: #{cra_forward.1} parent=11 // pred_fallthru
        _
      // Predicated region
      $region17: #{cra_forward.1} parent=11 // pred_check
        %p160 = pneg %p53
      $region18: #{cra_forward.1} parent=11 // pred_check_branch
        %162 = sbr.rel (%p160) target = $region20
      $region19: #{cra_forward.1} parent=11 // pred_region
        _
      $region20: #{cra_forward.1} parent=11 // pred_fallthru
        _
      // Predicated region
      $region21: #{cra_forward.1} parent=11 // pred_check
        %p163 = pneg %p74
      $region22: #{cra_forward.1} parent=11 // pred_check_branch
        %165 = sbr.rel (%p163) target = $region24
      $region23: #{cra_forward.1} parent=11 // pred_region
        _
      $region24: #{cra_forward.1} parent=11 // pred_fallthru
        _
      // Predicated region
      $region25: #{cra_forward.1} parent=11 // pred_check
        %p166 = pneg %p95
      $region26: #{cra_forward.1} parent=11 // pred_check_branch
        %168 = sbr.rel (%p166) target = $region28
      $region27: #{cra_forward.1} parent=11 // pred_region
        _
      $region28: #{cra_forward.1} parent=11 // pred_fallthru
        _
      // Predicated region
      $region29: #{cra_forward.1} parent=11 // pred_check
        %p169 = pneg %p116
      $region30: #{cra_forward.1} parent=11 // pred_check_branch
        %171 = sbr.rel (%p169) target = $region32
      $region31: #{cra_forward.1} parent=11 // pred_region
        _
      $region32: #{cra_forward.1} parent=11 // pred_fallthru
        _
    $region12: #{cra_forward.1} parent=5 // pred_fallthru
      _
    %p172 = scmp.lt.s32.totalorder %s11, 2
    // Predicated region
    $region33: #{cra_forward.1} parent=5 // pred_check
      %p173 = pneg %p172
    $region34: #{cra_forward.1} parent=5 // pred_check_branch
      %175 = sbr.rel (%p173) target = $region36
    $region35: #{cra_forward.1} parent=5 // pred_region
      _
    $region36: #{cra_forward.1} parent=5 // pred_fallthru
      _
    %p176 = scmp.le.s32.totalorder 1, %s11
    %p177 = scmp.lt.s32.totalorder %s11, 3
    %p178 = pnand %p176, %p177
    %p179 = pneg %p178
    // Predicated region
    $region37: #{cra_forward.1} parent=5 // pred_check
      _
    $region38: #{cra_forward.1} parent=5 // pred_check_branch
      %181 = sbr.rel (%p178) target = $region40
    $region39: #{cra_forward.1} parent=5 // pred_region
      %s182 = ssub.s32 %s11, 1
      %p183 = pneg %p32
      %p184 = pneg %p29
      %p185 = pneg %p53
      %p186 = pneg %p50
      %p187 = pneg %p74
      %p188 = pneg %p71
      %p189 = pneg %p95
      %p190 = pneg %p92
      %p191 = pneg %p116
      %p192 = pneg %p113
      %p193 = pneg %p142
      %p194 = pneg %p139
      %s195 = smul.u32 3, %s16
      %p196 = scmp.lt.s32.totalorder %s195, 5
      %s197 = scalar_select %p196, %s195, 5
      %s198 = smul.addr %s197, 8
      %s199 = scalar_lea.vmem %s5, %s198
      %s200 = smul.u32 3, %s16
      %p201 = scmp.lt.s32.totalorder %s200, 5
      %s202 = scalar_select %p201, %s200, 5
      %s203 = smul.addr %s202, 8
      %s204 = scalar_lea.vmem %s5, %s203
      %s205 = smul.u32 3, %s16
      %s207 = smul.u32 %s16, 2
      %s208 = smul.u32 %s207, 16
      %s209 = scalar_lea.vmem %s0, %s208
      %v210 = vld [vmem:[%s209] sm:$0xff]
      %v211 = vld [vmem:[%s209 + $0x8] sm:$0xff]
      %vm214 = vcmask 1040384
      %v215 = vrot.slane %v210, 7
      %v216 = vrot.slane %v211, 7
      %v217 = vsel %vm214, %v215, %v216
      %v220 = vsel %vm214, 0.0, %v215
      %vm221 = vcmask 1046528
      %v222 = vrot.slane %v210, 1
      %v223 = vrot.slane %v211, 1
      %v224 = vsel %vm221, %v222, %v223
      %v227 = vsel %vm221, %v223, 0.0
      %228 = vrot.lane.b32.xlu0 %v210, 64
      %v229 = vpop.permute.xlu0 %228
      %230 = vrot.lane.b32.xlu0 %v211, 64
      %v231 = vpop.permute.xlu0 %230
      %vm234 = vcmask 523264
      %v235 = vsel %vm234, %v220, %v229
      %v236 = vsel %vm234, %v217, %v231
      %v237 = vpack.c.bf16 %v236, %v235
      %v238 = vpack.c.bf16 %v227, %v224
      %v239 = vld [vmem:[%s1] sm:$0xf]
      %v240 = vld [vmem:[%s1 + $0x4] sm:$0xf]
      %v241 = vld [vmem:[%s1 + $0x8] sm:$0xf]
      %v242 = vld [vmem:[%s1 + $0xc] sm:$0xf]
      %v243 = vld [vmem:[%s1 + $0x10] sm:$0xf]
      %v244 = vld [vmem:[%s1 + $0x14] sm:$0xf]
      %v245 = vld [vmem:[%s1 + $0x18] sm:$0xf]
      %v246 = vld [vmem:[%s1 + $0x1c] sm:$0xf]
      %v247 = vld [vmem:[%s1 + $0x20] sm:$0xf]
      %v248 = vld [vmem:[%s1 + $0x24] sm:$0xf]
      %v249 = vld [vmem:[%s1 + $0x28] sm:$0xf]
      %v250 = vld [vmem:[%s1 + $0x2c] sm:$0xf]
      %v251 = vld [vmem:[%s1 + $0x30] sm:$0xf]
      %v252 = vld [vmem:[%s1 + $0x34] sm:$0xf]
      %v253 = vld [vmem:[%s1 + $0x38] sm:$0xf]
      %v254 = vld [vmem:[%s1 + $0x3c] sm:$0xf]
      %v255 = vld [vmem:[%s1 + $0x40] sm:$0xf]
      %v256 = vld [vmem:[%s1 + $0x44] sm:$0xf]
      %v257 = vld [vmem:[%s1 + $0x48] sm:$0xf]
      %v258 = vld [vmem:[%s1 + $0x4c] sm:$0xf]
      %v259 = vld [vmem:[%s1 + $0x50] sm:$0xf]
      %v260 = vld [vmem:[%s1 + $0x54] sm:$0xf]
      %v261 = vld [vmem:[%s1 + $0x58] sm:$0xf]
      %v262 = vld [vmem:[%s1 + $0x5c] sm:$0xf]
      %v263 = vld [vmem:[%s2] sm:$0x1]
      %v265 = vlaneseq
      %v266 = vshrl.u32 %v265, 7
      %v267 = vsub.s32 0, %v266
      %v268 = vrot.slane %v263, %v267
      %v294 = vunpack.c.l.b16 %v239
      %v295 = vunpack.c.l.b16 %v240
      %v296 = vunpack.c.l.b16 %v241
      %v297 = vunpack.c.l.b16 %v242
      %v298 = vunpack.c.l.b16 %v243
      %v299 = vunpack.c.l.b16 %v244
      %v300 = vunpack.c.l.b16 %v245
      %v301 = vunpack.c.l.b16 %v246
      %v302 = vunpack.c.l.b16 %v247
      %v303 = vunpack.c.l.b16 %v248
      %v304 = vunpack.c.l.b16 %v249
      %v305 = vunpack.c.l.b16 %v250
      %v306 = vunpack.c.l.b16 %v251
      %v307 = vunpack.c.l.b16 %v252
      %v308 = vunpack.c.l.b16 %v253
      %v309 = vunpack.c.l.b16 %v254
      %v310 = vunpack.c.l.b16 %v255
      %v311 = vunpack.c.l.b16 %v256
      %v312 = vunpack.c.l.b16 %v257
      %v313 = vunpack.c.l.b16 %v258
      %v314 = vunpack.c.l.b16 %v259
      %v315 = vunpack.c.l.b16 %v260
      %v316 = vunpack.c.l.b16 %v261
      %v317 = vunpack.c.l.b16 %v262
      %v318 = vpack.c.b16 %v295, %v294
      %v319 = vpack.c.b16 %v297, %v296
      %v320 = vpack.c.b16 %v299, %v298
      %v321 = vpack.c.b16 %v301, %v300
      %v322 = vpack.c.b16 %v303, %v302
      %v323 = vpack.c.b16 %v305, %v304
      %v324 = vpack.c.b16 %v307, %v306
      %v325 = vpack.c.b16 %v309, %v308
      %v326 = vpack.c.b16 %v311, %v310
      %v327 = vpack.c.b16 %v313, %v312
      %v328 = vpack.c.b16 %v315, %v314
      %v329 = vpack.c.b16 %v317, %v316
      %v343 = vsel %vm234, %v238, 0
      %345 = vmatprep.subr.bf16.mxu0 0
      %346 = vmatpush1.bf16.msra.mxu0 %v318
      %347 = vmatprep.subr.bf16.mxu0 0
      %348 = vmatpush1.bf16.msra.mxu0 %v319
      %349 = vmatprep.subr.bf16.mxu0 0
      %350 = vmatpush1.bf16.msra.mxu0 %v320
      %351 = vmatprep.subr.bf16.mxu0 0
      %352 = vmatpush1.bf16.msra.mxu0 %v321
      %353 = vmatprep.subr.bf16.mxu0 0
      %354 = vmatpush1.bf16.msra.mxu0 %v322
      %355 = vmatprep.subr.bf16.mxu0 0
      %356 = vmatpush1.bf16.msra.mxu0 %v323
      %357 = vmatprep.subr.bf16.mxu0 0
      %358 = vmatpush1.bf16.msra.mxu0 %v324
      %359 = vmatprep.subr.bf16.mxu0 0
      %360 = vmatpush1.bf16.msra.mxu0 %v325
      %361 = vmatprep.subr.bf16.mxu0 0
      %362 = vmatpush1.bf16.msra.mxu0 %v326
      %363 = vmatprep.subr.bf16.mxu0 0
      %364 = vmatpush1.bf16.msra.mxu0 %v327
      %365 = vmatprep.subr.bf16.mxu0 0
      %366 = vmatpush1.bf16.msra.mxu0 %v328
      %367 = vmatprep.subr.bf16.mxu0 0
      %368 = vmatpush1.bf16.msra.mxu0 %v329
      %369 = vmatprep.subr.bf16.mxu0 0
      %370 = vmatpush1.bf16.msra.mxu0 0
      %371 = vmatprep.subr.bf16.mxu0 0
      %372 = vmatpush1.bf16.msra.mxu0 0
      %373 = vmatprep.subr.bf16.mxu0 0
      %374 = vmatpush1.bf16.msra.mxu0 0
      %375 = vmatprep.subr.bf16.mxu0 0
      %376 = vmatpush1.bf16.msra.mxu0 0
      %377 = vmatprep.mubr.bf16.mxu0 %v343
      %378 = vmatmul.mubr.bf16.gmra.mrb[0].mxu0 %v237
      %v379 = vpop.f32.mrb[0].mxu0
      %v380 = vadd.f32 %v268, %v379
      %v381 = vpop.f32.mrb[0].mxu0
      %v382 = vpop.f32.mrb[0].mxu0
      %v383 = vadd.f32 %v268, %v382
      %v384 = vpop.f32.mrb[0].mxu0
      %385 = vdwg.mxu0
      %v386 = vxor.u32 %v380, 2147483648
      %v387 = vxor.u32 %v383, 2147483648
      %v388 = vmul.f32 %v386, 1.442695
      %v389 = vpow.pop %v388
      %v390 = vmul.f32 %v387, 1.442695
      %v391 = vpow.pop %v390
      %v392 = vadd.f32 %v389, 1.0
      %v393 = vadd.f32 %v391, 1.0
      %v394 = vrcp.pop %v392
      %v395 = vmul.f32 1.0, %v394
      %v396 = vrcp.pop %v393
      %v397 = vmul.f32 1.0, %v396
      %v398 = vmul.f32 %v380, %v395
      %v399 = vmul.f32 %v383, %v397
      %s400 = sadd.s32 %s207, 1
      %s401 = smul.u32 %s400, 16
      %s402 = scalar_lea.vmem %s0, %s401
      %v403 = vld [vmem:[%s402] sm:$0xff]
      %v404 = vld [vmem:[%s402 + $0x8] sm:$0xff]
      %v407 = vrot.slane %v403, 7
      %v408 = vrot.slane %v404, 7
      %v409 = vsel %vm214, %v407, %v408
      %v412 = vsel %vm214, 0.0, %v407
      %v413 = vrot.slane %v403, 1
      %v414 = vrot.slane %v404, 1
      %v415 = vsel %vm221, %v413, %v414
      %v418 = vsel %vm221, %v414, 0.0
      %419 = vrot.lane.b32.xlu0 %v403, 64
      %v420 = vpop.permute.xlu0 %419
      %421 = vrot.lane.b32.xlu0 %v404, 64
      %v422 = vpop.permute.xlu0 %421
      %v425 = vsel %vm234, %v412, %v420
      %v426 = vsel %vm234, %v409, %v422
      %v427 = vpack.c.bf16 %v426, %v425
      %v428 = vpack.c.bf16 %v418, %v415
      %v430 = vsel %vm234, %v428, 0
      %432 = vmatprep.subr.bf16.mxu0 0
      %433 = vmatpush1.bf16.msra.mxu0 %v318
      %434 = vmatprep.subr.bf16.mxu0 0
      %435 = vmatpush1.bf16.msra.mxu0 %v319
      %436 = vmatprep.subr.bf16.mxu0 0
      %437 = vmatpush1.bf16.msra.mxu0 %v320
      %438 = vmatprep.subr.bf16.mxu0 0
      %439 = vmatpush1.bf16.msra.mxu0 %v321
      %440 = vmatprep.subr.bf16.mxu0 0
      %441 = vmatpush1.bf16.msra.mxu0 %v322
      %442 = vmatprep.subr.bf16.mxu0 0
      %443 = vmatpush1.bf16.msra.mxu0 %v323
      %444 = vmatprep.subr.bf16.mxu0 0
      %445 = vmatpush1.bf16.msra.mxu0 %v324
      %446 = vmatprep.subr.bf16.mxu0 0
      %447 = vmatpush1.bf16.msra.mxu0 %v325
      %448 = vmatprep.subr.bf16.mxu0 0
      %449 = vmatpush1.bf16.msra.mxu0 %v326
      %450 = vmatprep.subr.bf16.mxu0 0
      %451 = vmatpush1.bf16.msra.mxu0 %v327
      %452 = vmatprep.subr.bf16.mxu0 0
      %453 = vmatpush1.bf16.msra.mxu0 %v328
      %454 = vmatprep.subr.bf16.mxu0 0
      %455 = vmatpush1.bf16.msra.mxu0 %v329
      %456 = vmatprep.subr.bf16.mxu0 0
      %457 = vmatpush1.bf16.msra.mxu0 0
      %458 = vmatprep.subr.bf16.mxu0 0
      %459 = vmatpush1.bf16.msra.mxu0 0
      %460 = vmatprep.subr.bf16.mxu0 0
      %461 = vmatpush1.bf16.msra.mxu0 0
      %462 = vmatprep.subr.bf16.mxu0 0
      %463 = vmatpush1.bf16.msra.mxu0 0
      %464 = vmatprep.mubr.bf16.mxu0 %v430
      %465 = vmatmul.mubr.bf16.gmra.mrb[0].mxu0 %v427
      %v466 = vpop.f32.mrb[0].mxu0
      %v467 = vadd.f32 %v268, %v466
      %v468 = vpop.f32.mrb[0].mxu0
      %v469 = vpop.f32.mrb[0].mxu0
      %v470 = vadd.f32 %v268, %v469
      %v471 = vpop.f32.mrb[0].mxu0
      %472 = vdwg.mxu0
      %v473 = vxor.u32 %v467, 2147483648
      %v474 = vxor.u32 %v470, 2147483648
      %v475 = vmul.f32 %v473, 1.442695
      %v476 = vpow.pop %v475
      %v477 = vmul.f32 %v474, 1.442695
      %v478 = vpow.pop %v477
      %v479 = vadd.f32 %v476, 1.0
      %v480 = vadd.f32 %v478, 1.0
      %v481 = vrcp.pop %v479
      %v482 = vmul.f32 1.0, %v481
      %v483 = vrcp.pop %v480
      %v484 = vmul.f32 1.0, %v483
      %v485 = vmul.f32 %v467, %v482
      %v486 = vmul.f32 %v470, %v484
      %s487 = sadd.s32 %s207, 2
      %s488 = smul.u32 %s487, 16
      %s489 = scalar_lea.vmem %s0, %s488
      %v490 = vld [vmem:[%s489] sm:$0xff]
      %v491 = vld [vmem:[%s489 + $0x8] sm:$0xff]
      %v494 = vrot.slane %v490, 7
      %v495 = vrot.slane %v491, 7
      %v496 = vsel %vm214, %v494, %v495
      %v499 = vsel %vm214, 0.0, %v494
      %v500 = vrot.slane %v490, 1
      %v501 = vrot.slane %v491, 1
      %v502 = vsel %vm221, %v500, %v501
      %v505 = vsel %vm221, %v501, 0.0
      %506 = vrot.lane.b32.xlu0 %v490, 64
      %v507 = vpop.permute.xlu0 %506
      %508 = vrot.lane.b32.xlu0 %v491, 64
      %v509 = vpop.permute.xlu0 %508
      %v512 = vsel %vm234, %v499, %v507
      %v513 = vsel %vm234, %v496, %v509
      %v514 = vpack.c.bf16 %v513, %v512
      %v515 = vpack.c.bf16 %v505, %v502
      %v517 = vsel %vm234, %v515, 0
      %519 = vmatprep.subr.bf16.mxu0 0
      %520 = vmatpush1.bf16.msra.mxu0 %v318
      %521 = vmatprep.subr.bf16.mxu0 0
      %522 = vmatpush1.bf16.msra.mxu0 %v319
      %523 = vmatprep.subr.bf16.mxu0 0
      %524 = vmatpush1.bf16.msra.mxu0 %v320
      %525 = vmatprep.subr.bf16.mxu0 0
      %526 = vmatpush1.bf16.msra.mxu0 %v321
      %527 = vmatprep.subr.bf16.mxu0 0
      %528 = vmatpush1.bf16.msra.mxu0 %v322
      %529 = vmatprep.subr.bf16.mxu0 0
      %530 = vmatpush1.bf16.msra.mxu0 %v323
      %531 = vmatprep.subr.bf16.mxu0 0
      %532 = vmatpush1.bf16.msra.mxu0 %v324
      %533 = vmatprep.subr.bf16.mxu0 0
      %534 = vmatpush1.bf16.msra.mxu0 %v325
      %535 = vmatprep.subr.bf16.mxu0 0
      %536 = vmatpush1.bf16.msra.mxu0 %v326
      %537 = vmatprep.subr.bf16.mxu0 0
      %538 = vmatpush1.bf16.msra.mxu0 %v327
      %539 = vmatprep.subr.bf16.mxu0 0
      %540 = vmatpush1.bf16.msra.mxu0 %v328
      %541 = vmatprep.subr.bf16.mxu0 0
      %542 = vmatpush1.bf16.msra.mxu0 %v329
      %543 = vmatprep.subr.bf16.mxu0 0
      %544 = vmatpush1.bf16.msra.mxu0 0
      %545 = vmatprep.subr.bf16.mxu0 0
      %546 = vmatpush1.bf16.msra.mxu0 0
      %547 = vmatprep.subr.bf16.mxu0 0
      %548 = vmatpush1.bf16.msra.mxu0 0
      %549 = vmatprep.subr.bf16.mxu0 0
      %550 = vmatpush1.bf16.msra.mxu0 0
      %551 = vmatprep.mubr.bf16.mxu0 %v517
      %552 = vmatmul.mubr.bf16.gmra.mrb[0].mxu0 %v514
      %v553 = vpop.f32.mrb[0].mxu0
      %v554 = vadd.f32 %v268, %v553
      %v555 = vpop.f32.mrb[0].mxu0
      %v556 = vpop.f32.mrb[0].mxu0
      %v557 = vadd.f32 %v268, %v556
      %v558 = vpop.f32.mrb[0].mxu0
      %559 = vdwg.mxu0
      %v560 = vxor.u32 %v554, 2147483648
      %v561 = vxor.u32 %v557, 2147483648
      %v562 = vmul.f32 %v560, 1.442695
      %v563 = vpow.pop %v562
      %v564 = vmul.f32 %v561, 1.442695
      %v565 = vpow.pop %v564
      %v566 = vadd.f32 %v563, 1.0
      %v567 = vadd.f32 %v565, 1.0
      %v568 = vrcp.pop %v566
      %v569 = vmul.f32 1.0, %v568
      %v570 = vrcp.pop %v567
      %v571 = vmul.f32 1.0, %v570
      %v572 = vmul.f32 %v554, %v569
      %v573 = vmul.f32 %v557, %v571
      %s574 = sadd.s32 %s207, 3
      %s575 = smul.u32 %s574, 16
      %s576 = scalar_lea.vmem %s0, %s575
      %v577 = vld [vmem:[%s576] sm:$0xff]
      %v578 = vld [vmem:[%s576 + $0x8] sm:$0xff]
      %v581 = vrot.slane %v577, 7
      %v582 = vrot.slane %v578, 7
      %v583 = vsel %vm214, %v581, %v582
      %v586 = vsel %vm214, 0.0, %v581
      %v587 = vrot.slane %v577, 1
      %v588 = vrot.slane %v578, 1
      %v589 = vsel %vm221, %v587, %v588
      %v592 = vsel %vm221, %v588, 0.0
      %593 = vrot.lane.b32.xlu0 %v577, 64
      %v594 = vpop.permute.xlu0 %593
      %595 = vrot.lane.b32.xlu0 %v578, 64
      %v596 = vpop.permute.xlu0 %595
      %v599 = vsel %vm234, %v586, %v594
      %v600 = vsel %vm234, %v583, %v596
      %v601 = vpack.c.bf16 %v600, %v599
      %v602 = vpack.c.bf16 %v592, %v589
      %v604 = vsel %vm234, %v602, 0
      %606 = vmatprep.subr.bf16.mxu0 0
      %607 = vmatpush1.bf16.msra.mxu0 %v318
      %608 = vmatprep.subr.bf16.mxu0 0
      %609 = vmatpush1.bf16.msra.mxu0 %v319
      %610 = vmatprep.subr.bf16.mxu0 0
      %611 = vmatpush1.bf16.msra.mxu0 %v320
      %612 = vmatprep.subr.bf16.mxu0 0
      %613 = vmatpush1.bf16.msra.mxu0 %v321
      %614 = vmatprep.subr.bf16.mxu0 0
      %615 = vmatpush1.bf16.msra.mxu0 %v322
      %616 = vmatprep.subr.bf16.mxu0 0
      %617 = vmatpush1.bf16.msra.mxu0 %v323
      %618 = vmatprep.subr.bf16.mxu0 0
      %619 = vmatpush1.bf16.msra.mxu0 %v324
      %620 = vmatprep.subr.bf16.mxu0 0
      %621 = vmatpush1.bf16.msra.mxu0 %v325
      %622 = vmatprep.subr.bf16.mxu0 0
      %623 = vmatpush1.bf16.msra.mxu0 %v326
      %624 = vmatprep.subr.bf16.mxu0 0
      %625 = vmatpush1.bf16.msra.mxu0 %v327
      %626 = vmatprep.subr.bf16.mxu0 0
      %627 = vmatpush1.bf16.msra.mxu0 %v328
      %628 = vmatprep.subr.bf16.mxu0 0
      %629 = vmatpush1.bf16.msra.mxu0 %v329
      %630 = vmatprep.subr.bf16.mxu0 0
      %631 = vmatpush1.bf16.msra.mxu0 0
      %632 = vmatprep.subr.bf16.mxu0 0
      %633 = vmatpush1.bf16.msra.mxu0 0
      %634 = vmatprep.subr.bf16.mxu0 0
      %635 = vmatpush1.bf16.msra.mxu0 0
      %636 = vmatprep.subr.bf16.mxu0 0
      %637 = vmatpush1.bf16.msra.mxu0 0
      %638 = vmatprep.mubr.bf16.mxu0 %v604
      %639 = vmatmul.mubr.bf16.gmra.mrb[0].mxu0 %v601
      %v640 = vpop.f32.mrb[0].mxu0
      %v641 = vadd.f32 %v268, %v640
      %v642 = vpop.f32.mrb[0].mxu0
      %v643 = vpop.f32.mrb[0].mxu0
      %v644 = vadd.f32 %v268, %v643
      %v645 = vpop.f32.mrb[0].mxu0
      %646 = vdwg.mxu0
      %v647 = vxor.u32 %v641, 2147483648
      %v648 = vxor.u32 %v644, 2147483648
      %v649 = vmul.f32 %v647, 1.442695
      %v650 = vpow.pop %v649
      %v651 = vmul.f32 %v648, 1.442695
      %v652 = vpow.pop %v651
      %v653 = vadd.f32 %v650, 1.0
      %v654 = vadd.f32 %v652, 1.0
      %v655 = vrcp.pop %v653
      %v656 = vmul.f32 1.0, %v655
      %v657 = vrcp.pop %v654
      %v658 = vmul.f32 1.0, %v657
      %v659 = vmul.f32 %v641, %v656
      %v660 = vmul.f32 %v644, %v658
      %v661 = vpack.c.bf16 %v399, %v398
      %v662 = vpack.c.bf16 %v486, %v485
      %v663 = vpack.c.bf16 %v573, %v572
      %v664 = vpack.c.bf16 %v660, %v659
      %v665 = vld [vmem:[%s3 + $0x40] sm:$0xf]
      %v666 = vld [vmem:[%s3 + $0x44] sm:$0xf]
      %v667 = vld [vmem:[%s3 + $0x48] sm:$0xf]
      %v668 = vld [vmem:[%s3 + $0x4c] sm:$0xf]
      %v673 = vunpack.c.l.b16 %v665
      %v674 = vunpack.c.l.b16 %v666
      %v675 = vunpack.c.l.b16 %v667
      %v676 = vunpack.c.l.b16 %v668
      %v677 = vpack.c.b16 %v674, %v673
      %v678 = vpack.c.b16 %v676, %v675
      %v680 = vsel %vm234, %v677, 0
      %v683 = vsel %vm234, %v678, 0
      %685 = vmatprep.subr.bf16.mxu0 0
      %686 = vmatpush1.bf16.msra.mxu0 %v661
      %687 = vmatprep.subr.bf16.mxu0 0
      %688 = vmatpush1.bf16.msra.mxu0 %v662
      %689 = vmatprep.subr.bf16.mxu0 0
      %690 = vmatpush1.bf16.msra.mxu0 %v663
      %691 = vmatprep.subr.bf16.mxu0 0
      %692 = vmatpush1.bf16.msra.mxu0 %v664
      %693 = vmatprep.subr.bf16.mxu0 0
      %694 = vmatpush1.bf16.msra.mxu0 0
      %695 = vmatprep.subr.bf16.mxu0 0
      %696 = vmatpush1.bf16.msra.mxu0 0
      %697 = vmatprep.subr.bf16.mxu0 0
      %698 = vmatpush1.bf16.msra.mxu0 0
      %699 = vmatprep.subr.bf16.mxu0 0
      %700 = vmatpush1.bf16.msra.mxu0 0
      %701 = vmatprep.subr.bf16.mxu0 0
      %702 = vmatpush1.bf16.msra.mxu0 0
      %703 = vmatprep.subr.bf16.mxu0 0
      %704 = vmatpush1.bf16.msra.mxu0 0
      %705 = vmatprep.subr.bf16.mxu0 0
      %706 = vmatpush1.bf16.msra.mxu0 0
      %707 = vmatprep.subr.bf16.mxu0 0
      %708 = vmatpush1.bf16.msra.mxu0 0
      %709 = vmatprep.subr.bf16.mxu0 0
      %710 = vmatpush1.bf16.msra.mxu0 0
      %711 = vmatprep.subr.bf16.mxu0 0
      %712 = vmatpush1.bf16.msra.mxu0 0
      %713 = vmatprep.subr.bf16.mxu0 0
      %714 = vmatpush1.bf16.msra.mxu0 0
      %715 = vmatprep.subr.bf16.mxu0 0
      %716 = vmatpush1.bf16.msra.mxu0 0
      %717 = vmatprep.mubr.bf16.mxu0 0
      %718 = vmatmul.mubr.bf16.gmra.mrb[0].mxu0 %v680
      %v719 = vpop.f32.mrb[0].mxu0
      %v720 = vadd.f32 0.0, %v719
      %v721 = vpop.f32.mrb[0].mxu0
      %v722 = vpop.f32.mrb[0].mxu0
      %v723 = vadd.f32 0.0, %v722
      %v724 = vpop.f32.mrb[0].mxu0
      %725 = vmatprep.mubr.bf16.mxu0 0
      %726 = vmatmul.mubr.bf16.gmra.mrb[0].mxu0 %v683
      %v727 = vpop.f32.mrb[0].mxu0
      %v728 = vadd.f32 0.0, %v727
      %v729 = vpop.f32.mrb[0].mxu0
      %v730 = vpop.f32.mrb[0].mxu0
      %v731 = vadd.f32 0.0, %v730
      %v732 = vpop.f32.mrb[0].mxu0
      %733 = vdwg.mxu0
      %v734 = vld [vmem:[%s3] sm:$0xf]
      %v735 = vld [vmem:[%s3 + $0x4] sm:$0xf]
      %v736 = vld [vmem:[%s3 + $0x8] sm:$0xf]
      %v737 = vld [vmem:[%s3 + $0xc] sm:$0xf]
      %v738 = vld [vmem:[%s3 + $0x10] sm:$0xf]
      %v739 = vld [vmem:[%s3 + $0x14] sm:$0xf]
      %v740 = vld [vmem:[%s3 + $0x18] sm:$0xf]
      %v741 = vld [vmem:[%s3 + $0x1c] sm:$0xf]
      %v742 = vld [vmem:[%s3 + $0x20] sm:$0xf]
      %v743 = vld [vmem:[%s3 + $0x24] sm:$0xf]
      %v744 = vld [vmem:[%s3 + $0x28] sm:$0xf]
      %v745 = vld [vmem:[%s3 + $0x2c] sm:$0xf]
      %v746 = vld [vmem:[%s3 + $0x30] sm:$0xf]
      %v747 = vld [vmem:[%s3 + $0x34] sm:$0xf]
      %v748 = vld [vmem:[%s3 + $0x38] sm:$0xf]
      %v749 = vld [vmem:[%s3 + $0x3c] sm:$0xf]
      %v750 = vpack.c.bf16 %v723, %v720
      %v751 = vpack.c.bf16 %v731, %v728
      %v768 = vunpack.c.l.b16 %v734
      %v769 = vunpack.c.l.b16 %v735
      %v770 = vunpack.c.l.b16 %v736
      %v771 = vunpack.c.l.b16 %v737
      %v772 = vunpack.c.l.b16 %v738
      %v773 = vunpack.c.l.b16 %v739
      %v774 = vunpack.c.l.b16 %v740
      %v775 = vunpack.c.l.b16 %v741
      %v776 = vunpack.c.l.b16 %v742
      %v777 = vunpack.c.l.b16 %v743
      %v778 = vunpack.c.l.b16 %v744
      %v779 = vunpack.c.l.b16 %v745
      %v780 = vunpack.c.l.b16 %v746
      %v781 = vunpack.c.l.b16 %v747
      %v782 = vunpack.c.l.b16 %v748
      %v783 = vunpack.c.l.b16 %v749
      %v784 = vpack.c.b16 %v769, %v768
      %v785 = vpack.c.b16 %v771, %v770
      %v786 = vpack.c.b16 %v773, %v772
      %v787 = vpack.c.b16 %v775, %v774
      %v788 = vpack.c.b16 %v777, %v776
      %v789 = vpack.c.b16 %v779, %v778
      %v790 = vpack.c.b16 %v781, %v780
      %v791 = vpack.c.b16 %v783, %v782
      %800 = vmatprep.subr.bf16.mxu0 0
      %801 = vmatpush1.bf16.msra.mxu0 %v784
      %802 = vmatprep.subr.bf16.mxu0 0
      %803 = vmatpush1.bf16.msra.mxu0 %v785
      %804 = vmatprep.subr.bf16.mxu0 0
      %805 = vmatpush1.bf16.msra.mxu0 %v786
      %806 = vmatprep.subr.bf16.mxu0 0
      %807 = vmatpush1.bf16.msra.mxu0 %v787
      %808 = vmatprep.subr.bf16.mxu0 0
      %809 = vmatpush1.bf16.msra.mxu0 %v788
      %810 = vmatprep.subr.bf16.mxu0 0
      %811 = vmatpush1.bf16.msra.mxu0 %v789
      %812 = vmatprep.subr.bf16.mxu0 0
      %813 = vmatpush1.bf16.msra.mxu0 %v790
      %814 = vmatprep.subr.bf16.mxu0 0
      %815 = vmatpush1.bf16.msra.mxu0 %v791
      %816 = vmatprep.subr.bf16.mxu0 0
      %817 = vmatpush1.bf16.msra.mxu0 0
      %818 = vmatprep.subr.bf16.mxu0 0
      %819 = vmatpush1.bf16.msra.mxu0 0
      %820 = vmatprep.subr.bf16.mxu0 0
      %821 = vmatpush1.bf16.msra.mxu0 0
      %822 = vmatprep.subr.bf16.mxu0 0
      %823 = vmatpush1.bf16.msra.mxu0 0
      %824 = vmatprep.subr.bf16.mxu0 0
      %825 = vmatpush1.bf16.msra.mxu0 0
      %826 = vmatprep.subr.bf16.mxu0 0
      %827 = vmatpush1.bf16.msra.mxu0 0
      %828 = vmatprep.subr.bf16.mxu0 0
      %829 = vmatpush1.bf16.msra.mxu0 0
      %830 = vmatprep.subr.bf16.mxu0 0
      %831 = vmatpush1.bf16.msra.mxu0 0
      %832 = vmatprep.mubr.bf16.mxu0 0
      %833 = vmatmul.mubr.bf16.gmra.mrb[0].mxu0 %v750
      %v834 = vpop.f32.mrb[0].mxu0
      %v835 = vadd.f32 0.0, %v834
      %v836 = vpop.f32.mrb[0].mxu0
      %v837 = vpop.f32.mrb[0].mxu0
      %v838 = vadd.f32 0.0, %v837
      %v839 = vpop.f32.mrb[0].mxu0
      %840 = vmatprep.mubr.bf16.mxu0 0
      %841 = vmatmul.mubr.bf16.gmra.mrb[0].mxu0 %v751
      %v842 = vpop.f32.mrb[0].mxu0
      %v843 = vadd.f32 0.0, %v842
      %v844 = vpop.f32.mrb[0].mxu0
      %v845 = vpop.f32.mrb[0].mxu0
      %v846 = vadd.f32 0.0, %v845
      %v847 = vpop.f32.mrb[0].mxu0
      %848 = vdwg.mxu0
      %v849 = vmul.f32 %v835, 0.11111111
      %v850 = vmul.f32 %v838, 0.11111111
      %v851 = vmul.f32 %v843, 0.11111111
      %v852 = vmul.f32 %v846, 0.11111111
      %v854 = vrot.slane %v849, 7
      %v856 = vsel %vm214, 0.0, %v854
      %v857 = vsel %vm214, %v854, 0.0
      %v859 = vrot.slane %v850, 7
      %v861 = vsel %vm214, 0.0, %v859
      %v862 = vsel %vm214, %v859, 0.0
      %v864 = vrot.slane %v851, 7
      %v866 = vsel %vm214, 0.0, %v864
      %v867 = vsel %vm214, %v864, 0.0
      %v869 = vrot.slane %v852, 7
      %v871 = vsel %vm214, 0.0, %v869
      %v872 = vsel %vm214, %v869, 0.0
      %p873 = scmp.eq.s32.totalorder %s16, 0
      %s874 = scalar_select %p873, 1, 0
      %v875 = vstv %s874
      %vm876 = vcmp.eq.s32.totalorder %v875, 1
      %v877 = vsel %vm876, 0.0, %v856
      %v878 = vsel %vm876, 0.0, %v857
      %v879 = vsel %vm876, %v856, %v861
      %v880 = vsel %vm876, %v857, %v862
      %v881 = vsel %vm876, %v861, %v866
      %v882 = vsel %vm876, %v862, %v867
      %v883 = vsel %vm876, %v866, %v871
      %v884 = vsel %vm876, %v867, %v872
      %v885 = vsel %vm876, %v871, 0.0
      %v886 = vsel %vm876, %v872, 0.0
      %v889 = vrot.slane %v877, 1
      %v890 = vrot.slane %v878, 1
      %v891 = vsel %vm221, %v889, %v890
      %892 = vrot.lane.b32.xlu0 %v891, 8
      %v893 = vpop.permute.xlu0 %892
      %vm895 = vcmask 64512
      %v896 = vsel %vm895, 0.0, %v893
      %v897 = vld [vmem:[%s4] sm:$0x1]
      %v898 = vlaneseq
      %v899 = vshrl.u32 %v898, 7
      %v900 = vsub.s32 0, %v899
      %v901 = vrot.slane %v897, %v900
      %v902 = vmul.f32 %v896, %v901
      %v903 = vadd.f32 %v902, 0.0
      %v904 = vld [vmem:[%s4 + $0x1] sm:$0x1]
      %v905 = vlaneseq
      %v906 = vshrl.u32 %v905, 7
      %v907 = vsub.s32 0, %v906
      %v908 = vrot.slane %v904, %v907
      %v909 = vmul.f32 %v877, %v908
      %v910 = vmul.f32 %v878, %v908
      %v913 = vrot.slane %v909, 1
      %v914 = vrot.slane %v910, 1
      %v915 = vsel %vm221, %v913, %v914
      %v917 = vadd.f32 %v903, %v915
      %918 = vrot.lane.b32.xlu0 %v877, 120
      %v919 = vpop.permute.xlu0 %918
      %920 = vrot.lane.b32.xlu0 %v878, 120
      %v921 = vpop.permute.xlu0 %920
      %vm924 = vcmask 457728
      %v925 = vsel %vm924, %v919, 0.0
      %v926 = vsel %vm924, %v921, 0.0
      %v927 = vld [vmem:[%s4 + $0x2] sm:$0x1]
      %v928 = vlaneseq
      %v929 = vshrl.u32 %v928, 7
      %v930 = vsub.s32 0, %v929
      %v931 = vrot.slane %v927, %v930
      %v932 = vmul.f32 %v925, %v931
      %v933 = vmul.f32 %v926, %v931
      %v936 = vrot.slane %v932, 1
      %v937 = vrot.slane %v933, 1
      %v938 = vsel %vm221, %v936, %v937
      %v940 = vadd.f32 %v917, %v938
      %v941 = vld [vmem:[%s4 + $0x9] sm:$0x1]
      %v942 = vlaneseq
      %v943 = vshrl.u32 %v942, 7
      %v944 = vsub.s32 0, %v943
      %v945 = vrot.slane %v941, %v944
      %v946 = vmul.f32 %v877, %v945
      %v947 = vadd.f32 %v946, 0.0
      %v948 = vld [vmem:[%s4 + $0xc] sm:$0x1]
      %v949 = vlaneseq
      %v950 = vshrl.u32 %v949, 7
      %v951 = vsub.s32 0, %v950
      %v952 = vrot.slane %v948, %v951
      %v953 = vmul.f32 %v877, %v952
      %v954 = vmul.f32 %v878, %v952
      %v957 = vrot.slane %v953, 1
      %v958 = vrot.slane %v954, 1
      %v959 = vsel %vm221, %v957, %v958
      %v961 = vadd.f32 %v947, %v959
      %v962 = vld [vmem:[%s4 + $0xf] sm:$0x1]
      %v963 = vlaneseq
      %v964 = vshrl.u32 %v963, 7
      %v965 = vsub.s32 0, %v964
      %v966 = vrot.slane %v962, %v965
      %v967 = vmul.f32 %v877, %v966
      %v968 = vmul.f32 %v878, %v966
      %vm971 = vcmask 1045504
      %v972 = vrot.slane %v967, 2
      %v973 = vrot.slane %v968, 2
      %v974 = vsel %vm971, %v972, %v973
      %v976 = vadd.f32 %v961, %v974
      %v979 = vrot.slane %v879, 1
      %v980 = vrot.slane %v880, 1
      %v981 = vsel %vm221, %v979, %v980
      %982 = vrot.lane.b32.xlu0 %v981, 8
      %v983 = vpop.permute.xlu0 %982
      %v985 = vsel %vm895, 0.0, %v983
      %v986 = vld [vmem:[%s4 + $0x3] sm:$0x1]
      %v987 = vlaneseq
      %v988 = vshrl.u32 %v987, 7
      %v989 = vsub.s32 0, %v988
      %v990 = vrot.slane %v986, %v989
      %v991 = vmul.f32 %v985, %v990
      %v992 = vadd.f32 %v940, %v991
      %v993 = vld [vmem:[%s4 + $0x4] sm:$0x1]
      %v994 = vlaneseq
      %v995 = vshrl.u32 %v994, 7
      %v996 = vsub.s32 0, %v995
      %v997 = vrot.slane %v993, %v996
      %v998 = vmul.f32 %v879, %v997
      %v999 = vmul.f32 %v880, %v997
      %v1002 = vrot.slane %v998, 1
      %v1003 = vrot.slane %v999, 1
      %v1004 = vsel %vm221, %v1002, %v1003
      %v1006 = vadd.f32 %v992, %v1004
      %1007 = vrot.lane.b32.xlu0 %v879, 120
      %v1008 = vpop.permute.xlu0 %1007
      %1009 = vrot.lane.b32.xlu0 %v880, 120
      %v1010 = vpop.permute.xlu0 %1009
      %v1013 = vsel %vm924, %v1008, 0.0
      %v1014 = vsel %vm924, %v1010, 0.0
      %v1015 = vld [vmem:[%s4 + $0x5] sm:$0x1]
      %v1016 = vlaneseq
      %v1017 = vshrl.u32 %v1016, 7
      %v1018 = vsub.s32 0, %v1017
      %v1019 = vrot.slane %v1015, %v1018
      %v1020 = vmul.f32 %v1013, %v1019
      %v1021 = vmul.f32 %v1014, %v1019
      %v1024 = vrot.slane %v1020, 1
      %v1025 = vrot.slane %v1021, 1
      %v1026 = vsel %vm221, %v1024, %v1025
      %v1028 = vadd.f32 %v1006, %v1026
      %v1029 = vld [vmem:[%s4 + $0xa] sm:$0x1]
      %v1030 = vlaneseq
      %v1031 = vshrl.u32 %v1030, 7
      %v1032 = vsub.s32 0, %v1031
      %v1033 = vrot.slane %v1029, %v1032
      %v1034 = vmul.f32 %v879, %v1033
      %v1035 = vadd.f32 %v976, %v1034
      %v1036 = vld [vmem:[%s4 + $0xd] sm:$0x1]
      %v1037 = vlaneseq
      %v1038 = vshrl.u32 %v1037, 7
      %v1039 = vsub.s32 0, %v1038
      %v1040 = vrot.slane %v1036, %v1039
      %v1041 = vmul.f32 %v879, %v1040
      %v1042 = vmul.f32 %v880, %v1040
      %v1045 = vrot.slane %v1041, 1
      %v1046 = vrot.slane %v1042, 1
      %v1047 = vsel %vm221, %v1045, %v1046
      %v1049 = vadd.f32 %v1035, %v1047
      %v1050 = vld [vmem:[%s4 + $0x10] sm:$0x1]
      %v1051 = vlaneseq
      %v1052 = vshrl.u32 %v1051, 7
      %v1053 = vsub.s32 0, %v1052
      %v1054 = vrot.slane %v1050, %v1053
      %v1055 = vmul.f32 %v879, %v1054
      %v1056 = vmul.f32 %v880, %v1054
      %v1059 = vrot.slane %v1055, 2
      %v1060 = vrot.slane %v1056, 2
      %v1061 = vsel %vm971, %v1059, %v1060
      %v1063 = vadd.f32 %v1049, %v1061
      %v1066 = vrot.slane %v881, 1
      %v1067 = vrot.slane %v882, 1
      %v1068 = vsel %vm221, %v1066, %v1067
      %1069 = vrot.lane.b32.xlu0 %v1068, 8
      %v1070 = vpop.permute.xlu0 %1069
      %v1072 = vsel %vm895, 0.0, %v1070
      %v1073 = vld [vmem:[%s4 + $0x6] sm:$0x1]
      %v1074 = vlaneseq
      %v1075 = vshrl.u32 %v1074, 7
      %v1076 = vsub.s32 0, %v1075
      %v1077 = vrot.slane %v1073, %v1076
      %v1078 = vmul.f32 %v1072, %v1077
      %v1079 = vadd.f32 %v1028, %v1078
      %v1080 = vld [vmem:[%s4 + $0x7] sm:$0x1]
      %v1081 = vlaneseq
      %v1082 = vshrl.u32 %v1081, 7
      %v1083 = vsub.s32 0, %v1082
      %v1084 = vrot.slane %v1080, %v1083
      %v1085 = vmul.f32 %v881, %v1084
      %v1086 = vmul.f32 %v882, %v1084
      %v1089 = vrot.slane %v1085, 1
      %v1090 = vrot.slane %v1086, 1
      %v1091 = vsel %vm221, %v1089, %v1090
      %v1093 = vadd.f32 %v1079, %v1091
      %1094 = vrot.lane.b32.xlu0 %v881, 120
      %v1095 = vpop.permute.xlu0 %1094
      %1096 = vrot.lane.b32.xlu0 %v882, 120
      %v1097 = vpop.permute.xlu0 %1096
      %v1100 = vsel %vm924, %v1095, 0.0
      %v1101 = vsel %vm924, %v1097, 0.0
      %v1102 = vld [vmem:[%s4 + $0x8] sm:$0x1]
      %v1103 = vlaneseq
      %v1104 = vshrl.u32 %v1103, 7
      %v1105 = vsub.s32 0, %v1104
      %v1106 = vrot.slane %v1102, %v1105
      %v1107 = vmul.f32 %v1100, %v1106
      %v1108 = vmul.f32 %v1101, %v1106
      %v1111 = vrot.slane %v1107, 1
      %v1112 = vrot.slane %v1108, 1
      %v1113 = vsel %vm221, %v1111, %v1112
      %v1115 = vadd.f32 %v1093, %v1113
      %v1116 = vld [vmem:[%s4 + $0xb] sm:$0x1]
      %v1117 = vlaneseq
      %v1118 = vshrl.u32 %v1117, 7
      %v1119 = vsub.s32 0, %v1118
      %v1120 = vrot.slane %v1116, %v1119
      %v1121 = vmul.f32 %v881, %v1120
      %v1122 = vadd.f32 %v1063, %v1121
      %v1123 = vld [vmem:[%s4 + $0xe] sm:$0x1]
      %v1124 = vlaneseq
      %v1125 = vshrl.u32 %v1124, 7
      %v1126 = vsub.s32 0, %v1125
      %v1127 = vrot.slane %v1123, %v1126
      %v1128 = vmul.f32 %v881, %v1127
      %v1129 = vmul.f32 %v882, %v1127
      %v1132 = vrot.slane %v1128, 1
      %v1133 = vrot.slane %v1129, 1
      %v1134 = vsel %vm221, %v1132, %v1133
      %v1136 = vadd.f32 %v1122, %v1134
      %v1137 = vld [vmem:[%s4 + $0x11] sm:$0x1]
      %v1138 = vlaneseq
      %v1139 = vshrl.u32 %v1138, 7
      %v1140 = vsub.s32 0, %v1139
      %v1141 = vrot.slane %v1137, %v1140
      %v1142 = vmul.f32 %v881, %v1141
      %v1143 = vmul.f32 %v882, %v1141
      %v1146 = vrot.slane %v1142, 2
      %v1147 = vrot.slane %v1143, 2
      %v1148 = vsel %vm971, %v1146, %v1147
      %v1150 = vadd.f32 %v1136, %v1148
      %v1151 = vld [vmem:[%s4 + $0x12] sm:$0x1]
      %v1152 = vlaneseq
      %v1153 = vshrl.u32 %v1152, 7
      %v1154 = vsub.s32 0, %v1153
      %v1155 = vrot.slane %v1151, %v1154
      %v1156 = vadd.f32 %v1115, %v1155
      %v1157 = vxor.u32 %v1156, 2147483648
      %v1158 = vmul.f32 %v1157, 1.442695
      %v1159 = vpow.pop %v1158
      %v1160 = vadd.f32 %v1159, 1.0
      %v1161 = vrcp.pop %v1160
      %v1162 = vmul.f32 1.0, %v1161
      %v1163 = vmul.f32 %v1156, %v1162
      %v1164 = vld [vmem:[%s4 + $0x13] sm:$0x1]
      %v1165 = vlaneseq
      %v1166 = vshrl.u32 %v1165, 7
      %v1167 = vsub.s32 0, %v1166
      %v1168 = vrot.slane %v1164, %v1167
      %v1169 = vadd.f32 %v1150, %v1168
      %v1170 = vxor.u32 %v1169, 2147483648
      %v1171 = vmul.f32 %v1170, 1.442695
      %v1172 = vpow.pop %v1171
      %v1173 = vadd.f32 %v1172, 1.0
      %v1174 = vrcp.pop %v1173
      %v1175 = vmul.f32 1.0, %v1174
      %v1176 = vmul.f32 %v1169, %v1175
      %v1178 = vsel %vm234, %v981, 0.0
      %v1179 = vrot.slane %v1178, 4
      %v1180 = vadd.f32 %v1178, %v1179
      %v1181 = vrot.slane %v1180, 2
      %v1182 = vadd.f32 %v1180, %v1181
      %v1183 = vrot.slane %v1182, 1
      %v1184 = vadd.f32 %v1182, %v1183
      %v1185 = vsel %vm234, %v1163, 0.0
      %v1186 = vrot.slane %v1185, 4
      %v1187 = vadd.f32 %v1185, %v1186
      %v1188 = vrot.slane %v1187, 2
      %v1189 = vadd.f32 %v1187, %v1188
      %v1190 = vrot.slane %v1189, 1
      %v1191 = vadd.f32 %v1189, %v1190
      %v1192 = vsel %vm234, %v1176, 0.0
      %v1193 = vrot.slane %v1192, 4
      %v1194 = vadd.f32 %v1192, %v1193
      %v1195 = vrot.slane %v1194, 2
      %v1196 = vadd.f32 %v1194, %v1195
      %v1197 = vrot.slane %v1196, 1
      %v1198 = vadd.f32 %v1196, %v1197
      %v1199 = vmul.f32 %v985, %v901
      %v1200 = vadd.f32 %v1199, 0.0
      %v1201 = vmul.f32 %v879, %v908
      %v1202 = vmul.f32 %v880, %v908
      %v1205 = vrot.slane %v1201, 1
      %v1206 = vrot.slane %v1202, 1
      %v1207 = vsel %vm221, %v1205, %v1206
      %v1209 = vadd.f32 %v1200, %v1207
      %v1210 = vmul.f32 %v1013, %v931
      %v1211 = vmul.f32 %v1014, %v931
      %v1214 = vrot.slane %v1210, 1
      %v1215 = vrot.slane %v1211, 1
      %v1216 = vsel %vm221, %v1214, %v1215
      %v1218 = vadd.f32 %v1209, %v1216
      %v1219 = vmul.f32 %v879, %v945
      %v1220 = vadd.f32 %v1219, 0.0
      %v1221 = vmul.f32 %v879, %v952
      %v1222 = vmul.f32 %v880, %v952
      %v1225 = vrot.slane %v1221, 1
      %v1226 = vrot.slane %v1222, 1
      %v1227 = vsel %vm221, %v1225, %v1226
      %v1229 = vadd.f32 %v1220, %v1227
      %v1230 = vmul.f32 %v879, %v966
      %v1231 = vmul.f32 %v880, %v966
      %v1234 = vrot.slane %v1230, 2
      %v1235 = vrot.slane %v1231, 2
      %v1236 = vsel %vm971, %v1234, %v1235
      %v1238 = vadd.f32 %v1229, %v1236
      %v1239 = vmul.f32 %v1072, %v990
      %v1240 = vadd.f32 %v1218, %v1239
      %v1241 = vmul.f32 %v881, %v997
      %v1242 = vmul.f32 %v882, %v997
      %v1245 = vrot.slane %v1241, 1
      %v1246 = vrot.slane %v1242, 1
      %v1247 = vsel %vm221, %v1245, %v1246
      %v1249 = vadd.f32 %v1240, %v1247
      %v1250 = vmul.f32 %v1100, %v1019
      %v1251 = vmul.f32 %v1101, %v1019
      %v1254 = vrot.slane %v1250, 1
      %v1255 = vrot.slane %v1251, 1
      %v1256 = vsel %vm221, %v1254, %v1255
      %v1258 = vadd.f32 %v1249, %v1256
      %v1259 = vmul.f32 %v881, %v1033
      %v1260 = vadd.f32 %v1238, %v1259
      %v1261 = vmul.f32 %v881, %v1040
      %v1262 = vmul.f32 %v882, %v1040
      %v1265 = vrot.slane %v1261, 1
      %v1266 = vrot.slane %v1262, 1
      %v1267 = vsel %vm221, %v1265, %v1266
      %v1269 = vadd.f32 %v1260, %v1267
      %v1270 = vmul.f32 %v881, %v1054
      %v1271 = vmul.f32 %v882, %v1054
      %v1274 = vrot.slane %v1270, 2
      %v1275 = vrot.slane %v1271, 2
      %v1276 = vsel %vm971, %v1274, %v1275
      %v1278 = vadd.f32 %v1269, %v1276
      %v1281 = vrot.slane %v883, 1
      %v1282 = vrot.slane %v884, 1
      %v1283 = vsel %vm221, %v1281, %v1282
      %1284 = vrot.lane.b32.xlu0 %v1283, 8
      %v1285 = vpop.permute.xlu0 %1284
      %v1287 = vsel %vm895, 0.0, %v1285
      %v1288 = vmul.f32 %v1287, %v1077
      %v1289 = vadd.f32 %v1258, %v1288
      %v1290 = vmul.f32 %v883, %v1084
      %v1291 = vmul.f32 %v884, %v1084
      %v1294 = vrot.slane %v1290, 1
      %v1295 = vrot.slane %v1291, 1
      %v1296 = vsel %vm221, %v1294, %v1295
      %v1298 = vadd.f32 %v1289, %v1296
      %1299 = vrot.lane.b32.xlu0 %v883, 120
      %v1300 = vpop.permute.xlu0 %1299
      %1301 = vrot.lane.b32.xlu0 %v884, 120
      %v1302 = vpop.permute.xlu0 %1301
      %v1305 = vsel %vm924, %v1300, 0.0
      %v1306 = vsel %vm924, %v1302, 0.0
      %v1307 = vmul.f32 %v1305, %v1106
      %v1308 = vmul.f32 %v1306, %v1106
      %v1311 = vrot.slane %v1307, 1
      %v1312 = vrot.slane %v1308, 1
      %v1313 = vsel %vm221, %v1311, %v1312
      %v1315 = vadd.f32 %v1298, %v1313
      %v1316 = vmul.f32 %v883, %v1120
      %v1317 = vadd.f32 %v1278, %v1316
      %v1318 = vmul.f32 %v883, %v1127
      %v1319 = vmul.f32 %v884, %v1127
      %v1322 = vrot.slane %v1318, 1
      %v1323 = vrot.slane %v1319, 1
      %v1324 = vsel %vm221, %v1322, %v1323
      %v1326 = vadd.f32 %v1317, %v1324
      %v1327 = vmul.f32 %v883, %v1141
      %v1328 = vmul.f32 %v884, %v1141
      %v1331 = vrot.slane %v1327, 2
      %v1332 = vrot.slane %v1328, 2
      %v1333 = vsel %vm971, %v1331, %v1332
      %v1335 = vadd.f32 %v1326, %v1333
      %v1336 = vadd.f32 %v1315, %v1155
      %v1337 = vxor.u32 %v1336, 2147483648
      %v1338 = vmul.f32 %v1337, 1.442695
      %v1339 = vpow.pop %v1338
      %v1340 = vadd.f32 %v1339, 1.0
      %v1341 = vrcp.pop %v1340
      %v1342 = vmul.f32 1.0, %v1341
      %v1343 = vmul.f32 %v1336, %v1342
      %v1344 = vadd.f32 %v1335, %v1168
      %v1345 = vxor.u32 %v1344, 2147483648
      %v1346 = vmul.f32 %v1345, 1.442695
      %v1347 = vpow.pop %v1346
      %v1348 = vadd.f32 %v1347, 1.0
      %v1349 = vrcp.pop %v1348
      %v1350 = vmul.f32 1.0, %v1349
      %v1351 = vmul.f32 %v1344, %v1350
      %v1353 = vsel %vm234, %v1068, 0.0
      %v1354 = vrot.slane %v1353, 4
      %v1355 = vadd.f32 %v1353, %v1354
      %v1356 = vrot.slane %v1355, 2
      %v1357 = vadd.f32 %v1355, %v1356
      %v1358 = vrot.slane %v1357, 1
      %v1359 = vadd.f32 %v1357, %v1358
      %v1360 = vsel %vm234, %v1343, 0.0
      %v1361 = vrot.slane %v1360, 4
      %v1362 = vadd.f32 %v1360, %v1361
      %v1363 = vrot.slane %v1362, 2
      %v1364 = vadd.f32 %v1362, %v1363
      %v1365 = vrot.slane %v1364, 1
      %v1366 = vadd.f32 %v1364, %v1365
      %v1367 = vsel %vm234, %v1351, 0.0
      %v1368 = vrot.slane %v1367, 4
      %v1369 = vadd.f32 %v1367, %v1368
      %v1370 = vrot.slane %v1369, 2
      %v1371 = vadd.f32 %v1369, %v1370
      %v1372 = vrot.slane %v1371, 1
      %v1373 = vadd.f32 %v1371, %v1372
      %v1374 = vmul.f32 %v1072, %v901
      %v1375 = vadd.f32 %v1374, 0.0
      %v1376 = vmul.f32 %v881, %v908
      %v1377 = vmul.f32 %v882, %v908
      %v1380 = vrot.slane %v1376, 1
      %v1381 = vrot.slane %v1377, 1
      %v1382 = vsel %vm221, %v1380, %v1381
      %v1384 = vadd.f32 %v1375, %v1382
      %v1385 = vmul.f32 %v1100, %v931
      %v1386 = vmul.f32 %v1101, %v931
      %v1389 = vrot.slane %v1385, 1
      %v1390 = vrot.slane %v1386, 1
      %v1391 = vsel %vm221, %v1389, %v1390
      %v1393 = vadd.f32 %v1384, %v1391
      %v1394 = vmul.f32 %v881, %v945
      %v1395 = vadd.f32 %v1394, 0.0
      %v1396 = vmul.f32 %v881, %v952
      %v1397 = vmul.f32 %v882, %v952
      %v1400 = vrot.slane %v1396, 1
      %v1401 = vrot.slane %v1397, 1
      %v1402 = vsel %vm221, %v1400, %v1401
      %v1404 = vadd.f32 %v1395, %v1402
      %v1405 = vmul.f32 %v881, %v966
      %v1406 = vmul.f32 %v882, %v966
      %v1409 = vrot.slane %v1405, 2
      %v1410 = vrot.slane %v1406, 2
      %v1411 = vsel %vm971, %v1409, %v1410
      %v1413 = vadd.f32 %v1404, %v1411
      %v1414 = vmul.f32 %v1287, %v990
      %v1415 = vadd.f32 %v1393, %v1414
      %v1416 = vmul.f32 %v883, %v997
      %v1417 = vmul.f32 %v884, %v997
      %v1420 = vrot.slane %v1416, 1
      %v1421 = vrot.slane %v1417, 1
      %v1422 = vsel %vm221, %v1420, %v1421
      %v1424 = vadd.f32 %v1415, %v1422
      %v1425 = vmul.f32 %v1305, %v1019
      %v1426 = vmul.f32 %v1306, %v1019
      %v1429 = vrot.slane %v1425, 1
      %v1430 = vrot.slane %v1426, 1
      %v1431 = vsel %vm221, %v1429, %v1430
      %v1433 = vadd.f32 %v1424, %v1431
      %v1434 = vmul.f32 %v883, %v1033
      %v1435 = vadd.f32 %v1413, %v1434
      %v1436 = vmul.f32 %v883, %v1040
      %v1437 = vmul.f32 %v884, %v1040
      %v1440 = vrot.slane %v1436, 1
      %v1441 = vrot.slane %v1437, 1
      %v1442 = vsel %vm221, %v1440, %v1441
      %v1444 = vadd.f32 %v1435, %v1442
      %v1445 = vmul.f32 %v883, %v1054
      %v1446 = vmul.f32 %v884, %v1054
      %v1449 = vrot.slane %v1445, 2
      %v1450 = vrot.slane %v1446, 2
      %v1451 = vsel %vm971, %v1449, %v1450
      %v1453 = vadd.f32 %v1444, %v1451
      %v1456 = vrot.slane %v885, 1
      %v1457 = vrot.slane %v886, 1
      %v1458 = vsel %vm221, %v1456, %v1457
      %1459 = vrot.lane.b32.xlu0 %v1458, 8
      %v1460 = vpop.permute.xlu0 %1459
      %v1462 = vsel %vm895, 0.0, %v1460
      %v1463 = vmul.f32 %v1462, %v1077
      %v1464 = vadd.f32 %v1433, %v1463
      %v1465 = vmul.f32 %v885, %v1084
      %v1466 = vmul.f32 %v886, %v1084
      %v1469 = vrot.slane %v1465, 1
      %v1470 = vrot.slane %v1466, 1
      %v1471 = vsel %vm221, %v1469, %v1470
      %v1473 = vadd.f32 %v1464, %v1471
      %1474 = vrot.lane.b32.xlu0 %v885, 120
      %v1475 = vpop.permute.xlu0 %1474
      %1476 = vrot.lane.b32.xlu0 %v886, 120
      %v1477 = vpop.permute.xlu0 %1476
      %v1480 = vsel %vm924, %v1475, 0.0
      %v1481 = vsel %vm924, %v1477, 0.0
      %v1482 = vmul.f32 %v1480, %v1106
      %v1483 = vmul.f32 %v1481, %v1106
      %v1486 = vrot.slane %v1482, 1
      %v1487 = vrot.slane %v1483, 1
      %v1488 = vsel %vm221, %v1486, %v1487
      %v1490 = vadd.f32 %v1473, %v1488
      %v1491 = vmul.f32 %v885, %v1120
      %v1492 = vadd.f32 %v1453, %v1491
      %v1493 = vmul.f32 %v885, %v1127
      %v1494 = vmul.f32 %v886, %v1127
      %v1497 = vrot.slane %v1493, 1
      %v1498 = vrot.slane %v1494, 1
      %v1499 = vsel %vm221, %v1497, %v1498
      %v1501 = vadd.f32 %v1492, %v1499
      %v1502 = vmul.f32 %v885, %v1141
      %v1503 = vmul.f32 %v886, %v1141
      %v1506 = vrot.slane %v1502, 2
      %v1507 = vrot.slane %v1503, 2
      %v1508 = vsel %vm971, %v1506, %v1507
      %v1510 = vadd.f32 %v1501, %v1508
      %v1511 = vadd.f32 %v1490, %v1155
      %v1512 = vxor.u32 %v1511, 2147483648
      %v1513 = vmul.f32 %v1512, 1.442695
      %v1514 = vpow.pop %v1513
      %v1515 = vadd.f32 %v1514, 1.0
      %v1516 = vrcp.pop %v1515
      %v1517 = vmul.f32 1.0, %v1516
      %v1518 = vmul.f32 %v1511, %v1517
      %v1519 = vadd.f32 %v1510, %v1168
      %v1520 = vxor.u32 %v1519, 2147483648
      %v1521 = vmul.f32 %v1520, 1.442695
      %v1522 = vpow.pop %v1521
      %v1523 = vadd.f32 %v1522, 1.0
      %v1524 = vrcp.pop %v1523
      %v1525 = vmul.f32 1.0, %v1524
      %v1526 = vmul.f32 %v1519, %v1525
      %v1528 = vsel %vm234, %v1283, 0.0
      %v1529 = vrot.slane %v1528, 4
      %v1530 = vadd.f32 %v1528, %v1529
      %v1531 = vrot.slane %v1530, 2
      %v1532 = vadd.f32 %v1530, %v1531
      %v1533 = vrot.slane %v1532, 1
      %v1534 = vadd.f32 %v1532, %v1533
      %v1535 = vsel %vm234, %v1518, 0.0
      %v1536 = vrot.slane %v1535, 4
      %v1537 = vadd.f32 %v1535, %v1536
      %v1538 = vrot.slane %v1537, 2
      %v1539 = vadd.f32 %v1537, %v1538
      %v1540 = vrot.slane %v1539, 1
      %v1541 = vadd.f32 %v1539, %v1540
      %v1542 = vsel %vm234, %v1526, 0.0
      %v1543 = vrot.slane %v1542, 4
      %v1544 = vadd.f32 %v1542, %v1543
      %v1545 = vrot.slane %v1544, 2
      %v1546 = vadd.f32 %v1544, %v1545
      %v1547 = vrot.slane %v1546, 1
      %v1548 = vadd.f32 %v1546, %v1547
      %v1549 = vsel %vm214, %v1184, %v1359
      %vm1550 = vcmask 1041408
      %v1551 = vsel %vm1550, %v1549, %v1534
      %vm1552 = vcmask 1042432
      %v1553 = vsel %vm1552, %v1551, 0.0
      %v1554 = vpack.c.bf16 %v1553, %v1553
      %v1555 = vld [vmem:[%s3 + $0x50] sm:$0xf]
      %v1556 = vld [vmem:[%s3 + $0x54] sm:$0xf]
      %v1557 = vld [vmem:[%s3 + $0x58] sm:$0xf]
      %v1558 = vld [vmem:[%s3 + $0x5c] sm:$0xf]
      %v1559 = vld [vmem:[%s3 + $0x60] sm:$0xf]
      %v1560 = vld [vmem:[%s3 + $0x64] sm:$0xf]
      %v1561 = vld [vmem:[%s3 + $0x68] sm:$0xf]
      %v1562 = vld [vmem:[%s3 + $0x6c] sm:$0xf]
      %v1563 = vld [vmem:[%s4 + $0x14] sm:$0x1]
      %v1564 = vlaneseq
      %v1565 = vshrl.u32 %v1564, 7
      %v1566 = vsub.s32 0, %v1565
      %v1567 = vrot.slane %v1563, %v1566
      %v1576 = vunpack.c.l.b16 %v1555
      %v1577 = vunpack.c.l.b16 %v1556
      %v1578 = vunpack.c.l.b16 %v1557
      %v1579 = vunpack.c.l.b16 %v1558
      %v1580 = vunpack.c.l.b16 %v1559
      %v1581 = vunpack.c.l.b16 %v1560
      %v1582 = vunpack.c.l.b16 %v1561
      %v1583 = vunpack.c.l.b16 %v1562
      %v1584 = vpack.c.b16 %v1577, %v1576
      %v1585 = vpack.c.b16 %v1579, %v1578
      %v1586 = vpack.c.b16 %v1581, %v1580
      %v1587 = vpack.c.b16 %v1583, %v1582
      %v1593 = vsel %vm234, %v1554, 0
      %1595 = vmatprep.subr.bf16.mxu0 0
      %1596 = vmatpush1.bf16.msra.mxu0 %v1584
      %1597 = vmatprep.subr.bf16.mxu0 0
      %1598 = vmatpush1.bf16.msra.mxu0 %v1585
      %1599 = vmatprep.subr.bf16.mxu0 0
      %1600 = vmatpush1.bf16.msra.mxu0 %v1586
      %1601 = vmatprep.subr.bf16.mxu0 0
      %1602 = vmatpush1.bf16.msra.mxu0 %v1587
      %1603 = vmatprep.subr.bf16.mxu0 0
      %1604 = vmatpush1.bf16.msra.mxu0 0
      %1605 = vmatprep.subr.bf16.mxu0 0
      %1606 = vmatpush1.bf16.msra.mxu0 0
      %1607 = vmatprep.subr.bf16.mxu0 0
      %1608 = vmatpush1.bf16.msra.mxu0 0
      %1609 = vmatprep.subr.bf16.mxu0 0
      %1610 = vmatpush1.bf16.msra.mxu0 0
      %1611 = vmatprep.subr.bf16.mxu0 0
      %1612 = vmatpush1.bf16.msra.mxu0 0
      %1613 = vmatprep.subr.bf16.mxu0 0
      %1614 = vmatpush1.bf16.msra.mxu0 0
      %1615 = vmatprep.subr.bf16.mxu0 0
      %1616 = vmatpush1.bf16.msra.mxu0 0
      %1617 = vmatprep.subr.bf16.mxu0 0
      %1618 = vmatpush1.bf16.msra.mxu0 0
      %1619 = vmatprep.subr.bf16.mxu0 0
      %1620 = vmatpush1.bf16.msra.mxu0 0
      %1621 = vmatprep.subr.bf16.mxu0 0
      %1622 = vmatpush1.bf16.msra.mxu0 0
      %1623 = vmatprep.subr.bf16.mxu0 0
      %1624 = vmatpush1.bf16.msra.mxu0 0
      %1625 = vmatprep.subr.bf16.mxu0 0
      %1626 = vmatpush1.bf16.msra.mxu0 0
      %1627 = vmatprep.mubr.bf16.mxu0 0
      %1628 = vmatmul.mubr.bf16.gmra.mrb[0].mxu0 %v1593
      %v1629 = vpop.f32.mrb[0].mxu0
      %v1630 = vadd.f32 %v1567, %v1629
      %v1631 = vpop.f32.mrb[0].mxu0
      %v1632 = vpop.f32.mrb[0].mxu0
      %v1633 = vpop.f32.mrb[0].mxu0
      %1634 = vdwg.mxu0
      %v1635 = vxor.u32 %v1630, 2147483648
      %v1636 = vmul.f32 %v1635, 1.442695
      %v1637 = vpow.pop %v1636
      %v1638 = vadd.f32 %v1637, 1.0
      %v1639 = vrcp.pop %v1638
      %v1640 = vmul.f32 1.0, %v1639
      %v1641 = vsel %vm214, %v1191, %v1366
      %v1642 = vsel %vm1550, %v1641, %v1541
      %v1643 = vsel %vm1552, %v1642, 0.0
      %v1644 = vpack.c.bf16 %v1643, %v1643
      %v1645 = vld [vmem:[%s3 + $0x70] sm:$0xf]
      %v1646 = vld [vmem:[%s3 + $0x74] sm:$0xf]
      %v1647 = vld [vmem:[%s3 + $0x78] sm:$0xf]
      %v1648 = vld [vmem:[%s3 + $0x7c] sm:$0xf]
      %v1649 = vld [vmem:[%s3 + $0x80] sm:$0xf]
      %v1650 = vld [vmem:[%s3 + $0x84] sm:$0xf]
      %v1651 = vld [vmem:[%s3 + $0x88] sm:$0xf]
      %v1652 = vld [vmem:[%s3 + $0x8c] sm:$0xf]
      %v1653 = vld [vmem:[%s4 + $0x15] sm:$0x1]
      %v1654 = vlaneseq
      %v1655 = vshrl.u32 %v1654, 7
      %v1656 = vsub.s32 0, %v1655
      %v1657 = vrot.slane %v1653, %v1656
      %v1666 = vunpack.c.l.b16 %v1645
      %v1667 = vunpack.c.l.b16 %v1646
      %v1668 = vunpack.c.l.b16 %v1647
      %v1669 = vunpack.c.l.b16 %v1648
      %v1670 = vunpack.c.l.b16 %v1649
      %v1671 = vunpack.c.l.b16 %v1650
      %v1672 = vunpack.c.l.b16 %v1651
      %v1673 = vunpack.c.l.b16 %v1652
      %v1674 = vpack.c.b16 %v1667, %v1666
      %v1675 = vpack.c.b16 %v1669, %v1668
      %v1676 = vpack.c.b16 %v1671, %v1670
      %v1677 = vpack.c.b16 %v1673, %v1672
      %v1683 = vsel %vm234, %v1644, 0
      %1685 = vmatprep.subr.bf16.mxu0 0
      %1686 = vmatpush1.bf16.msra.mxu0 %v1674
      %1687 = vmatprep.subr.bf16.mxu0 0
      %1688 = vmatpush1.bf16.msra.mxu0 %v1675
      %1689 = vmatprep.subr.bf16.mxu0 0
      %1690 = vmatpush1.bf16.msra.mxu0 %v1676
      %1691 = vmatprep.subr.bf16.mxu0 0
      %1692 = vmatpush1.bf16.msra.mxu0 %v1677
      %1693 = vmatprep.subr.bf16.mxu0 0
      %1694 = vmatpush1.bf16.msra.mxu0 0
      %1695 = vmatprep.subr.bf16.mxu0 0
      %1696 = vmatpush1.bf16.msra.mxu0 0
      %1697 = vmatprep.subr.bf16.mxu0 0
      %1698 = vmatpush1.bf16.msra.mxu0 0
      %1699 = vmatprep.subr.bf16.mxu0 0
      %1700 = vmatpush1.bf16.msra.mxu0 0
      %1701 = vmatprep.subr.bf16.mxu0 0
      %1702 = vmatpush1.bf16.msra.mxu0 0
      %1703 = vmatprep.subr.bf16.mxu0 0
      %1704 = vmatpush1.bf16.msra.mxu0 0
      %1705 = vmatprep.subr.bf16.mxu0 0
      %1706 = vmatpush1.bf16.msra.mxu0 0
      %1707 = vmatprep.subr.bf16.mxu0 0
      %1708 = vmatpush1.bf16.msra.mxu0 0
      %1709 = vmatprep.subr.bf16.mxu0 0
      %1710 = vmatpush1.bf16.msra.mxu0 0
      %1711 = vmatprep.subr.bf16.mxu0 0
      %1712 = vmatpush1.bf16.msra.mxu0 0
      %1713 = vmatprep.subr.bf16.mxu0 0
      %1714 = vmatpush1.bf16.msra.mxu0 0
      %1715 = vmatprep.subr.bf16.mxu0 0
      %1716 = vmatpush1.bf16.msra.mxu0 0
      %1717 = vmatprep.mubr.bf16.mxu0 0
      %1718 = vmatmul.mubr.bf16.gmra.mrb[0].mxu0 %v1683
      %v1719 = vpop.f32.mrb[0].mxu0
      %v1720 = vadd.f32 %v1657, %v1719
      %v1721 = vpop.f32.mrb[0].mxu0
      %v1722 = vpop.f32.mrb[0].mxu0
      %v1723 = vpop.f32.mrb[0].mxu0
      %1724 = vdwg.mxu0
      %v1725 = vxor.u32 %v1720, 2147483648
      %v1726 = vmul.f32 %v1725, 1.442695
      %v1727 = vpow.pop %v1726
      %v1728 = vadd.f32 %v1727, 1.0
      %v1729 = vrcp.pop %v1728
      %v1730 = vmul.f32 1.0, %v1729
      %v1731 = vsel %vm214, %v1198, %v1373
      %v1732 = vsel %vm1550, %v1731, %v1548
      %v1733 = vsel %vm1552, %v1732, 0.0
      %v1734 = vpack.c.bf16 %v1733, %v1733
      %v1735 = vld [vmem:[%s3 + $0x90] sm:$0xf]
      %v1736 = vld [vmem:[%s3 + $0x94] sm:$0xf]
      %v1737 = vld [vmem:[%s3 + $0x98] sm:$0xf]
      %v1738 = vld [vmem:[%s3 + $0x9c] sm:$0xf]
      %v1739 = vld [vmem:[%s3 + $0xa0] sm:$0xf]
      %v1740 = vld [vmem:[%s3 + $0xa4] sm:$0xf]
      %v1741 = vld [vmem:[%s3 + $0xa8] sm:$0xf]
      %v1742 = vld [vmem:[%s3 + $0xac] sm:$0xf]
      %v1743 = vld [vmem:[%s4 + $0x16] sm:$0x1]
      %v1744 = vlaneseq
      %v1745 = vshrl.u32 %v1744, 7
      %v1746 = vsub.s32 0, %v1745
      %v1747 = vrot.slane %v1743, %v1746
      %v1756 = vunpack.c.l.b16 %v1735
      %v1757 = vunpack.c.l.b16 %v1736
      %v1758 = vunpack.c.l.b16 %v1737
      %v1759 = vunpack.c.l.b16 %v1738
      %v1760 = vunpack.c.l.b16 %v1739
      %v1761 = vunpack.c.l.b16 %v1740
      %v1762 = vunpack.c.l.b16 %v1741
      %v1763 = vunpack.c.l.b16 %v1742
      %v1764 = vpack.c.b16 %v1757, %v1756
      %v1765 = vpack.c.b16 %v1759, %v1758
      %v1766 = vpack.c.b16 %v1761, %v1760
      %v1767 = vpack.c.b16 %v1763, %v1762
      %v1773 = vsel %vm234, %v1734, 0
      %1775 = vmatprep.subr.bf16.mxu0 0
      %1776 = vmatpush1.bf16.msra.mxu0 %v1764
      %1777 = vmatprep.subr.bf16.mxu0 0
      %1778 = vmatpush1.bf16.msra.mxu0 %v1765
      %1779 = vmatprep.subr.bf16.mxu0 0
      %1780 = vmatpush1.bf16.msra.mxu0 %v1766
      %1781 = vmatprep.subr.bf16.mxu0 0
      %1782 = vmatpush1.bf16.msra.mxu0 %v1767
      %1783 = vmatprep.subr.bf16.mxu0 0
      %1784 = vmatpush1.bf16.msra.mxu0 0
      %1785 = vmatprep.subr.bf16.mxu0 0
      %1786 = vmatpush1.bf16.msra.mxu0 0
      %1787 = vmatprep.subr.bf16.mxu0 0
      %1788 = vmatpush1.bf16.msra.mxu0 0
      %1789 = vmatprep.subr.bf16.mxu0 0
      %1790 = vmatpush1.bf16.msra.mxu0 0
      %1791 = vmatprep.subr.bf16.mxu0 0
      %1792 = vmatpush1.bf16.msra.mxu0 0
      %1793 = vmatprep.subr.bf16.mxu0 0
      %1794 = vmatpush1.bf16.msra.mxu0 0
      %1795 = vmatprep.subr.bf16.mxu0 0
      %1796 = vmatpush1.bf16.msra.mxu0 0
      %1797 = vmatprep.subr.bf16.mxu0 0
      %1798 = vmatpush1.bf16.msra.mxu0 0
      %1799 = vmatprep.subr.bf16.mxu0 0
      %1800 = vmatpush1.bf16.msra.mxu0 0
      %1801 = vmatprep.subr.bf16.mxu0 0
      %1802 = vmatpush1.bf16.msra.mxu0 0
      %1803 = vmatprep.subr.bf16.mxu0 0
      %1804 = vmatpush1.bf16.msra.mxu0 0
      %1805 = vmatprep.subr.bf16.mxu0 0
      %1806 = vmatpush1.bf16.msra.mxu0 0
      %1807 = vmatprep.mubr.bf16.mxu0 0
      %1808 = vmatmul.mubr.bf16.gmra.mrb[0].mxu0 %v1773
      %v1809 = vpop.f32.mrb[0].mxu0
      %v1810 = vadd.f32 %v1747, %v1809
      %v1811 = vpop.f32.mrb[0].mxu0
      %v1812 = vpop.f32.mrb[0].mxu0
      %v1813 = vpop.f32.mrb[0].mxu0
      %1814 = vdwg.mxu0
      %v1815 = vxor.u32 %v1810, 2147483648
      %v1816 = vmul.f32 %v1815, 1.442695
      %v1817 = vpow.pop %v1816
      %v1818 = vadd.f32 %v1817, 1.0
      %v1819 = vrcp.pop %v1818
      %v1820 = vmul.f32 1.0, %v1819
      %v1821 = vlaneseq
      %v1822 = vshrl.u32 %v1821, 7
      %v1823 = vsub.s32 0, %v1822
      %v1824 = vrot.slane %v1730, %v1823
      %v1825 = vmul.f32 %v1163, %v1824
      %v1826 = vlaneseq
      %v1827 = vshrl.u32 %v1826, 7
      %v1828 = vsub.s32 0, %v1827
      %v1829 = vrot.slane %v1820, %v1828
      %v1830 = vmul.f32 %v1176, %v1829
      %v1831 = vadd.f32 %v1825, %v1830
      %v1832 = vlaneseq
      %v1833 = vshrl.u32 %v1832, 7
      %v1834 = vsub.s32 0, %v1833
      %v1835 = vrot.slane %v1640, %v1834
      %v1836 = vmul.f32 %v879, %v1835
      %v1837 = vmul.f32 %v880, %v1835
      %v1840 = vrot.slane %v1836, 1
      %v1841 = vrot.slane %v1837, 1
      %v1842 = vsel %vm221, %v1840, %v1841
      %v1844 = vadd.f32 %v1831, %v1842
      %v1845 = vlaneseq
      %v1846 = vshrl.u32 %v1845, 7
      %v1847 = vsub.s32 1, %v1846
      %v1848 = vrot.slane %v1730, %v1847
      %v1849 = vmul.f32 %v1343, %v1848
      %v1850 = vlaneseq
      %v1851 = vshrl.u32 %v1850, 7
      %v1852 = vsub.s32 1, %v1851
      %v1853 = vrot.slane %v1820, %v1852
      %v1854 = vmul.f32 %v1351, %v1853
      %v1855 = vadd.f32 %v1849, %v1854
      %v1856 = vlaneseq
      %v1857 = vshrl.u32 %v1856, 7
      %v1858 = vsub.s32 1, %v1857
      %v1859 = vrot.slane %v1640, %v1858
      %v1860 = vmul.f32 %v881, %v1859
      %v1861 = vmul.f32 %v882, %v1859
      %v1864 = vrot.slane %v1860, 1
      %v1865 = vrot.slane %v1861, 1
      %v1866 = vsel %vm221, %v1864, %v1865
      %v1868 = vadd.f32 %v1855, %v1866
      %v1869 = vlaneseq
      %v1870 = vshrl.u32 %v1869, 7
      %v1871 = vsub.s32 2, %v1870
      %v1872 = vrot.slane %v1730, %v1871
      %v1873 = vmul.f32 %v1518, %v1872
      %v1874 = vlaneseq
      %v1875 = vshrl.u32 %v1874, 7
      %v1876 = vsub.s32 2, %v1875
      %v1877 = vrot.slane %v1820, %v1876
      %v1878 = vmul.f32 %v1526, %v1877
      %v1879 = vadd.f32 %v1873, %v1878
      %v1880 = vlaneseq
      %v1881 = vshrl.u32 %v1880, 7
      %v1882 = vsub.s32 2, %v1881
      %v1883 = vrot.slane %v1640, %v1882
      %v1884 = vmul.f32 %v883, %v1883
      %v1885 = vmul.f32 %v884, %v1883
      %v1888 = vrot.slane %v1884, 1
      %v1889 = vrot.slane %v1885, 1
      %v1890 = vsel %vm221, %v1888, %v1889
      %v1892 = vadd.f32 %v1879, %v1890
      %v1893 = vpack.c.bf16 %v1868, %v1844
      %v1894 = vpack.c.bf16 %v1892, %v1892
      %v1895 = vld [vmem:[%s3 + $0xb0] sm:$0xf]
      %v1896 = vld [vmem:[%s3 + $0xb4] sm:$0xf]
      %v1897 = vld [vmem:[%s3 + $0xb8] sm:$0xf]
      %v1898 = vld [vmem:[%s3 + $0xbc] sm:$0xf]
      %v1899 = vld [vmem:[%s3 + $0xc0] sm:$0xf]
      %v1900 = vld [vmem:[%s3 + $0xc4] sm:$0xf]
      %v1901 = vld [vmem:[%s3 + $0xc8] sm:$0xf]
      %v1902 = vld [vmem:[%s3 + $0xcc] sm:$0xf]
      %v1903 = vld [vmem:[%s4 + $0x17] sm:$0x1]
      %v1904 = vlaneseq
      %v1905 = vshrl.u32 %v1904, 7
      %v1906 = vsub.s32 0, %v1905
      %v1907 = vrot.slane %v1903, %v1906
      %v1916 = vunpack.c.l.b16 %v1895
      %v1917 = vunpack.c.l.b16 %v1896
      %v1918 = vunpack.c.l.b16 %v1897
      %v1919 = vunpack.c.l.b16 %v1898
      %v1920 = vunpack.c.l.b16 %v1899
      %v1921 = vunpack.c.l.b16 %v1900
      %v1922 = vunpack.c.l.b16 %v1901
      %v1923 = vunpack.c.l.b16 %v1902
      %v1924 = vpack.c.b16 %v1917, %v1916
      %v1925 = vpack.c.b16 %v1919, %v1918
      %v1926 = vpack.c.b16 %v1921, %v1920
      %v1927 = vpack.c.b16 %v1923, %v1922
      %v1933 = vsel %vm234, %v1893, 0
      %v1936 = vsel %vm234, %v1894, 0
      %1938 = vmatprep.subr.bf16.mxu0 0
      %1939 = vmatpush1.bf16.msra.mxu0 %v1924
      %1940 = vmatprep.subr.bf16.mxu0 0
      %1941 = vmatpush1.bf16.msra.mxu0 %v1925
      %1942 = vmatprep.subr.bf16.mxu0 0
      %1943 = vmatpush1.bf16.msra.mxu0 %v1926
      %1944 = vmatprep.subr.bf16.mxu0 0
      %1945 = vmatpush1.bf16.msra.mxu0 %v1927
      %1946 = vmatprep.subr.bf16.mxu0 0
      %1947 = vmatpush1.bf16.msra.mxu0 0
      %1948 = vmatprep.subr.bf16.mxu0 0
      %1949 = vmatpush1.bf16.msra.mxu0 0
      %1950 = vmatprep.subr.bf16.mxu0 0
      %1951 = vmatpush1.bf16.msra.mxu0 0
      %1952 = vmatprep.subr.bf16.mxu0 0
      %1953 = vmatpush1.bf16.msra.mxu0 0
      %1954 = vmatprep.subr.bf16.mxu0 0
      %1955 = vmatpush1.bf16.msra.mxu0 0
      %1956 = vmatprep.subr.bf16.mxu0 0
      %1957 = vmatpush1.bf16.msra.mxu0 0
      %1958 = vmatprep.subr.bf16.mxu0 0
      %1959 = vmatpush1.bf16.msra.mxu0 0
      %1960 = vmatprep.subr.bf16.mxu0 0
      %1961 = vmatpush1.bf16.msra.mxu0 0
      %1962 = vmatprep.subr.bf16.mxu0 0
      %1963 = vmatpush1.bf16.msra.mxu0 0
      %1964 = vmatprep.subr.bf16.mxu0 0
      %1965 = vmatpush1.bf16.msra.mxu0 0
      %1966 = vmatprep.subr.bf16.mxu0 0
      %1967 = vmatpush1.bf16.msra.mxu0 0
      %1968 = vmatprep.subr.bf16.mxu0 0
      %1969 = vmatpush1.bf16.msra.mxu0 0
      %1970 = vmatprep.mubr.bf16.mxu0 0
      %1971 = vmatmul.mubr.bf16.gmra.mrb[0].mxu0 %v1933
      %v1972 = vpop.f32.mrb[0].mxu0
      %v1973 = vadd.f32 %v1907, %v1972
      %v1974 = vpop.f32.mrb[0].mxu0
      %v1975 = vpop.f32.mrb[0].mxu0
      %v1976 = vadd.f32 %v1907, %v1975
      %v1977 = vpop.f32.mrb[0].mxu0
      %1978 = vmatprep.mubr.bf16.mxu0 0
      %1979 = vmatmul.mubr.bf16.gmra.mrb[0].mxu0 %v1936
      %v1980 = vpop.f32.mrb[0].mxu0
      %v1981 = vadd.f32 %v1907, %v1980
      %v1982 = vpop.f32.mrb[0].mxu0
      %v1983 = vpop.f32.mrb[0].mxu0
      %v1984 = vpop.f32.mrb[0].mxu0
      %1985 = vdwg.mxu0
      %v1986 = vxor.u32 %v1973, 2147483648
      %v1987 = vxor.u32 %v1976, 2147483648
      %v1988 = vxor.u32 %v1981, 2147483648
      %v1989 = vmul.f32 %v1986, 1.442695
      %v1990 = vpow.pop %v1989
      %v1991 = vmul.f32 %v1987, 1.442695
      %v1992 = vpow.pop %v1991
      %v1993 = vmul.f32 %v1988, 1.442695
      %v1994 = vpow.pop %v1993
      %v1995 = vadd.f32 %v1990, 1.0
      %v1996 = vadd.f32 %v1992, 1.0
      %v1997 = vadd.f32 %v1994, 1.0
      %v1998 = vrcp.pop %v1995
      %v1999 = vmul.f32 1.0, %v1998
      %v2000 = vrcp.pop %v1996
      %v2001 = vmul.f32 1.0, %v2000
      %v2002 = vrcp.pop %v1997
      %v2003 = vmul.f32 1.0, %v2002
      %v2004 = vmul.f32 %v1973, %v1999
      %v2005 = vmul.f32 %v1976, %v2001
      %v2006 = vmul.f32 %v1981, %v2003
      %2007 = vst.msk [vmem:[%s204] sm:$0xff] %vm234, %v2004
      %2008 = vst.msk [vmem:[%s204 + $0x8] sm:$0xff] %vm234, %v2005
      %2009 = vst.msk [vmem:[%s204 + $0x10] sm:$0xff] %vm234, %v2006
      %s2010 = smul.u32 3, %s16
      %p2011 = scmp.lt.s32.totalorder %s2010, 5
      %s2012 = scalar_select %p2011, %s2010, 5
      %s2013 = smul.addr %s2012, 8
      %s2014 = scalar_lea.vmem %s5, %s2013
      // Predicated region
      $region41: #{cra_forward.1} parent=39 // pred_check
        %p2015 = pneg %p139
      $region42: #{cra_forward.1} parent=39 // pred_check_branch
        %2017 = sbr.rel (%p2015) target = $region44
      $region43: #{cra_forward.1} parent=39 // pred_region
        %s2018 = smul.u32 3, %s16
      $region44: #{cra_forward.1} parent=39 // pred_fallthru
        _
    $region40: #{cra_forward.1} parent=5 // pred_fallthru
      _
    %p2019 = scmp.le.s32.totalorder 2, %s11
    // Predicated region
    $region45: #{cra_forward.1} parent=5 // pred_check
      %p2020 = pneg %p2019
    $region46: #{cra_forward.1} parent=5 // pred_check_branch
      %2022 = sbr.rel (%p2020) target = $region48
    $region47: #{cra_forward.1} parent=5 // pred_region
      %s2023 = ssub.s32 %s11, 2
      // Predicated region
      $region49: #{cra_forward.1} parent=47 // pred_check
        %p2024 = pneg %p145
      $region50: #{cra_forward.1} parent=47 // pred_check_branch
        %2026 = sbr.rel (%p2024) target = $region52
      $region51: #{cra_forward.1} parent=47 // pred_region
        %s2027 = smul.u32 3, %s17
        %p2028 = scmp.lt.s32.totalorder %s2027, 5
        %s2029 = scalar_select %p2028, %s2027, 5
        %s2030 = smul.addr %s2029, 8
        %s2031 = scalar_lea.vmem %s5, %s2030
      $region52: #{cra_forward.1} parent=47 // pred_fallthru
        _
    $region48: #{cra_forward.1} parent=5 // pred_fallthru
      _
  $region6: #{cra_forward.1} parent=0 // loop_footer
    %s15 = sadd.s32 1, %s11
  $region7: #{cra_forward.1} parent=0 // loop_footer_branch
    %10 = sbr.rel target = $region3
  $region8: #{cra_forward.1} parent=0 // loop_exit
    _

</llo_original>
